<compile_context>
chip_gen: v7x
topology: tpu7x:2x2x1
jax: 0.10.0
libtpu: 0.0.40
codegen_flags: <defaults>
</compile_context>

<pallas_src>
import functools

import jax
import jax.numpy as jnp
from jax import lax
from jax.experimental import pallas as pl
from jax.experimental.pallas import tpu as pltpu

EPS = 1e-5
TILE_CAP = 1024                   # rows / spatial positions per tile (>=512 reaches ~85%
                                  # of HBM roofline; buffers stay far below v7x 64 MiB VMEM)
VMEM_LIMIT = 48 * 1024 * 1024     # above the 16/32 MiB scoped defaults, below v7x physical


def _cparams(grid_rank):
    return pltpu.CompilerParams(
        dimension_semantics=("parallel",) * grid_rank,
        vmem_limit_bytes=VMEM_LIMIT)


def _pick_tile(total, unit, cap=TILE_CAP):
    """Tile for a 1-D extent: full extent if it fits, else the largest multiple-of-`unit`
    divisor <= cap, else `cap` itself (cdiv grid; partial last tile handled by masking)."""
    if total <= cap:
        return total
    for t in range(cap - cap % unit, unit - 1, -unit):
        if total % t == 0:
            return t
    return cap


# ------------------------------- kernels ------------------------------------

def k1_conv1(x_ref, w_ref, y_ref, st_ref, *, hw, thw, need_mask):
    """conv1 (1x1) on one NCHW (C, thw) slice of one image.

    The NCHW->NHWC transpose is folded into the matmul (LHS contracted along its
    channel/sublane axis).  Emits per-tile BN1 partials (sum, sum_sq) over the
    bf16-rounded values that are actually stored."""
    xb = x_ref[0].astype(jnp.bfloat16)                          # (C, thw)
    y = lax.dot_general(xb, w_ref[...],
                        dimension_numbers=(((0,), (0,)), ((), ())),
                        preferred_element_type=jnp.float32)     # (thw, P)
    yb = y.astype(jnp.bfloat16)
    y_ref[...] = yb[None]
    # TODO(synk): lane-dense (thw/4, 4P) repack of this bf16 store (profile-gated; only
    # worthwhile while the vst slot is binding and P < 128).
    ys = yb.astype(jnp.float32)
    if need_mask:
        row0 = pl.program_id(1) * thw
        valid = row0 + lax.broadcasted_iota(jnp.int32, ys.shape, 0) < hw
        ys = jnp.where(valid, ys, 0.0)
    st_ref[...] = jnp.concatenate(
        [jnp.sum(ys, axis=0, keepdims=True),
         jnp.sum(ys * ys, axis=0, keepdims=True)], axis=0)[None, None]


def k2_conv3x3(y1_ref, s1_ref, b1_ref, w2_ref, y2_ref, st_ref, *, h, w, p):
    """bn1+relu -> conv2 (3x3, pad=1, stride=1) for one image, plus BN2 partial stats.

    The conv is evaluated as 3 fat (H*W, 3P) @ (3P, P) matmuls (one per kh).  The kw halo
    slab is built as a value (channel-concatenated shifts), so there is no persistent
    scratch and no per-image memset."""
    a = jnp.maximum(y1_ref[0].astype(jnp.float32) * s1_ref[...] + b1_ref[...], 0.0)
    a = a.astype(jnp.bfloat16)                                   # (H, W, P)

    zc = jnp.zeros((h, 1, p), jnp.bfloat16)
    zr = jnp.zeros((1, w, 3 * p), jnp.bfloat16)
    # slab[r, x, kw*P + c] = zero-padded activation at (row r-1, col x+kw-1, channel c)
    slab = jnp.concatenate([
        jnp.concatenate([zc, a[:, :w - 1, :]], axis=1),          # kw = 0
        a,                                                       # kw = 1
        jnp.concatenate([a[:, 1:, :], zc], axis=1),              # kw = 2
    ], axis=2)                                                   # (H, W, 3P)
    slab = jnp.concatenate([zr, slab, zr], axis=0)               # (H+2, W, 3P)

    acc = jnp.zeros((h * w, p), jnp.float32)
    for kh in range(3):                                          # 3 MXU matmuls, K = 3P
        acc = acc + jnp.dot(slab[kh:kh + h].reshape(h * w, 3 * p), w2_ref[kh],
                            preferred_element_type=jnp.float32)

    yb = acc.astype(jnp.bfloat16)
    y2_ref[...] = yb[None]
    ys = yb.astype(jnp.float32)
    st_ref[...] = jnp.concatenate(
        [jnp.sum(ys, axis=0, keepdims=True),
         jnp.sum(ys * ys, axis=0, keepdims=True)], axis=0)[None]
    # TODO(synk): tile this kernel over image rows (halo'd) for large H*W / small N so
    # both v7x TensorCores stay busy and the accumulator stays register/VMEM resident.


def k3_stats3(y2_ref, s2_ref, b2_ref, w3_ref, st_ref, *, m, tm, need_mask):
    """bn2+relu -> conv3 (1x1) kept entirely in VMEM; emits BN3 partial stats only."""
    a = jnp.maximum(y2_ref[...].astype(jnp.float32) * s2_ref[...] + b2_ref[...], 0.0)
    y3 = jnp.dot(a.astype(jnp.bfloat16), w3_ref[...],
                 preferred_element_type=jnp.float32)             # (tm, Cout)
    if need_mask:
        row0 = pl.program_id(0) * tm
        valid = row0 + lax.broadcasted_iota(jnp.int32, y3.shape, 0) < m
        y3 = jnp.where(valid, y3, 0.0)
    st_ref[...] = jnp.concatenate(
        [jnp.sum(y3, axis=0, keepdims=True),
         jnp.sum(y3 * y3, axis=0, keepdims=True)], axis=0)[None]
    # TODO(synk): Gram-matrix partials (sum(a), a^T a) would cut this kernel's MXU flops
    # 4x once it stops being HBM-bound on the y2 read.


def k4_final(y2_ref, s2_ref, b2_ref, w3_ref, s3_ref, b3_ref, res_ref, o_ref):
    """bn2+relu -> conv3 (recomputed) -> bn3 -> + residual -> relu, producing the output
    tile directly in NCHW layout (output transpose folded into a transposed matmul)."""
    a = jnp.maximum(y2_ref[0].astype(jnp.float32) * s2_ref[...] + b2_ref[...], 0.0)
    y3t = lax.dot_general(w3_ref[...], a.astype(jnp.bfloat16),
                          dimension_numbers=(((0,), (1,)), ((), ())),
                          preferred_element_type=jnp.float32)    # (Cout, thw)
    o_ref[...] = jnp.maximum(y3t * s3_ref[...] + b3_ref[...] + res_ref[0], 0.0)[None]


# --------------------------- host-side BN fold -------------------------------

def _fold_bn(stats, gamma, beta, count):
    """stats: (..., 2, C) per-tile (sum, sum_sq) partials -> folded BN scale/bias (1, C)."""
    r = jnp.sum(stats.reshape(-1, 2, stats.shape[-1]), axis=0)   # (2, C)
    mean = r[0] / count
    var = jnp.maximum(r[1] / count - mean * mean, 0.0)           # biased variance
    # TODO(synk): switch to Welford-style (count, mean, M2) partials if the E[x^2]-E[x]^2
    # cancellation becomes an accuracy issue at large M.
    scale = gamma * lax.rsqrt(var + EPS)                         # (1, C)
    bias = beta - mean * scale                                   # (1, C)
    return scale, bias


# ------------------------------- forward ------------------------------------

def bottleneck_forward_impl(x_nchw, params):
    """x: (N, Cin, H, W) f32 with Cin == planes*expansion (stride=1, downsample=None)."""
    w1, g1, b1, w2, g2, b2, w3, g3, b3 = params
    N, Cin, H, W = x_nchw.shape
    P = w1.shape[1]
    Cout = w3.shape[1]
    assert Cin == Cout, "stride=1, downsample=None requires inplanes == planes * expansion"
    HW = H * W
    M = N * HW

    x3 = x_nchw.reshape(N, Cin, HW).astype(jnp.float32)          # free reshape, stays NCHW
    w1b = w1.astype(jnp.bfloat16)
    w2b = w2.reshape(3, 3 * P, P).astype(jnp.bfloat16)           # rows = kw*P + cin
    w3b = w3.astype(jnp.bfloat16)

    thw = _pick_tile(HW, 128)          # lane dim of the NCHW x block -> multiple of 128
    n_hw = pl.cdiv(HW, thw)
    k1_mask = (HW % thw) != 0

    # ---- K1: conv1 (1x1), NCHW->NHWC transpose folded into the matmul + BN1 partials ----
    y1, st1 = pl.pallas_call(
        functools.partial(k1_conv1, hw=HW, thw=thw, need_mask=k1_mask),
        grid=(N, n_hw),
        in_specs=[pl.BlockSpec((1, Cin, thw), lambda n, t: (n, 0, t)),
                  pl.BlockSpec((Cin, P), lambda n, t: (0, 0))],
        out_specs=(pl.BlockSpec((1, thw, P), lambda n, t: (n, t, 0)),
                   pl.BlockSpec((1, 1, 2, P), lambda n, t: (n, t, 0, 0))),
        out_shape=(jax.ShapeDtypeStruct((N, HW, P), jnp.bfloat16),
                   jax.ShapeDtypeStruct((N, n_hw, 2, P), jnp.float32)),
        compiler_params=_cparams(2),
    )(x3, w1b)
    scale1, bias1 = _fold_bn(st1, g1, b1, M)

    # ---- K2: bn1+relu -> conv2 (3x3, pad=1) + BN2 partials (one image per grid step) ----
    y2, st2 = pl.pallas_call(
        functools.partial(k2_conv3x3, h=H, w=W, p=P),
        grid=(N,),
        in_specs=[pl.BlockSpec((1, H, W, P), lambda n: (n, 0, 0, 0)),
                  pl.BlockSpec((1, P), lambda n: (0, 0)),
                  pl.BlockSpec((1, P), lambda n: (0, 0)),
                  pl.BlockSpec((3, 3 * P, P), lambda n: (0, 0, 0))],
        out_specs=(pl.BlockSpec((1, HW, P), lambda n: (n, 0, 0)),
                   pl.BlockSpec((1, 2, P), lambda n: (n, 0, 0))),
        out_shape=(jax.ShapeDtypeStruct((N, HW, P), jnp.bfloat16),
                   jax.ShapeDtypeStruct((N, 2, P), jnp.float32)),
        compiler_params=_cparams(1),
    )(y1.reshape(N, H, W, P), scale1, bias1, w2b)
    scale2, bias2 = _fold_bn(st2, g2, b2, M)

    # ---- K3: bn2+relu -> conv3 (1x1) kept in VMEM, BN3 partial stats only ----
    y2_2d = y2.reshape(M, P)
    tm = _pick_tile(M, 8)
    gm = pl.cdiv(M, tm)
    k3_mask = (M % tm) != 0

    st3 = pl.pallas_call(
        functools.partial(k3_stats3, m=M, tm=tm, need_mask=k3_mask),
        grid=(gm,),
        in_specs=[pl.BlockSpec((tm, P), lambda i: (i, 0)),
                  pl.BlockSpec((1, P), lambda i: (0, 0)),
                  pl.BlockSpec((1, P), lambda i: (0, 0)),
                  pl.BlockSpec((P, Cout), lambda i: (0, 0))],
        out_specs=pl.BlockSpec((1, 2, Cout), lambda i: (i, 0, 0)),
        out_shape=jax.ShapeDtypeStruct((gm, 2, Cout), jnp.float32),
        compiler_params=_cparams(1),
    )(y2_2d, scale2, bias2, w3b)
    scale3, bias3 = _fold_bn(st3, g3, b3, M)

    # ---- K4: recompute conv3 -> bn3 -> + residual -> relu, NCHW output directly ----
    out3 = pl.pallas_call(
        k4_final,
        grid=(N, n_hw),
        in_specs=[pl.BlockSpec((1, thw, P), lambda n, t: (n, t, 0)),
                  pl.BlockSpec((1, P), lambda n, t: (0, 0)),
                  pl.BlockSpec((1, P), lambda n, t: (0, 0)),
                  pl.BlockSpec((P, Cout), lambda n, t: (0, 0)),
                  pl.BlockSpec((Cout, 1), lambda n, t: (0, 0)),
                  pl.BlockSpec((Cout, 1), lambda n, t: (0, 0)),
                  pl.BlockSpec((1, Cin, thw), lambda n, t: (n, 0, t))],
        out_specs=pl.BlockSpec((1, Cout, thw), lambda n, t: (n, 0, t)),
        out_shape=jax.ShapeDtypeStruct((N, Cout, HW), jnp.float32),
        compiler_params=_cparams(2),
    )(y2, scale2, bias2, w3b,
      scale3.reshape(Cout, 1), bias3.reshape(Cout, 1), x3)

    return out3.reshape(N, Cout, H, W)


bottleneck_forward = jax.jit(bottleneck_forward_impl)


# ----------------------------- parameter init --------------------------------

def init_params(key, inplanes, planes):
    expansion = 4
    ks = jax.random.split(key, 9)

    def conv_w(k, cin, cout, kh, kw):
        fan_in = cin * kh * kw
        std = (2.0 / fan_in) ** 0.5
        w = std * jax.random.normal(k, (kh, kw, cin, cout), jnp.float32)
        return w[0, 0] if (kh == 1 and kw == 1) else w   # 1x1 stored as (cin, cout)

    def bn_gb(kg, kb, c):
        g = 1.0 + 0.1 * jax.random.normal(kg, (1, c), jnp.float32)
        b = 0.1 * jax.random.normal(kb, (1, c), jnp.float32)
        return g, b

    w1 = conv_w(ks[0], inplanes, planes, 1, 1)
    g1, b1 = bn_gb(ks[1], ks[2], planes)
    w2 = conv_w(ks[3], planes, planes, 3, 3)
    g2, b2 = bn_gb(ks[4], ks[5], planes)
    w3 = conv_w(ks[6], planes, planes * expansion, 1, 1)
    g3, b3 = bn_gb(ks[7], ks[8], planes * expansion)
    return (w1, g1, b1, w2, g2, b2, w3, g3, b3)


# ---------------------------- pure-JAX reference ------------------------------

def reference_forward(x_nchw, params):
    w1, g1, b1, w2, g2, b2, w3, g3, b3 = params

    def bn(y, g, b):
        mean = jnp.mean(y, axis=(0, 2, 3), keepdims=True)
        var = jnp.mean((y - mean) ** 2, axis=(0, 2, 3), keepdims=True)
        return (y - mean) * lax.rsqrt(var + EPS) * g.reshape(1, -1, 1, 1) \
            + b.reshape(1, -1, 1, 1)

    def conv(x, w_hwio, pad):
        w_oihw = jnp.transpose(w_hwio, (3, 2, 0, 1))
        return lax.conv_general_dilated(
            x, w_oihw, (1, 1), pad,
            dimension_numbers=("NCHW", "OIHW", "NCHW"),
            precision=lax.Precision.HIGHEST)

    out = jax.nn.relu(bn(conv(x_nchw, w1[None, None], "VALID"), g1, b1))
    out = jax.nn.relu(bn(conv(out, w2, [(1, 1), (1, 1)]), g2, b2))
    out = bn(conv(out, w3[None, None], "VALID"), g3, b3)
    return jax.nn.relu(out + x_nchw)


# ---------------------------------- main --------------------------------------

if __name__ == "__main__":
    key = jax.random.PRNGKey(0)
    kx, kp = jax.random.split(key)

    planes = 32
    inplanes = planes * 4            # downsample=None => residual add requires this
    N, H, W = 2, 16, 16              # M = 512 rows, HW = 256 -> one lane-aligned tile/img

    x = jax.random.normal(kx, (N, inplanes, H, W), jnp.float32)
    params = init_params(kp, inplanes, planes)

    out = jax.block_until_ready(bottleneck_forward(x, params))
    ref = reference_forward(x, params)

    assert out.shape == ref.shape == (N, inplanes, H, W)
    # bf16 MXU operands vs the f32/HIGHEST reference: check relative RMS tightly and the
    # elementwise max loosely.
    rel_rms = float(jnp.sqrt(jnp.mean((out - ref) ** 2) / (jnp.mean(ref ** 2) + 1e-12)))
    max_abs = float(jnp.max(jnp.abs(out - ref)))
    assert rel_rms < 3e-2, f"relative RMS error too large: {rel_rms}"
    assert bool(jnp.allclose(out, ref, atol=1.2e-1, rtol=1e-1)), \
        f"max abs error too large: {max_abs}"
    print("KERNEL_OK")
</pallas_src>

<mosaic_0001>
module attributes {stable_mosaic.version = 11 : i64} {
  func.func @k1_conv1(%arg0: i32, %arg1: i32, %arg2: memref<1x128x256xf32, #tpu.memory_space<vmem>>, %arg3: memref<128x32xbf16, #tpu.memory_space<vmem>>, %arg4: memref<1x256x32xbf16, #tpu.memory_space<vmem>>, %arg5: memref<1x1x2x32xf32, #tpu.memory_space<vmem>>) attributes {dimension_semantics = [#tpu.dimension_semantics<parallel>, #tpu.dimension_semantics<parallel>], iteration_bounds = array<i64: 2, 1>, scalar_prefetch = 0 : i64, scratch_operands = 0 : i64, tpu.core_type = #tpu.core_type<tc>, window_params = [{transform_indices = @transform_0, window_bounds = array<i64: 1, 128, 256>}, {pipeline_mode = #tpu.pipeline_mode<synchronous>, transform_indices = @transform_1, window_bounds = array<i64: 128, 32>}, {transform_indices = @transform_2, window_bounds = array<i64: 1, 256, 32>}, {transform_indices = @transform_3, window_bounds = array<i64: 1, 1, 2, 32>}]} {
    %c0 = arith.constant 0 : index
    %c0_0 = arith.constant 0 : index
    %c0_1 = arith.constant 0 : index
    %0 = vector.load %arg2[%c0, %c0_0, %c0_1] : memref<1x128x256xf32, #tpu.memory_space<vmem>>, vector<1x128x256xf32>
    %1 = vector.shape_cast %0 : vector<1x128x256xf32> to vector<128x256xf32>
    %2 = arith.truncf %1 : vector<128x256xf32> to vector<128x256xbf16>
    %c0_2 = arith.constant 0 : index
    %c0_3 = arith.constant 0 : index
    %3 = vector.load %arg3[%c0_2, %c0_3] : memref<128x32xbf16, #tpu.memory_space<vmem>>, vector<128x32xbf16>
    %cst = arith.constant dense<0.000000e+00> : vector<256x32xf32>
    %4 = tpu.matmul %2, %3, %cst {dimension_numbers = #tpu.dot_dimension_numbers<[0], [0], [1], [1], [0, 1, 1, 1], [], []>} : vector<128x256xbf16>, vector<128x32xbf16>, vector<256x32xf32> -> vector<256x32xf32>
    %5 = arith.truncf %4 : vector<256x32xf32> to vector<256x32xbf16>
    %6 = vector.shape_cast %5 : vector<256x32xbf16> to vector<1x256x32xbf16>
    %c0_4 = arith.constant 0 : index
    %c0_5 = arith.constant 0 : index
    %c0_6 = arith.constant 0 : index
    %7 = vector.load %arg4[%c0_4, %c0_5, %c0_6] : memref<1x256x32xbf16, #tpu.memory_space<vmem>>, vector<1x256x32xbf16>
    tpu.vector_store %arg4[%c0_4, %c0_5, %c0_6], %6 {strides = array<i32>} : memref<1x256x32xbf16, #tpu.memory_space<vmem>>, vector<1x256x32xbf16>,
    %8 = arith.extf %5 : vector<256x32xbf16> to vector<256x32xf32>
    %cst_7 = arith.constant dense<0.000000e+00> : vector<32xf32>
    %9 = vector.multi_reduction <add>, %8, %cst_7 [0] : vector<256x32xf32> to vector<32xf32>
    %10 = vector.shape_cast %9 : vector<32xf32> to vector<1x32xf32>
    %11 = arith.mulf %8, %8 : vector<256x32xf32>
    %cst_8 = arith.constant dense<0.000000e+00> : vector<32xf32>
    %12 = vector.multi_reduction <add>, %11, %cst_8 [0] : vector<256x32xf32> to vector<32xf32>
    %13 = vector.shape_cast %12 : vector<32xf32> to vector<1x32xf32>
    %14 = tpu.concatenate %10, %13 in 0 : vector<1x32xf32>, vector<1x32xf32> -> vector<2x32xf32>
    %15 = vector.shape_cast %14 : vector<2x32xf32> to vector<1x1x2x32xf32>
    %c0_9 = arith.constant 0 : index
    %c0_10 = arith.constant 0 : index
    %c0_11 = arith.constant 0 : index
    %c0_12 = arith.constant 0 : index
    %16 = vector.load %arg5[%c0_9, %c0_10, %c0_11, %c0_12] : memref<1x1x2x32xf32, #tpu.memory_space<vmem>>, vector<1x1x2x32xf32>
    tpu.vector_store %arg5[%c0_9, %c0_10, %c0_11, %c0_12], %15 {strides = array<i32>} : memref<1x1x2x32xf32, #tpu.memory_space<vmem>>, vector<1x1x2x32xf32>,
    return
  }
  func.func @transform_0(%arg0: i32, %arg1: i32) -> (i32, i32, i32) {
    %c0_i32 = arith.constant 0 : i32
    %c0_i32_0 = arith.constant 0 : i32
    return %arg0, %c0_i32, %arg1 : i32, i32, i32
  }
  func.func @transform_1(%arg0: i32, %arg1: i32) -> (i32, i32) {
    %c0_i32 = arith.constant 0 : i32
    %c0_i32_0 = arith.constant 0 : i32
    %c0_i32_1 = arith.constant 0 : i32
    return %c0_i32, %c0_i32_0 : i32, i32
  }
  func.func @transform_2(%arg0: i32, %arg1: i32) -> (i32, i32, i32) {
    %c0_i32 = arith.constant 0 : i32
    %c0_i32_0 = arith.constant 0 : i32
    return %arg0, %arg1, %c0_i32 : i32, i32, i32
  }
  func.func @transform_3(%arg0: i32, %arg1: i32) -> (i32, i32, i32, i32) {
    %c0_i32 = arith.constant 0 : i32
    %c0_i32_0 = arith.constant 0 : i32
    %c0_i32_1 = arith.constant 0 : i32
    return %arg0, %arg1, %c0_i32, %c0_i32_0 : i32, i32, i32, i32
  }
}

module attributes {stable_mosaic.version = 11 : i64} {
  func.func @k3_stats3(%arg0: i32, %arg1: memref<512x32xbf16, #tpu.memory_space<vmem>>, %arg2: memref<1x32xf32, #tpu.memory_space<vmem>>, %arg3: memref<1x32xf32, #tpu.memory_space<vmem>>, %arg4: memref<32x128xbf16, #tpu.memory_space<vmem>>, %arg5: memref<1x2x128xf32, #tpu.memory_space<vmem>>) attributes {dimension_semantics = [#tpu.dimension_semantics<parallel>], iteration_bounds = array<i64: 1>, scalar_prefetch = 0 : i64, scratch_operands = 0 : i64, tpu.core_type = #tpu.core_type<tc>, window_params = [{transform_indices = @transform_0, window_bounds = array<i64: 512, 32>}, {pipeline_mode = #tpu.pipeline_mode<synchronous>, transform_indices = @transform_1, window_bounds = array<i64: 1, 32>}, {pipeline_mode = #tpu.pipeline_mode<synchronous>, transform_indices = @transform_2, window_bounds = array<i64: 1, 32>}, {pipeline_mode = #tpu.pipeline_mode<synchronous>, transform_indices = @transform_3, window_bounds = array<i64: 32, 128>}, {transform_indices = @transform_4, window_bounds = array<i64: 1, 2, 128>}]} {
    %c0 = arith.constant 0 : index
    %c0_0 = arith.constant 0 : index
    %0 = vector.load %arg1[%c0, %c0_0] : memref<512x32xbf16, #tpu.memory_space<vmem>>, vector<512x32xbf16>
    %1 = arith.extf %0 : vector<512x32xbf16> to vector<512x32xf32>
    %c0_1 = arith.constant 0 : index
    %c0_2 = arith.constant 0 : index
    %2 = vector.load %arg2[%c0_1, %c0_2] : memref<1x32xf32, #tpu.memory_space<vmem>>, vector<1x32xf32>
    %3 = vector.broadcast %2 : vector<1x32xf32> to vector<512x32xf32>
    %4 = arith.mulf %1, %3 : vector<512x32xf32>
    %c0_3 = arith.constant 0 : index
    %c0_4 = arith.constant 0 : index
    %5 = vector.load %arg3[%c0_3, %c0_4] : memref<1x32xf32, #tpu.memory_space<vmem>>, vector<1x32xf32>
    %6 = vector.broadcast %5 : vector<1x32xf32> to vector<512x32xf32>
    %7 = arith.addf %4, %6 : vector<512x32xf32>
    %cst = arith.constant 0.000000e+00 : f32
    %8 = vector.broadcast %cst : f32 to vector<512x32xf32>
    %9 = arith.maximumf %7, %8 : vector<512x32xf32>
    %10 = arith.truncf %9 : vector<512x32xf32> to vector<512x32xbf16>
    %c0_5 = arith.constant 0 : index
    %c0_6 = arith.constant 0 : index
    %11 = vector.load %arg4[%c0_5, %c0_6] : memref<32x128xbf16, #tpu.memory_space<vmem>>, vector<32x128xbf16>
    %cst_7 = arith.constant dense<0.000000e+00> : vector<512x128xf32>
    %12 = tpu.matmul %10, %11, %cst_7 {dimension_numbers = #tpu.dot_dimension_numbers<[1], [0], [0], [1], [0, 0, 1, 1], [], []>} : vector<512x32xbf16>, vector<32x128xbf16>, vector<512x128xf32> -> vector<512x128xf32>
    %cst_8 = arith.constant dense<0.000000e+00> : vector<128xf32>
    %13 = vector.multi_reduction <add>, %12, %cst_8 [0] : vector<512x128xf32> to vector<128xf32>
    %14 = vector.shape_cast %13 : vector<128xf32> to vector<1x128xf32>
    %15 = arith.mulf %12, %12 : vector<512x128xf32>
    %cst_9 = arith.constant dense<0.000000e+00> : vector<128xf32>
    %16 = vector.multi_reduction <add>, %15, %cst_9 [0] : vector<512x128xf32> to vector<128xf32>
    %17 = vector.shape_cast %16 : vector<128xf32> to vector<1x128xf32>
    %18 = tpu.concatenate %14, %17 in 0 : vector<1x128xf32>, vector<1x128xf32> -> vector<2x128xf32>
    %19 = vector.shape_cast %18 : vector<2x128xf32> to vector<1x2x128xf32>
    %c0_10 = arith.constant 0 : index
    %c0_11 = arith.constant 0 : index
    %c0_12 = arith.constant 0 : index
    %20 = vector.load %arg5[%c0_10, %c0_11, %c0_12] : memref<1x2x128xf32, #tpu.memory_space<vmem>>, vector<1x2x128xf32>
    tpu.vector_store %arg5[%c0_10, %c0_11, %c0_12], %19 {strides = array<i32>} : memref<1x2x128xf32, #tpu.memory_space<vmem>>, vector<1x2x128xf32>,
    return
  }
  func.func @transform_0(%arg0: i32) -> (i32, i32) {
    %c0_i32 = arith.constant 0 : i32
    %c0_i32_0 = arith.constant 0 : i32
    return %arg0, %c0_i32 : i32, i32
  }
  func.func @transform_1(%arg0: i32) -> (i32, i32) {
    %c0_i32 = arith.constant 0 : i32
    %c0_i32_0 = arith.constant 0 : i32
    %c0_i32_1 = arith.constant 0 : i32
    return %c0_i32, %c0_i32_0 : i32, i32
  }
  func.func @transform_2(%arg0: i32) -> (i32, i32) {
    %c0_i32 = arith.constant 0 : i32
    %c0_i32_0 = arith.constant 0 : i32
    %c0_i32_1 = arith.constant 0 : i32
    return %c0_i32, %c0_i32_0 : i32, i32
  }
  func.func @transform_3(%arg0: i32) -> (i32, i32) {
    %c0_i32 = arith.constant 0 : i32
    %c0_i32_0 = arith.constant 0 : i32
    %c0_i32_1 = arith.constant 0 : i32
    return %c0_i32, %c0_i32_0 : i32, i32
  }
  func.func @transform_4(%arg0: i32) -> (i32, i32, i32) {
    %c0_i32 = arith.constant 0 : i32
    %c0_i32_0 = arith.constant 0 : i32
    %c0_i32_1 = arith.constant 0 : i32
    return %arg0, %c0_i32, %c0_i32_0 : i32, i32, i32
  }
}

module attributes {stable_mosaic.version = 11 : i64} {
  func.func @k2_conv3x3(%arg0: i32, %arg1: memref<1x16x16x32xbf16, #tpu.memory_space<vmem>>, %arg2: memref<1x32xf32, #tpu.memory_space<vmem>>, %arg3: memref<1x32xf32, #tpu.memory_space<vmem>>, %arg4: memref<3x96x32xbf16, #tpu.memory_space<vmem>>, %arg5: memref<1x256x32xbf16, #tpu.memory_space<vmem>>, %arg6: memref<1x2x32xf32, #tpu.memory_space<vmem>>) attributes {dimension_semantics = [#tpu.dimension_semantics<parallel>], iteration_bounds = array<i64: 2>, scalar_prefetch = 0 : i64, scratch_operands = 0 : i64, tpu.core_type = #tpu.core_type<tc>, window_params = [{transform_indices = @transform_0, window_bounds = array<i64: 1, 16, 16, 32>}, {pipeline_mode = #tpu.pipeline_mode<synchronous>, transform_indices = @transform_1, window_bounds = array<i64: 1, 32>}, {pipeline_mode = #tpu.pipeline_mode<synchronous>, transform_indices = @transform_2, window_bounds = array<i64: 1, 32>}, {pipeline_mode = #tpu.pipeline_mode<synchronous>, transform_indices = @transform_3, window_bounds = array<i64: 3, 96, 32>}, {transform_indices = @transform_4, window_bounds = array<i64: 1, 256, 32>}, {transform_indices = @transform_5, window_bounds = array<i64: 1, 2, 32>}]} {
    %c0 = arith.constant 0 : index
    %c0_0 = arith.constant 0 : index
    %c0_1 = arith.constant 0 : index
    %c0_2 = arith.constant 0 : index
    %0 = vector.load %arg1[%c0, %c0_0, %c0_1, %c0_2] : memref<1x16x16x32xbf16, #tpu.memory_space<vmem>>, vector<1x16x16x32xbf16>
    %1 = vector.shape_cast %0 : vector<1x16x16x32xbf16> to vector<16x16x32xbf16>
    %2 = arith.extf %1 : vector<16x16x32xbf16> to vector<16x16x32xf32>
    %c0_3 = arith.constant 0 : index
    %c0_4 = arith.constant 0 : index
    %3 = vector.load %arg2[%c0_3, %c0_4] : memref<1x32xf32, #tpu.memory_space<vmem>>, vector<1x32xf32>
    %4 = vector.shape_cast %3 : vector<1x32xf32> to vector<1x1x32xf32>
    %5 = vector.broadcast %4 : vector<1x1x32xf32> to vector<16x16x32xf32>
    %6 = arith.mulf %2, %5 : vector<16x16x32xf32>
    %c0_5 = arith.constant 0 : index
    %c0_6 = arith.constant 0 : index
    %7 = vector.load %arg3[%c0_5, %c0_6] : memref<1x32xf32, #tpu.memory_space<vmem>>, vector<1x32xf32>
    %8 = vector.shape_cast %7 : vector<1x32xf32> to vector<1x1x32xf32>
    %9 = vector.broadcast %8 : vector<1x1x32xf32> to vector<16x16x32xf32>
    %10 = arith.addf %6, %9 : vector<16x16x32xf32>
    %cst = arith.constant 0.000000e+00 : f32
    %11 = vector.broadcast %cst : f32 to vector<16x16x32xf32>
    %12 = arith.maximumf %10, %11 : vector<16x16x32xf32>
    %13 = arith.truncf %12 : vector<16x16x32xf32> to vector<16x16x32xbf16>
    %cst_7 = arith.constant 0.000000e+00 : bf16
    %14 = vector.broadcast %cst_7 : bf16 to vector<16x1x32xbf16>
    %cst_8 = arith.constant 0.000000e+00 : bf16
    %15 = vector.broadcast %cst_8 : bf16 to vector<1x16x96xbf16>
    %16 = vector.extract_strided_slice %13 {offsets = [0, 0, 0], sizes = [16, 15, 32], strides = [1, 1, 1]} : vector<16x16x32xbf16> to vector<16x15x32xbf16>
    %17 = tpu.concatenate %14, %16 in 1 : vector<16x1x32xbf16>, vector<16x15x32xbf16> -> vector<16x16x32xbf16>
    %18 = vector.extract_strided_slice %13 {offsets = [0, 1, 0], sizes = [16, 15, 32], strides = [1, 1, 1]} : vector<16x16x32xbf16> to vector<16x15x32xbf16>
    %19 = tpu.concatenate %18, %14 in 1 : vector<16x15x32xbf16>, vector<16x1x32xbf16> -> vector<16x16x32xbf16>
    %20 = tpu.concatenate %17, %13, %19 in 2 : vector<16x16x32xbf16>, vector<16x16x32xbf16>, vector<16x16x32xbf16> -> vector<16x16x96xbf16>
    %21 = tpu.concatenate %15, %20, %15 in 0 : vector<1x16x96xbf16>, vector<16x16x96xbf16>, vector<1x16x96xbf16> -> vector<18x16x96xbf16>
    %cst_9 = arith.constant 0.000000e+00 : f32
    %22 = vector.broadcast %cst_9 : f32 to vector<256x32xf32>
    %23 = vector.extract_strided_slice %21 {offsets = [0, 0, 0], sizes = [16, 16, 96], strides = [1, 1, 1]} : vector<18x16x96xbf16> to vector<16x16x96xbf16>
    %24 = vector.shape_cast %23 : vector<16x16x96xbf16> to vector<256x96xbf16>
    %c0_10 = arith.constant 0 : index
    %c0_11 = arith.constant 0 : index
    %c0_12 = arith.constant 0 : index
    %25 = vector.load %arg4[%c0_10, %c0_11, %c0_12] : memref<3x96x32xbf16, #tpu.memory_space<vmem>>, vector<1x96x32xbf16>
    %26 = vector.shape_cast %25 : vector<1x96x32xbf16> to vector<96x32xbf16>
    %cst_13 = arith.constant dense<0.000000e+00> : vector<256x32xf32>
    %27 = tpu.matmul %24, %26, %cst_13 {dimension_numbers = #tpu.dot_dimension_numbers<[1], [0], [0], [1], [0, 0, 1, 1], [], []>} : vector<256x96xbf16>, vector<96x32xbf16>, vector<256x32xf32> -> vector<256x32xf32>
    %28 = arith.addf %22, %27 : vector<256x32xf32>
    %29 = vector.extract_strided_slice %21 {offsets = [1, 0, 0], sizes = [16, 16, 96], strides = [1, 1, 1]} : vector<18x16x96xbf16> to vector<16x16x96xbf16>
    %30 = vector.shape_cast %29 : vector<16x16x96xbf16> to vector<256x96xbf16>
    %c1 = arith.constant 1 : index
    %c0_14 = arith.constant 0 : index
    %c0_15 = arith.constant 0 : index
    %31 = vector.load %arg4[%c1, %c0_14, %c0_15] : memref<3x96x32xbf16, #tpu.memory_space<vmem>>, vector<1x96x32xbf16>
    %32 = vector.shape_cast %31 : vector<1x96x32xbf16> to vector<96x32xbf16>
    %cst_16 = arith.constant dense<0.000000e+00> : vector<256x32xf32>
    %33 = tpu.matmul %30, %32, %cst_16 {dimension_numbers = #tpu.dot_dimension_numbers<[1], [0], [0], [1], [0, 0, 1, 1], [], []>} : vector<256x96xbf16>, vector<96x32xbf16>, vector<256x32xf32> -> vector<256x32xf32>
    %34 = arith.addf %28, %33 : vector<256x32xf32>
    %35 = vector.extract_strided_slice %21 {offsets = [2, 0, 0], sizes = [16, 16, 96], strides = [1, 1, 1]} : vector<18x16x96xbf16> to vector<16x16x96xbf16>
    %36 = vector.shape_cast %35 : vector<16x16x96xbf16> to vector<256x96xbf16>
    %c2 = arith.constant 2 : index
    %c0_17 = arith.constant 0 : index
    %c0_18 = arith.constant 0 : index
    %37 = vector.load %arg4[%c2, %c0_17, %c0_18] : memref<3x96x32xbf16, #tpu.memory_space<vmem>>, vector<1x96x32xbf16>
    %38 = vector.shape_cast %37 : vector<1x96x32xbf16> to vector<96x32xbf16>
    %cst_19 = arith.constant dense<0.000000e+00> : vector<256x32xf32>
    %39 = tpu.matmul %36, %38, %cst_19 {dimension_numbers = #tpu.dot_dimension_numbers<[1], [0], [0], [1], [0, 0, 1, 1], [], []>} : vector<256x96xbf16>, vector<96x32xbf16>, vector<256x32xf32> -> vector<256x32xf32>
    %40 = arith.addf %34, %39 : vector<256x32xf32>
    %41 = arith.truncf %40 : vector<256x32xf32> to vector<256x32xbf16>
    %42 = vector.shape_cast %41 : vector<256x32xbf16> to vector<1x256x32xbf16>
    %c0_20 = arith.constant 0 : index
    %c0_21 = arith.constant 0 : index
    %c0_22 = arith.constant 0 : index
    %43 = vector.load %arg5[%c0_20, %c0_21, %c0_22] : memref<1x256x32xbf16, #tpu.memory_space<vmem>>, vector<1x256x32xbf16>
    tpu.vector_store %arg5[%c0_20, %c0_21, %c0_22], %42 {strides = array<i32>} : memref<1x256x32xbf16, #tpu.memory_space<vmem>>, vector<1x256x32xbf16>,
    %44 = arith.extf %41 : vector<256x32xbf16> to vector<256x32xf32>
    %cst_23 = arith.constant dense<0.000000e+00> : vector<32xf32>
    %45 = vector.multi_reduction <add>, %44, %cst_23 [0] : vector<256x32xf32> to vector<32xf32>
    %46 = vector.shape_cast %45 : vector<32xf32> to vector<1x32xf32>
    %47 = arith.mulf %44, %44 : vector<256x32xf32>
    %cst_24 = arith.constant dense<0.000000e+00> : vector<32xf32>
    %48 = vector.multi_reduction <add>, %47, %cst_24 [0] : vector<256x32xf32> to vector<32xf32>
    %49 = vector.shape_cast %48 : vector<32xf32> to vector<1x32xf32>
    %50 = tpu.concatenate %46, %49 in 0 : vector<1x32xf32>, vector<1x32xf32> -> vector<2x32xf32>
    %51 = vector.shape_cast %50 : vector<2x32xf32> to vector<1x2x32xf32>
    %c0_25 = arith.constant 0 : index
    %c0_26 = arith.constant 0 : index
    %c0_27 = arith.constant 0 : index
    %52 = vector.load %arg6[%c0_25, %c0_26, %c0_27] : memref<1x2x32xf32, #tpu.memory_space<vmem>>, vector<1x2x32xf32>
    tpu.vector_store %arg6[%c0_25, %c0_26, %c0_27], %51 {strides = array<i32>} : memref<1x2x32xf32, #tpu.memory_space<vmem>>, vector<1x2x32xf32>,
    return
  }
  func.func @transform_0(%arg0: i32) -> (i32, i32, i32, i32) {
    %c0_i32 = arith.constant 0 : i32
    %c0_i32_0 = arith.constant 0 : i32
    %c0_i32_1 = arith.constant 0 : i32
    %c0_i32_2 = arith.constant 0 : i32
    return %arg0, %c0_i32, %c0_i32_0, %c0_i32_1 : i32, i32, i32, i32
  }
  func.func @transform_1(%arg0: i32) -> (i32, i32) {
    %c0_i32 = arith.constant 0 : i32
    %c0_i32_0 = arith.constant 0 : i32
    %c0_i32_1 = arith.constant 0 : i32
    return %c0_i32, %c0_i32_0 : i32, i32
  }
  func.func @transform_2(%arg0: i32) -> (i32, i32) {
    %c0_i32 = arith.constant 0 : i32
    %c0_i32_0 = arith.constant 0 : i32
    %c0_i32_1 = arith.constant 0 : i32
    return %c0_i32, %c0_i32_0 : i32, i32
  }
  func.func @transform_3(%arg0: i32) -> (i32, i32, i32) {
    %c0_i32 = arith.constant 0 : i32
    %c0_i32_0 = arith.constant 0 : i32
    %c0_i32_1 = arith.constant 0 : i32
    %c0_i32_2 = arith.constant 0 : i32
    return %c0_i32, %c0_i32_0, %c0_i32_1 : i32, i32, i32
  }
  func.func @transform_4(%arg0: i32) -> (i32, i32, i32) {
    %c0_i32 = arith.constant 0 : i32
    %c0_i32_0 = arith.constant 0 : i32
    %c0_i32_1 = arith.constant 0 : i32
    return %arg0, %c0_i32, %c0_i32_0 : i32, i32, i32
  }
  func.func @transform_5(%arg0: i32) -> (i32, i32, i32) {
    %c0_i32 = arith.constant 0 : i32
    %c0_i32_0 = arith.constant 0 : i32
    %c0_i32_1 = arith.constant 0 : i32
    return %arg0, %c0_i32, %c0_i32_0 : i32, i32, i32
  }
}

module attributes {stable_mosaic.version = 11 : i64} {
  func.func @k4_final(%arg0: i32, %arg1: i32, %arg2: memref<1x256x32xbf16, #tpu.memory_space<vmem>>, %arg3: memref<1x32xf32, #tpu.memory_space<vmem>>, %arg4: memref<1x32xf32, #tpu.memory_space<vmem>>, %arg5: memref<32x128xbf16, #tpu.memory_space<vmem>>, %arg6: memref<128x1xf32, #tpu.memory_space<vmem>>, %arg7: memref<128x1xf32, #tpu.memory_space<vmem>>, %arg8: memref<1x128x256xf32, #tpu.memory_space<vmem>>, %arg9: memref<1x128x256xf32, #tpu.memory_space<vmem>>) attributes {dimension_semantics = [#tpu.dimension_semantics<parallel>, #tpu.dimension_semantics<parallel>], iteration_bounds = array<i64: 2, 1>, scalar_prefetch = 0 : i64, scratch_operands = 0 : i64, tpu.core_type = #tpu.core_type<tc>, window_params = [{transform_indices = @transform_0, window_bounds = array<i64: 1, 256, 32>}, {pipeline_mode = #tpu.pipeline_mode<synchronous>, transform_indices = @transform_1, window_bounds = array<i64: 1, 32>}, {pipeline_mode = #tpu.pipeline_mode<synchronous>, transform_indices = @transform_2, window_bounds = array<i64: 1, 32>}, {pipeline_mode = #tpu.pipeline_mode<synchronous>, transform_indices = @transform_3, window_bounds = array<i64: 32, 128>}, {pipeline_mode = #tpu.pipeline_mode<synchronous>, transform_indices = @transform_4, window_bounds = array<i64: 128, 1>}, {pipeline_mode = #tpu.pipeline_mode<synchronous>, transform_indices = @transform_5, window_bounds = array<i64: 128, 1>}, {transform_indices = @transform_6, window_bounds = array<i64: 1, 128, 256>}, {transform_indices = @transform_7, window_bounds = array<i64: 1, 128, 256>}]} {
    %c0 = arith.constant 0 : index
    %c0_0 = arith.constant 0 : index
    %c0_1 = arith.constant 0 : index
    %0 = vector.load %arg2[%c0, %c0_0, %c0_1] : memref<1x256x32xbf16, #tpu.memory_space<vmem>>, vector<1x256x32xbf16>
    %1 = vector.shape_cast %0 : vector<1x256x32xbf16> to vector<256x32xbf16>
    %2 = arith.extf %1 : vector<256x32xbf16> to vector<256x32xf32>
    %c0_2 = arith.constant 0 : index
    %c0_3 = arith.constant 0 : index
    %3 = vector.load %arg3[%c0_2, %c0_3] : memref<1x32xf32, #tpu.memory_space<vmem>>, vector<1x32xf32>
    %4 = vector.broadcast %3 : vector<1x32xf32> to vector<256x32xf32>
    %5 = arith.mulf %2, %4 : vector<256x32xf32>
    %c0_4 = arith.constant 0 : index
    %c0_5 = arith.constant 0 : index
    %6 = vector.load %arg4[%c0_4, %c0_5] : memref<1x32xf32, #tpu.memory_space<vmem>>, vector<1x32xf32>
    %7 = vector.broadcast %6 : vector<1x32xf32> to vector<256x32xf32>
    %8 = arith.addf %5, %7 : vector<256x32xf32>
    %cst = arith.constant 0.000000e+00 : f32
    %9 = vector.broadcast %cst : f32 to vector<256x32xf32>
    %10 = arith.maximumf %8, %9 : vector<256x32xf32>
    %c0_6 = arith.constant 0 : index
    %c0_7 = arith.constant 0 : index
    %11 = vector.load %arg5[%c0_6, %c0_7] : memref<32x128xbf16, #tpu.memory_space<vmem>>, vector<32x128xbf16>
    %12 = arith.truncf %10 : vector<256x32xf32> to vector<256x32xbf16>
    %cst_8 = arith.constant dense<0.000000e+00> : vector<128x256xf32>
    %13 = tpu.matmul %11, %12, %cst_8 {dimension_numbers = #tpu.dot_dimension_numbers<[0], [1], [1], [0], [0, 1, 1, 0], [], []>} : vector<32x128xbf16>, vector<256x32xbf16>, vector<128x256xf32> -> vector<128x256xf32>
    %c0_9 = arith.constant 0 : index
    %c0_10 = arith.constant 0 : index
    %14 = vector.load %arg6[%c0_9, %c0_10] : memref<128x1xf32, #tpu.memory_space<vmem>>, vector<128x1xf32>
    %15 = vector.broadcast %14 : vector<128x1xf32> to vector<128x256xf32>
    %16 = arith.mulf %13, %15 : vector<128x256xf32>
    %c0_11 = arith.constant 0 : index
    %c0_12 = arith.constant 0 : index
    %17 = vector.load %arg7[%c0_11, %c0_12] : memref<128x1xf32, #tpu.memory_space<vmem>>, vector<128x1xf32>
    %18 = vector.broadcast %17 : vector<128x1xf32> to vector<128x256xf32>
    %19 = arith.addf %16, %18 : vector<128x256xf32>
    %c0_13 = arith.constant 0 : index
    %c0_14 = arith.constant 0 : index
    %c0_15 = arith.constant 0 : index
    %20 = vector.load %arg8[%c0_13, %c0_14, %c0_15] : memref<1x128x256xf32, #tpu.memory_space<vmem>>, vector<1x128x256xf32>
    %21 = vector.shape_cast %20 : vector<1x128x256xf32> to vector<128x256xf32>
    %22 = arith.addf %19, %21 : vector<128x256xf32>
    %cst_16 = arith.constant 0.000000e+00 : f32
    %23 = vector.broadcast %cst_16 : f32 to vector<128x256xf32>
    %24 = arith.maximumf %22, %23 : vector<128x256xf32>
    %25 = vector.shape_cast %24 : vector<128x256xf32> to vector<1x128x256xf32>
    %c0_17 = arith.constant 0 : index
    %c0_18 = arith.constant 0 : index
    %c0_19 = arith.constant 0 : index
    %26 = vector.load %arg9[%c0_17, %c0_18, %c0_19] : memref<1x128x256xf32, #tpu.memory_space<vmem>>, vector<1x128x256xf32>
    tpu.vector_store %arg9[%c0_17, %c0_18, %c0_19], %25 {strides = array<i32>} : memref<1x128x256xf32, #tpu.memory_space<vmem>>, vector<1x128x256xf32>,
    return
  }
  func.func @transform_0(%arg0: i32, %arg1: i32) -> (i32, i32, i32) {
    %c0_i32 = arith.constant 0 : i32
    %c0_i32_0 = arith.constant 0 : i32
    return %arg0, %arg1, %c0_i32 : i32, i32, i32
  }
  func.func @transform_1(%arg0: i32, %arg1: i32) -> (i32, i32) {
    %c0_i32 = arith.constant 0 : i32
    %c0_i32_0 = arith.constant 0 : i32
    %c0_i32_1 = arith.constant 0 : i32
    return %c0_i32, %c0_i32_0 : i32, i32
  }
  func.func @transform_2(%arg0: i32, %arg1: i32) -> (i32, i32) {
    %c0_i32 = arith.constant 0 : i32
    %c0_i32_0 = arith.constant 0 : i32
    %c0_i32_1 = arith.constant 0 : i32
    return %c0_i32, %c0_i32_0 : i32, i32
  }
  func.func @transform_3(%arg0: i32, %arg1: i32) -> (i32, i32) {
    %c0_i32 = arith.constant 0 : i32
    %c0_i32_0 = arith.constant 0 : i32
    %c0_i32_1 = arith.constant 0 : i32
    return %c0_i32, %c0_i32_0 : i32, i32
  }
  func.func @transform_4(%arg0: i32, %arg1: i32) -> (i32, i32) {
    %c0_i32 = arith.constant 0 : i32
    %c0_i32_0 = arith.constant 0 : i32
    %c0_i32_1 = arith.constant 0 : i32
    return %c0_i32, %c0_i32_0 : i32, i32
  }
  func.func @transform_5(%arg0: i32, %arg1: i32) -> (i32, i32) {
    %c0_i32 = arith.constant 0 : i32
    %c0_i32_0 = arith.constant 0 : i32
    %c0_i32_1 = arith.constant 0 : i32
    return %c0_i32, %c0_i32_0 : i32, i32
  }
  func.func @transform_6(%arg0: i32, %arg1: i32) -> (i32, i32, i32) {
    %c0_i32 = arith.constant 0 : i32
    %c0_i32_0 = arith.constant 0 : i32
    return %arg0, %c0_i32, %arg1 : i32, i32, i32
  }
  func.func @transform_7(%arg0: i32, %arg1: i32) -> (i32, i32, i32) {
    %c0_i32 = arith.constant 0 : i32
    %c0_i32_0 = arith.constant 0 : i32
    return %arg0, %c0_i32, %arg1 : i32, i32, i32
  }
}

</mosaic_0001>

<llo_original>
// kernel: bottleneck_forward_impl.6
$region0: #{bottleneck_forward_impl.6}
  #allocation0 [shape = 'u32[]', space=smem, size = 0x4, offset = 0x4, fixed_abs, tag = 'smem constant byte address 0x4 - core index']
  #allocation1 [shape = 'u32[144,128]{1,0:T(1,128)}', space=vmem, size = 0x12000, scoped, tag = 'internal scratch']
  %s0 = inlined_call_operand.vmem [shape: bf16[512,32], index: 0, kind: input, shape index: {}]
  %s1 = inlined_call_operand.vmem [shape: f32[1,32], index: 1, kind: input, shape index: {}]
  %s2 = inlined_call_operand.vmem [shape: f32[1,32], index: 2, kind: input, shape index: {}]
  %s3 = inlined_call_operand.vmem [shape: bf16[32,128], index: 3, kind: input, shape index: {}]
  %s4 = inlined_call_operand.vmem [shape: f32[1,2,128], index: 4, kind: output, shape index: {}]
  %s5 = sld [smem:[#allocation0]]
  $region26: #{bottleneck_forward_impl.6} parent=0
    _
  %s7 = ssub.s32 1, %s5
  %s8 = scalar_select 0, %s7, %s5
  // Predicated region
  $region2: #{bottleneck_forward_impl.6} parent=0 // pred_check
    _
  $region3: #{bottleneck_forward_impl.6} parent=0 // pred_check_branch
    %10 = sbr.rel (0) target = $region5
  $region4: #{bottleneck_forward_impl.6} parent=0 // pred_region
    _
  $region5: #{bottleneck_forward_impl.6} parent=0 // pred_fallthru
    _
  // Predicated region
  $region6: #{bottleneck_forward_impl.6} parent=0 // pred_check
    _
  $region7: #{bottleneck_forward_impl.6} parent=0 // pred_check_branch
    %12 = sbr.rel (0) target = $region9
  $region8: #{bottleneck_forward_impl.6} parent=0 // pred_region
    _
  $region9: #{bottleneck_forward_impl.6} parent=0 // pred_fallthru
    _
  // Predicated region
  $region10: #{bottleneck_forward_impl.6} parent=0 // pred_check
    _
  $region11: #{bottleneck_forward_impl.6} parent=0 // pred_check_branch
    %14 = sbr.rel (0) target = $region13
  $region12: #{bottleneck_forward_impl.6} parent=0 // pred_region
    _
  $region13: #{bottleneck_forward_impl.6} parent=0 // pred_fallthru
    _
  // Predicated region
  $region14: #{bottleneck_forward_impl.6} parent=0 // pred_check
    _
  $region15: #{bottleneck_forward_impl.6} parent=0 // pred_check_branch
    %16 = sbr.rel (0) target = $region17
  $region16: #{bottleneck_forward_impl.6} parent=0 // pred_region
    _
  $region17: #{bottleneck_forward_impl.6} parent=0 // pred_fallthru
    _
  %v18 = vld [vmem:[%s0] sm:$0xf]
  %v19 = vld [vmem:[%s0 + $0x4] sm:$0xf]
  %v20 = vld [vmem:[%s0 + $0x8] sm:$0xf]
  %v21 = vld [vmem:[%s0 + $0xc] sm:$0xf]
  %v22 = vld [vmem:[%s0 + $0x10] sm:$0xf]
  %v23 = vld [vmem:[%s0 + $0x14] sm:$0xf]
  %v24 = vld [vmem:[%s0 + $0x18] sm:$0xf]
  %v25 = vld [vmem:[%s0 + $0x1c] sm:$0xf]
  %v26 = vld [vmem:[%s0 + $0x20] sm:$0xf]
  %v27 = vld [vmem:[%s0 + $0x24] sm:$0xf]
  %v28 = vld [vmem:[%s0 + $0x28] sm:$0xf]
  %v29 = vld [vmem:[%s0 + $0x2c] sm:$0xf]
  %v30 = vld [vmem:[%s0 + $0x30] sm:$0xf]
  %v31 = vld [vmem:[%s0 + $0x34] sm:$0xf]
  %v32 = vld [vmem:[%s0 + $0x38] sm:$0xf]
  %v33 = vld [vmem:[%s0 + $0x3c] sm:$0xf]
  %v34 = vld [vmem:[%s0 + $0x40] sm:$0xf]
  %v35 = vld [vmem:[%s0 + $0x44] sm:$0xf]
  %v36 = vld [vmem:[%s0 + $0x48] sm:$0xf]
  %v37 = vld [vmem:[%s0 + $0x4c] sm:$0xf]
  %v38 = vld [vmem:[%s0 + $0x50] sm:$0xf]
  %v39 = vld [vmem:[%s0 + $0x54] sm:$0xf]
  %v40 = vld [vmem:[%s0 + $0x58] sm:$0xf]
  %v41 = vld [vmem:[%s0 + $0x5c] sm:$0xf]
  %v42 = vld [vmem:[%s0 + $0x60] sm:$0xf]
  %v43 = vld [vmem:[%s0 + $0x64] sm:$0xf]
  %v44 = vld [vmem:[%s0 + $0x68] sm:$0xf]
  %v45 = vld [vmem:[%s0 + $0x6c] sm:$0xf]
  %v46 = vld [vmem:[%s0 + $0x70] sm:$0xf]
  %v47 = vld [vmem:[%s0 + $0x74] sm:$0xf]
  %v48 = vld [vmem:[%s0 + $0x78] sm:$0xf]
  %v49 = vld [vmem:[%s0 + $0x7c] sm:$0xf]
  %v50 = vld [vmem:[%s0 + $0x80] sm:$0xf]
  %v51 = vld [vmem:[%s0 + $0x84] sm:$0xf]
  %v52 = vld [vmem:[%s0 + $0x88] sm:$0xf]
  %v53 = vld [vmem:[%s0 + $0x8c] sm:$0xf]
  %v54 = vld [vmem:[%s0 + $0x90] sm:$0xf]
  %v55 = vld [vmem:[%s0 + $0x94] sm:$0xf]
  %v56 = vld [vmem:[%s0 + $0x98] sm:$0xf]
  %v57 = vld [vmem:[%s0 + $0x9c] sm:$0xf]
  %v58 = vld [vmem:[%s0 + $0xa0] sm:$0xf]
  %v59 = vld [vmem:[%s0 + $0xa4] sm:$0xf]
  %v60 = vld [vmem:[%s0 + $0xa8] sm:$0xf]
  %v61 = vld [vmem:[%s0 + $0xac] sm:$0xf]
  %v62 = vld [vmem:[%s0 + $0xb0] sm:$0xf]
  %v63 = vld [vmem:[%s0 + $0xb4] sm:$0xf]
  %v64 = vld [vmem:[%s0 + $0xb8] sm:$0xf]
  %v65 = vld [vmem:[%s0 + $0xbc] sm:$0xf]
  %v66 = vld [vmem:[%s0 + $0xc0] sm:$0xf]
  %v67 = vld [vmem:[%s0 + $0xc4] sm:$0xf]
  %v68 = vld [vmem:[%s0 + $0xc8] sm:$0xf]
  %v69 = vld [vmem:[%s0 + $0xcc] sm:$0xf]
  %v70 = vld [vmem:[%s0 + $0xd0] sm:$0xf]
  %v71 = vld [vmem:[%s0 + $0xd4] sm:$0xf]
  %v72 = vld [vmem:[%s0 + $0xd8] sm:$0xf]
  %v73 = vld [vmem:[%s0 + $0xdc] sm:$0xf]
  %v74 = vld [vmem:[%s0 + $0xe0] sm:$0xf]
  %v75 = vld [vmem:[%s0 + $0xe4] sm:$0xf]
  %v76 = vld [vmem:[%s0 + $0xe8] sm:$0xf]
  %v77 = vld [vmem:[%s0 + $0xec] sm:$0xf]
  %v78 = vld [vmem:[%s0 + $0xf0] sm:$0xf]
  %v79 = vld [vmem:[%s0 + $0xf4] sm:$0xf]
  %v80 = vld [vmem:[%s0 + $0xf8] sm:$0xf]
  %v81 = vld [vmem:[%s0 + $0xfc] sm:$0xf]
  %v82 = vunpack.c.l.bf16 %v18
  %v83 = vunpack.c.l.bf16 %v19
  %v84 = vunpack.c.l.bf16 %v20
  %v85 = vunpack.c.l.bf16 %v21
  %v86 = vunpack.c.l.bf16 %v22
  %v87 = vunpack.c.l.bf16 %v23
  %v88 = vunpack.c.l.bf16 %v24
  %v89 = vunpack.c.l.bf16 %v25
  %v90 = vunpack.c.l.bf16 %v26
  %v91 = vunpack.c.l.bf16 %v27
  %v92 = vunpack.c.l.bf16 %v28
  %v93 = vunpack.c.l.bf16 %v29
  %v94 = vunpack.c.l.bf16 %v30
  %v95 = vunpack.c.l.bf16 %v31
  %v96 = vunpack.c.l.bf16 %v32
  %v97 = vunpack.c.l.bf16 %v33
  %v98 = vunpack.c.l.bf16 %v34
  %v99 = vunpack.c.l.bf16 %v35
  %v100 = vunpack.c.l.bf16 %v36
  %v101 = vunpack.c.l.bf16 %v37
  %v102 = vunpack.c.l.bf16 %v38
  %v103 = vunpack.c.l.bf16 %v39
  %v104 = vunpack.c.l.bf16 %v40
  %v105 = vunpack.c.l.bf16 %v41
  %v106 = vunpack.c.l.bf16 %v42
  %v107 = vunpack.c.l.bf16 %v43
  %v108 = vunpack.c.l.bf16 %v44
  %v109 = vunpack.c.l.bf16 %v45
  %v110 = vunpack.c.l.bf16 %v46
  %v111 = vunpack.c.l.bf16 %v47
  %v112 = vunpack.c.l.bf16 %v48
  %v113 = vunpack.c.l.bf16 %v49
  %v114 = vunpack.c.l.bf16 %v50
  %v115 = vunpack.c.l.bf16 %v51
  %v116 = vunpack.c.l.bf16 %v52
  %v117 = vunpack.c.l.bf16 %v53
  %v118 = vunpack.c.l.bf16 %v54
  %v119 = vunpack.c.l.bf16 %v55
  %v120 = vunpack.c.l.bf16 %v56
  %v121 = vunpack.c.l.bf16 %v57
  %v122 = vunpack.c.l.bf16 %v58
  %v123 = vunpack.c.l.bf16 %v59
  %v124 = vunpack.c.l.bf16 %v60
  %v125 = vunpack.c.l.bf16 %v61
  %v126 = vunpack.c.l.bf16 %v62
  %v127 = vunpack.c.l.bf16 %v63
  %v128 = vunpack.c.l.bf16 %v64
  %v129 = vunpack.c.l.bf16 %v65
  %v130 = vunpack.c.l.bf16 %v66
  %v131 = vunpack.c.l.bf16 %v67
  %v132 = vunpack.c.l.bf16 %v68
  %v133 = vunpack.c.l.bf16 %v69
  %v134 = vunpack.c.l.bf16 %v70
  %v135 = vunpack.c.l.bf16 %v71
  %v136 = vunpack.c.l.bf16 %v72
  %v137 = vunpack.c.l.bf16 %v73
  %v138 = vunpack.c.l.bf16 %v74
  %v139 = vunpack.c.l.bf16 %v75
  %v140 = vunpack.c.l.bf16 %v76
  %v141 = vunpack.c.l.bf16 %v77
  %v142 = vunpack.c.l.bf16 %v78
  %v143 = vunpack.c.l.bf16 %v79
  %v144 = vunpack.c.l.bf16 %v80
  %v145 = vunpack.c.l.bf16 %v81
  %v146 = vld [vmem:[%s1] sm:$0x1]
  %v148 = vlaneseq
  %v149 = vshrl.u32 %v148, 7
  %v150 = vsub.s32 0, %v149
  %v151 = vrot.slane %v146, %v150
  %v153 = vmul.f32 %v82, %v151
  %v154 = vmul.f32 %v83, %v151
  %v155 = vmul.f32 %v84, %v151
  %v156 = vmul.f32 %v85, %v151
  %v157 = vmul.f32 %v86, %v151
  %v158 = vmul.f32 %v87, %v151
  %v159 = vmul.f32 %v88, %v151
  %v160 = vmul.f32 %v89, %v151
  %v161 = vmul.f32 %v90, %v151
  %v162 = vmul.f32 %v91, %v151
  %v163 = vmul.f32 %v92, %v151
  %v164 = vmul.f32 %v93, %v151
  %v165 = vmul.f32 %v94, %v151
  %v166 = vmul.f32 %v95, %v151
  %v167 = vmul.f32 %v96, %v151
  %v168 = vmul.f32 %v97, %v151
  %v169 = vmul.f32 %v98, %v151
  %v170 = vmul.f32 %v99, %v151
  %v171 = vmul.f32 %v100, %v151
  %v172 = vmul.f32 %v101, %v151
  %v173 = vmul.f32 %v102, %v151
  %v174 = vmul.f32 %v103, %v151
  %v175 = vmul.f32 %v104, %v151
  %v176 = vmul.f32 %v105, %v151
  %v177 = vmul.f32 %v106, %v151
  %v178 = vmul.f32 %v107, %v151
  %v179 = vmul.f32 %v108, %v151
  %v180 = vmul.f32 %v109, %v151
  %v181 = vmul.f32 %v110, %v151
  %v182 = vmul.f32 %v111, %v151
  %v183 = vmul.f32 %v112, %v151
  %v184 = vmul.f32 %v113, %v151
  %v185 = vmul.f32 %v114, %v151
  %v186 = vmul.f32 %v115, %v151
  %v187 = vmul.f32 %v116, %v151
  %v188 = vmul.f32 %v117, %v151
  %v189 = vmul.f32 %v118, %v151
  %v190 = vmul.f32 %v119, %v151
  %v191 = vmul.f32 %v120, %v151
  %v192 = vmul.f32 %v121, %v151
  %v193 = vmul.f32 %v122, %v151
  %v194 = vmul.f32 %v123, %v151
  %v195 = vmul.f32 %v124, %v151
  %v196 = vmul.f32 %v125, %v151
  %v197 = vmul.f32 %v126, %v151
  %v198 = vmul.f32 %v127, %v151
  %v199 = vmul.f32 %v128, %v151
  %v200 = vmul.f32 %v129, %v151
  %v201 = vmul.f32 %v130, %v151
  %v202 = vmul.f32 %v131, %v151
  %v203 = vmul.f32 %v132, %v151
  %v204 = vmul.f32 %v133, %v151
  %v205 = vmul.f32 %v134, %v151
  %v206 = vmul.f32 %v135, %v151
  %v207 = vmul.f32 %v136, %v151
  %v208 = vmul.f32 %v137, %v151
  %v209 = vmul.f32 %v138, %v151
  %v210 = vmul.f32 %v139, %v151
  %v211 = vmul.f32 %v140, %v151
  %v212 = vmul.f32 %v141, %v151
  %v213 = vmul.f32 %v142, %v151
  %v214 = vmul.f32 %v143, %v151
  %v215 = vmul.f32 %v144, %v151
  %v216 = vmul.f32 %v145, %v151
  %v217 = vld [vmem:[%s2] sm:$0x1]
  %v219 = vlaneseq
  %v220 = vshrl.u32 %v219, 7
  %v221 = vsub.s32 0, %v220
  %v222 = vrot.slane %v217, %v221
  %v224 = vadd.f32 %v153, %v222
  %v225 = vadd.f32 %v154, %v222
  %v226 = vadd.f32 %v155, %v222
  %v227 = vadd.f32 %v156, %v222
  %v228 = vadd.f32 %v157, %v222
  %v229 = vadd.f32 %v158, %v222
  %v230 = vadd.f32 %v159, %v222
  %v231 = vadd.f32 %v160, %v222
  %v232 = vadd.f32 %v161, %v222
  %v233 = vadd.f32 %v162, %v222
  %v234 = vadd.f32 %v163, %v222
  %v235 = vadd.f32 %v164, %v222
  %v236 = vadd.f32 %v165, %v222
  %v237 = vadd.f32 %v166, %v222
  %v238 = vadd.f32 %v167, %v222
  %v239 = vadd.f32 %v168, %v222
  %v240 = vadd.f32 %v169, %v222
  %v241 = vadd.f32 %v170, %v222
  %v242 = vadd.f32 %v171, %v222
  %v243 = vadd.f32 %v172, %v222
  %v244 = vadd.f32 %v173, %v222
  %v245 = vadd.f32 %v174, %v222
  %v246 = vadd.f32 %v175, %v222
  %v247 = vadd.f32 %v176, %v222
  %v248 = vadd.f32 %v177, %v222
  %v249 = vadd.f32 %v178, %v222
  %v250 = vadd.f32 %v179, %v222
  %v251 = vadd.f32 %v180, %v222
  %v252 = vadd.f32 %v181, %v222
  %v253 = vadd.f32 %v182, %v222
  %v254 = vadd.f32 %v183, %v222
  %v255 = vadd.f32 %v184, %v222
  %v256 = vadd.f32 %v185, %v222
  %v257 = vadd.f32 %v186, %v222
  %v258 = vadd.f32 %v187, %v222
  %v259 = vadd.f32 %v188, %v222
  %v260 = vadd.f32 %v189, %v222
  %v261 = vadd.f32 %v190, %v222
  %v262 = vadd.f32 %v191, %v222
  %v263 = vadd.f32 %v192, %v222
  %v264 = vadd.f32 %v193, %v222
  %v265 = vadd.f32 %v194, %v222
  %v266 = vadd.f32 %v195, %v222
  %v267 = vadd.f32 %v196, %v222
  %v268 = vadd.f32 %v197, %v222
  %v269 = vadd.f32 %v198, %v222
  %v270 = vadd.f32 %v199, %v222
  %v271 = vadd.f32 %v200, %v222
  %v272 = vadd.f32 %v201, %v222
  %v273 = vadd.f32 %v202, %v222
  %v274 = vadd.f32 %v203, %v222
  %v275 = vadd.f32 %v204, %v222
  %v276 = vadd.f32 %v205, %v222
  %v277 = vadd.f32 %v206, %v222
  %v278 = vadd.f32 %v207, %v222
  %v279 = vadd.f32 %v208, %v222
  %v280 = vadd.f32 %v209, %v222
  %v281 = vadd.f32 %v210, %v222
  %v282 = vadd.f32 %v211, %v222
  %v283 = vadd.f32 %v212, %v222
  %v284 = vadd.f32 %v213, %v222
  %v285 = vadd.f32 %v214, %v222
  %v286 = vadd.f32 %v215, %v222
  %v287 = vadd.f32 %v216, %v222
  %v288 = vmax.f32 %v224, 0.0
  %v289 = vmax.f32 %v225, 0.0
  %v290 = vmax.f32 %v226, 0.0
  %v291 = vmax.f32 %v227, 0.0
  %v292 = vmax.f32 %v228, 0.0
  %v293 = vmax.f32 %v229, 0.0
  %v294 = vmax.f32 %v230, 0.0
  %v295 = vmax.f32 %v231, 0.0
  %v296 = vmax.f32 %v232, 0.0
  %v297 = vmax.f32 %v233, 0.0
  %v298 = vmax.f32 %v234, 0.0
  %v299 = vmax.f32 %v235, 0.0
  %v300 = vmax.f32 %v236, 0.0
  %v301 = vmax.f32 %v237, 0.0
  %v302 = vmax.f32 %v238, 0.0
  %v303 = vmax.f32 %v239, 0.0
  %v304 = vmax.f32 %v240, 0.0
  %v305 = vmax.f32 %v241, 0.0
  %v306 = vmax.f32 %v242, 0.0
  %v307 = vmax.f32 %v243, 0.0
  %v308 = vmax.f32 %v244, 0.0
  %v309 = vmax.f32 %v245, 0.0
  %v310 = vmax.f32 %v246, 0.0
  %v311 = vmax.f32 %v247, 0.0
  %v312 = vmax.f32 %v248, 0.0
  %v313 = vmax.f32 %v249, 0.0
  %v314 = vmax.f32 %v250, 0.0
  %v315 = vmax.f32 %v251, 0.0
  %v316 = vmax.f32 %v252, 0.0
  %v317 = vmax.f32 %v253, 0.0
  %v318 = vmax.f32 %v254, 0.0
  %v319 = vmax.f32 %v255, 0.0
  %v320 = vmax.f32 %v256, 0.0
  %v321 = vmax.f32 %v257, 0.0
  %v322 = vmax.f32 %v258, 0.0
  %v323 = vmax.f32 %v259, 0.0
  %v324 = vmax.f32 %v260, 0.0
  %v325 = vmax.f32 %v261, 0.0
  %v326 = vmax.f32 %v262, 0.0
  %v327 = vmax.f32 %v263, 0.0
  %v328 = vmax.f32 %v264, 0.0
  %v329 = vmax.f32 %v265, 0.0
  %v330 = vmax.f32 %v266, 0.0
  %v331 = vmax.f32 %v267, 0.0
  %v332 = vmax.f32 %v268, 0.0
  %v333 = vmax.f32 %v269, 0.0
  %v334 = vmax.f32 %v270, 0.0
  %v335 = vmax.f32 %v271, 0.0
  %v336 = vmax.f32 %v272, 0.0
  %v337 = vmax.f32 %v273, 0.0
  %v338 = vmax.f32 %v274, 0.0
  %v339 = vmax.f32 %v275, 0.0
  %v340 = vmax.f32 %v276, 0.0
  %v341 = vmax.f32 %v277, 0.0
  %v342 = vmax.f32 %v278, 0.0
  %v343 = vmax.f32 %v279, 0.0
  %v344 = vmax.f32 %v280, 0.0
  %v345 = vmax.f32 %v281, 0.0
  %v346 = vmax.f32 %v282, 0.0
  %v347 = vmax.f32 %v283, 0.0
  %v348 = vmax.f32 %v284, 0.0
  %v349 = vmax.f32 %v285, 0.0
  %v350 = vmax.f32 %v286, 0.0
  %v351 = vmax.f32 %v287, 0.0
  %v352 = vpack.c.bf16 %v289, %v288
  %v353 = vpack.c.bf16 %v291, %v290
  %v354 = vpack.c.bf16 %v293, %v292
  %v355 = vpack.c.bf16 %v295, %v294
  %v356 = vpack.c.bf16 %v297, %v296
  %v357 = vpack.c.bf16 %v299, %v298
  %v358 = vpack.c.bf16 %v301, %v300
  %v359 = vpack.c.bf16 %v303, %v302
  %v360 = vpack.c.bf16 %v305, %v304
  %v361 = vpack.c.bf16 %v307, %v306
  %v362 = vpack.c.bf16 %v309, %v308
  %v363 = vpack.c.bf16 %v311, %v310
  %v364 = vpack.c.bf16 %v313, %v312
  %v365 = vpack.c.bf16 %v315, %v314
  %v366 = vpack.c.bf16 %v317, %v316
  %v367 = vpack.c.bf16 %v319, %v318
  %v368 = vpack.c.bf16 %v321, %v320
  %v369 = vpack.c.bf16 %v323, %v322
  %v370 = vpack.c.bf16 %v325, %v324
  %v371 = vpack.c.bf16 %v327, %v326
  %v372 = vpack.c.bf16 %v329, %v328
  %v373 = vpack.c.bf16 %v331, %v330
  %v374 = vpack.c.bf16 %v333, %v332
  %v375 = vpack.c.bf16 %v335, %v334
  %v376 = vpack.c.bf16 %v337, %v336
  %v377 = vpack.c.bf16 %v339, %v338
  %v378 = vpack.c.bf16 %v341, %v340
  %v379 = vpack.c.bf16 %v343, %v342
  %v380 = vpack.c.bf16 %v345, %v344
  %v381 = vpack.c.bf16 %v347, %v346
  %v382 = vpack.c.bf16 %v349, %v348
  %v383 = vpack.c.bf16 %v351, %v350
  %v384 = vld [vmem:[%s3] sm:$0xf]
  %v385 = vld [vmem:[%s3 + $0x4] sm:$0xf]
  %v386 = vld [vmem:[%s3 + $0x8] sm:$0xf]
  %v387 = vld [vmem:[%s3 + $0xc] sm:$0xf]
  %v392 = vunpack.c.l.b16 %v384
  %v393 = vunpack.c.l.b16 %v385
  %v394 = vunpack.c.l.b16 %v386
  %v395 = vunpack.c.l.b16 %v387
  %v396 = vpack.c.b16 %v393, %v392
  %v397 = vpack.c.b16 %v395, %v394
  %vm400 = vcmask 261120
  %v402 = vsel %vm400, %v352, 0
  %v405 = vsel %vm400, %v353, 0
  %v408 = vsel %vm400, %v354, 0
  %v411 = vsel %vm400, %v355, 0
  %v414 = vsel %vm400, %v356, 0
  %v417 = vsel %vm400, %v357, 0
  %v420 = vsel %vm400, %v358, 0
  %v423 = vsel %vm400, %v359, 0
  %v426 = vsel %vm400, %v360, 0
  %v429 = vsel %vm400, %v361, 0
  %v432 = vsel %vm400, %v362, 0
  %v435 = vsel %vm400, %v363, 0
  %v438 = vsel %vm400, %v364, 0
  %v441 = vsel %vm400, %v365, 0
  %v444 = vsel %vm400, %v366, 0
  %v447 = vsel %vm400, %v367, 0
  %v450 = vsel %vm400, %v368, 0
  %v453 = vsel %vm400, %v369, 0
  %v456 = vsel %vm400, %v370, 0
  %v459 = vsel %vm400, %v371, 0
  %v462 = vsel %vm400, %v372, 0
  %v465 = vsel %vm400, %v373, 0
  %v468 = vsel %vm400, %v374, 0
  %v471 = vsel %vm400, %v375, 0
  %v474 = vsel %vm400, %v376, 0
  %v477 = vsel %vm400, %v377, 0
  %v480 = vsel %vm400, %v378, 0
  %v483 = vsel %vm400, %v379, 0
  %v486 = vsel %vm400, %v380, 0
  %v489 = vsel %vm400, %v381, 0
  %v492 = vsel %vm400, %v382, 0
  %v495 = vsel %vm400, %v383, 0
  %497 = vmatprep.subr.bf16.mxu0 0
  %498 = vmatpush1.bf16.msra.mxu0 %v396
  %499 = vmatprep.subr.bf16.mxu0 0
  %500 = vmatpush1.bf16.msra.mxu0 %v397
  %501 = vmatprep.subr.bf16.mxu0 0
  %502 = vmatpush1.bf16.msra.mxu0 0
  %503 = vmatprep.subr.bf16.mxu0 0
  %504 = vmatpush1.bf16.msra.mxu0 0
  %505 = vmatprep.subr.bf16.mxu0 0
  %506 = vmatpush1.bf16.msra.mxu0 0
  %507 = vmatprep.subr.bf16.mxu0 0
  %508 = vmatpush1.bf16.msra.mxu0 0
  %509 = vmatprep.subr.bf16.mxu0 0
  %510 = vmatpush1.bf16.msra.mxu0 0
  %511 = vmatprep.subr.bf16.mxu0 0
  %512 = vmatpush1.bf16.msra.mxu0 0
  %513 = vmatprep.subr.bf16.mxu0 0
  %514 = vmatpush1.bf16.msra.mxu0 0
  %515 = vmatprep.subr.bf16.mxu0 0
  %516 = vmatpush1.bf16.msra.mxu0 0
  %517 = vmatprep.subr.bf16.mxu0 0
  %518 = vmatpush1.bf16.msra.mxu0 0
  %519 = vmatprep.subr.bf16.mxu0 0
  %520 = vmatpush1.bf16.msra.mxu0 0
  %521 = vmatprep.subr.bf16.mxu0 0
  %522 = vmatpush1.bf16.msra.mxu0 0
  %523 = vmatprep.subr.bf16.mxu0 0
  %524 = vmatpush1.bf16.msra.mxu0 0
  %525 = vmatprep.subr.bf16.mxu0 0
  %526 = vmatpush1.bf16.msra.mxu0 0
  %527 = vmatprep.subr.bf16.mxu0 0
  %528 = vmatpush1.bf16.msra.mxu0 0
  %529 = vmatprep.mubr.bf16.mxu0 0
  %530 = vmatmul.mubr.bf16.gmra.mrb[0].mxu0 %v402
  %v531 = vpop.f32.mrb[0].mxu0
  %v532 = vadd.f32 0.0, %v531
  %v533 = vpop.f32.mrb[0].mxu0
  %v534 = vpop.f32.mrb[0].mxu0
  %v535 = vadd.f32 0.0, %v534
  %v536 = vpop.f32.mrb[0].mxu0
  %537 = vmatprep.mubr.bf16.mxu0 0
  %538 = vmatmul.mubr.bf16.gmra.mrb[0].mxu0 %v405
  %v539 = vpop.f32.mrb[0].mxu0
  %v540 = vadd.f32 0.0, %v539
  %v541 = vpop.f32.mrb[0].mxu0
  %v542 = vpop.f32.mrb[0].mxu0
  %v543 = vadd.f32 0.0, %v542
  %v544 = vpop.f32.mrb[0].mxu0
  %545 = vmatprep.mubr.bf16.mxu0 0
  %546 = vmatmul.mubr.bf16.gmra.mrb[0].mxu0 %v408
  %v547 = vpop.f32.mrb[0].mxu0
  %v548 = vadd.f32 0.0, %v547
  %v549 = vpop.f32.mrb[0].mxu0
  %v550 = vpop.f32.mrb[0].mxu0
  %v551 = vadd.f32 0.0, %v550
  %v552 = vpop.f32.mrb[0].mxu0
  %553 = vmatprep.mubr.bf16.mxu0 0
  %554 = vmatmul.mubr.bf16.gmra.mrb[0].mxu0 %v411
  %v555 = vpop.f32.mrb[0].mxu0
  %v556 = vadd.f32 0.0, %v555
  %v557 = vpop.f32.mrb[0].mxu0
  %v558 = vpop.f32.mrb[0].mxu0
  %v559 = vadd.f32 0.0, %v558
  %v560 = vpop.f32.mrb[0].mxu0
  %561 = vmatprep.mubr.bf16.mxu0 0
  %562 = vmatmul.mubr.bf16.gmra.mrb[0].mxu0 %v414
  %v563 = vpop.f32.mrb[0].mxu0
  %v564 = vadd.f32 0.0, %v563
  %v565 = vpop.f32.mrb[0].mxu0
  %v566 = vpop.f32.mrb[0].mxu0
  %v567 = vadd.f32 0.0, %v566
  %v568 = vpop.f32.mrb[0].mxu0
  %569 = vmatprep.mubr.bf16.mxu0 0
  %570 = vmatmul.mubr.bf16.gmra.mrb[0].mxu0 %v417
  %v571 = vpop.f32.mrb[0].mxu0
  %v572 = vadd.f32 0.0, %v571
  %v573 = vpop.f32.mrb[0].mxu0
  %v574 = vpop.f32.mrb[0].mxu0
  %v575 = vadd.f32 0.0, %v574
  %v576 = vpop.f32.mrb[0].mxu0
  %577 = vmatprep.mubr.bf16.mxu0 0
  %578 = vmatmul.mubr.bf16.gmra.mrb[0].mxu0 %v420
  %v579 = vpop.f32.mrb[0].mxu0
  %v580 = vadd.f32 0.0, %v579
  %v581 = vpop.f32.mrb[0].mxu0
  %v582 = vpop.f32.mrb[0].mxu0
  %v583 = vadd.f32 0.0, %v582
  %v584 = vpop.f32.mrb[0].mxu0
  %585 = vmatprep.mubr.bf16.mxu0 0
  %586 = vmatmul.mubr.bf16.gmra.mrb[0].mxu0 %v423
  %v587 = vpop.f32.mrb[0].mxu0
  %v588 = vadd.f32 0.0, %v587
  %v589 = vpop.f32.mrb[0].mxu0
  %v590 = vpop.f32.mrb[0].mxu0
  %v591 = vadd.f32 0.0, %v590
  %v592 = vpop.f32.mrb[0].mxu0
  %593 = vmatprep.mubr.bf16.mxu0 0
  %594 = vmatmul.mubr.bf16.gmra.mrb[0].mxu0 %v426
  %v595 = vpop.f32.mrb[0].mxu0
  %v596 = vadd.f32 0.0, %v595
  %v597 = vpop.f32.mrb[0].mxu0
  %v598 = vpop.f32.mrb[0].mxu0
  %v599 = vadd.f32 0.0, %v598
  %v600 = vpop.f32.mrb[0].mxu0
  %601 = vmatprep.mubr.bf16.mxu0 0
  %602 = vmatmul.mubr.bf16.gmra.mrb[0].mxu0 %v429
  %v603 = vpop.f32.mrb[0].mxu0
  %v604 = vadd.f32 0.0, %v603
  %v605 = vpop.f32.mrb[0].mxu0
  %v606 = vpop.f32.mrb[0].mxu0
  %v607 = vadd.f32 0.0, %v606
  %v608 = vpop.f32.mrb[0].mxu0
  %609 = vmatprep.mubr.bf16.mxu0 0
  %610 = vmatmul.mubr.bf16.gmra.mrb[0].mxu0 %v432
  %v611 = vpop.f32.mrb[0].mxu0
  %v612 = vadd.f32 0.0, %v611
  %v613 = vpop.f32.mrb[0].mxu0
  %v614 = vpop.f32.mrb[0].mxu0
  %v615 = vadd.f32 0.0, %v614
  %v616 = vpop.f32.mrb[0].mxu0
  %617 = vmatprep.mubr.bf16.mxu0 0
  %618 = vmatmul.mubr.bf16.gmra.mrb[0].mxu0 %v435
  %v619 = vpop.f32.mrb[0].mxu0
  %v620 = vadd.f32 0.0, %v619
  %v621 = vpop.f32.mrb[0].mxu0
  %v622 = vpop.f32.mrb[0].mxu0
  %v623 = vadd.f32 0.0, %v622
  %v624 = vpop.f32.mrb[0].mxu0
  %625 = vmatprep.mubr.bf16.mxu0 0
  %626 = vmatmul.mubr.bf16.gmra.mrb[0].mxu0 %v438
  %v627 = vpop.f32.mrb[0].mxu0
  %v628 = vadd.f32 0.0, %v627
  %v629 = vpop.f32.mrb[0].mxu0
  %v630 = vpop.f32.mrb[0].mxu0
  %v631 = vadd.f32 0.0, %v630
  %v632 = vpop.f32.mrb[0].mxu0
  %633 = vmatprep.mubr.bf16.mxu0 0
  %634 = vmatmul.mubr.bf16.gmra.mrb[0].mxu0 %v441
  %v635 = vpop.f32.mrb[0].mxu0
  %v636 = vadd.f32 0.0, %v635
  %v637 = vpop.f32.mrb[0].mxu0
  %v638 = vpop.f32.mrb[0].mxu0
  %v639 = vadd.f32 0.0, %v638
  %v640 = vpop.f32.mrb[0].mxu0
  %641 = vmatprep.mubr.bf16.mxu0 0
  %642 = vmatmul.mubr.bf16.gmra.mrb[0].mxu0 %v444
  %v643 = vpop.f32.mrb[0].mxu0
  %v644 = vadd.f32 0.0, %v643
  %v645 = vpop.f32.mrb[0].mxu0
  %v646 = vpop.f32.mrb[0].mxu0
  %v647 = vadd.f32 0.0, %v646
  %v648 = vpop.f32.mrb[0].mxu0
  %649 = vmatprep.mubr.bf16.mxu0 0
  %650 = vmatmul.mubr.bf16.gmra.mrb[0].mxu0 %v447
  %v651 = vpop.f32.mrb[0].mxu0
  %v652 = vadd.f32 0.0, %v651
  %v653 = vpop.f32.mrb[0].mxu0
  %v654 = vpop.f32.mrb[0].mxu0
  %v655 = vadd.f32 0.0, %v654
  %v656 = vpop.f32.mrb[0].mxu0
  %657 = vmatprep.mubr.bf16.mxu0 0
  %658 = vmatmul.mubr.bf16.gmra.mrb[0].mxu0 %v450
  %v659 = vpop.f32.mrb[0].mxu0
  %v660 = vadd.f32 0.0, %v659
  %v661 = vpop.f32.mrb[0].mxu0
  %v662 = vpop.f32.mrb[0].mxu0
  %v663 = vadd.f32 0.0, %v662
  %v664 = vpop.f32.mrb[0].mxu0
  %665 = vmatprep.mubr.bf16.mxu0 0
  %666 = vmatmul.mubr.bf16.gmra.mrb[0].mxu0 %v453
  %v667 = vpop.f32.mrb[0].mxu0
  %v668 = vadd.f32 0.0, %v667
  %v669 = vpop.f32.mrb[0].mxu0
  %v670 = vpop.f32.mrb[0].mxu0
  %v671 = vadd.f32 0.0, %v670
  %v672 = vpop.f32.mrb[0].mxu0
  %673 = vmatprep.mubr.bf16.mxu0 0
  %674 = vmatmul.mubr.bf16.gmra.mrb[0].mxu0 %v456
  %v675 = vpop.f32.mrb[0].mxu0
  %v676 = vadd.f32 0.0, %v675
  %v677 = vpop.f32.mrb[0].mxu0
  %v678 = vpop.f32.mrb[0].mxu0
  %v679 = vadd.f32 0.0, %v678
  %v680 = vpop.f32.mrb[0].mxu0
  %681 = vmatprep.mubr.bf16.mxu0 0
  %682 = vmatmul.mubr.bf16.gmra.mrb[0].mxu0 %v459
  %v683 = vpop.f32.mrb[0].mxu0
  %v684 = vadd.f32 0.0, %v683
  %v685 = vpop.f32.mrb[0].mxu0
  %v686 = vpop.f32.mrb[0].mxu0
  %v687 = vadd.f32 0.0, %v686
  %v688 = vpop.f32.mrb[0].mxu0
  %689 = vmatprep.mubr.bf16.mxu0 0
  %690 = vmatmul.mubr.bf16.gmra.mrb[0].mxu0 %v462
  %v691 = vpop.f32.mrb[0].mxu0
  %v692 = vadd.f32 0.0, %v691
  %v693 = vpop.f32.mrb[0].mxu0
  %v694 = vpop.f32.mrb[0].mxu0
  %v695 = vadd.f32 0.0, %v694
  %v696 = vpop.f32.mrb[0].mxu0
  %697 = vmatprep.mubr.bf16.mxu0 0
  %698 = vmatmul.mubr.bf16.gmra.mrb[0].mxu0 %v465
  %v699 = vpop.f32.mrb[0].mxu0
  %v700 = vadd.f32 0.0, %v699
  %v701 = vpop.f32.mrb[0].mxu0
  %v702 = vpop.f32.mrb[0].mxu0
  %v703 = vadd.f32 0.0, %v702
  %v704 = vpop.f32.mrb[0].mxu0
  %705 = vmatprep.mubr.bf16.mxu0 0
  %706 = vmatmul.mubr.bf16.gmra.mrb[0].mxu0 %v468
  %v707 = vpop.f32.mrb[0].mxu0
  %v708 = vadd.f32 0.0, %v707
  %v709 = vpop.f32.mrb[0].mxu0
  %v710 = vpop.f32.mrb[0].mxu0
  %v711 = vadd.f32 0.0, %v710
  %v712 = vpop.f32.mrb[0].mxu0
  %713 = vmatprep.mubr.bf16.mxu0 0
  %714 = vmatmul.mubr.bf16.gmra.mrb[0].mxu0 %v471
  %v715 = vpop.f32.mrb[0].mxu0
  %v716 = vadd.f32 0.0, %v715
  %v717 = vpop.f32.mrb[0].mxu0
  %v718 = vpop.f32.mrb[0].mxu0
  %v719 = vadd.f32 0.0, %v718
  %v720 = vpop.f32.mrb[0].mxu0
  %721 = vmatprep.mubr.bf16.mxu0 0
  %722 = vmatmul.mubr.bf16.gmra.mrb[0].mxu0 %v474
  %v723 = vpop.f32.mrb[0].mxu0
  %v724 = vadd.f32 0.0, %v723
  %v725 = vpop.f32.mrb[0].mxu0
  %v726 = vpop.f32.mrb[0].mxu0
  %v727 = vadd.f32 0.0, %v726
  %v728 = vpop.f32.mrb[0].mxu0
  %729 = vmatprep.mubr.bf16.mxu0 0
  %730 = vmatmul.mubr.bf16.gmra.mrb[0].mxu0 %v477
  %v731 = vpop.f32.mrb[0].mxu0
  %v732 = vadd.f32 0.0, %v731
  %v733 = vpop.f32.mrb[0].mxu0
  %v734 = vpop.f32.mrb[0].mxu0
  %v735 = vadd.f32 0.0, %v734
  %v736 = vpop.f32.mrb[0].mxu0
  %737 = vmatprep.mubr.bf16.mxu0 0
  %738 = vmatmul.mubr.bf16.gmra.mrb[0].mxu0 %v480
  %v739 = vpop.f32.mrb[0].mxu0
  %v740 = vadd.f32 0.0, %v739
  %v741 = vpop.f32.mrb[0].mxu0
  %v742 = vpop.f32.mrb[0].mxu0
  %v743 = vadd.f32 0.0, %v742
  %v744 = vpop.f32.mrb[0].mxu0
  %745 = vmatprep.mubr.bf16.mxu0 0
  %746 = vmatmul.mubr.bf16.gmra.mrb[0].mxu0 %v483
  %v747 = vpop.f32.mrb[0].mxu0
  %v748 = vadd.f32 0.0, %v747
  %v749 = vpop.f32.mrb[0].mxu0
  %v750 = vpop.f32.mrb[0].mxu0
  %v751 = vadd.f32 0.0, %v750
  %v752 = vpop.f32.mrb[0].mxu0
  %753 = vmatprep.mubr.bf16.mxu0 0
  %754 = vmatmul.mubr.bf16.gmra.mrb[0].mxu0 %v486
  %v755 = vpop.f32.mrb[0].mxu0
  %v756 = vadd.f32 0.0, %v755
  %v757 = vpop.f32.mrb[0].mxu0
  %v758 = vpop.f32.mrb[0].mxu0
  %v759 = vadd.f32 0.0, %v758
  %v760 = vpop.f32.mrb[0].mxu0
  %761 = vmatprep.mubr.bf16.mxu0 0
  %762 = vmatmul.mubr.bf16.gmra.mrb[0].mxu0 %v489
  %v763 = vpop.f32.mrb[0].mxu0
  %v764 = vadd.f32 0.0, %v763
  %v765 = vpop.f32.mrb[0].mxu0
  %v766 = vpop.f32.mrb[0].mxu0
  %v767 = vadd.f32 0.0, %v766
  %v768 = vpop.f32.mrb[0].mxu0
  %769 = vmatprep.mubr.bf16.mxu0 0
  %770 = vmatmul.mubr.bf16.gmra.mrb[0].mxu0 %v492
  %v771 = vpop.f32.mrb[0].mxu0
  %v772 = vadd.f32 0.0, %v771
  %v773 = vpop.f32.mrb[0].mxu0
  %v774 = vpop.f32.mrb[0].mxu0
  %v775 = vadd.f32 0.0, %v774
  %v776 = vpop.f32.mrb[0].mxu0
  %777 = vmatprep.mubr.bf16.mxu0 0
  %778 = vmatmul.mubr.bf16.gmra.mrb[0].mxu0 %v495
  %v779 = vpop.f32.mrb[0].mxu0
  %v780 = vadd.f32 0.0, %v779
  %v781 = vpop.f32.mrb[0].mxu0
  %v782 = vpop.f32.mrb[0].mxu0
  %v783 = vadd.f32 0.0, %v782
  %v784 = vpop.f32.mrb[0].mxu0
  %785 = vdwg.mxu0
  %v786 = vadd.f32 %v532, %v535
  %v787 = vadd.f32 %v786, %v540
  %v788 = vadd.f32 %v787, %v543
  %v789 = vadd.f32 %v788, %v548
  %v790 = vadd.f32 %v789, %v551
  %v791 = vadd.f32 %v790, %v556
  %v792 = vadd.f32 %v791, %v559
  %v793 = vadd.f32 %v792, %v564
  %v794 = vadd.f32 %v793, %v567
  %v795 = vadd.f32 %v794, %v572
  %v796 = vadd.f32 %v795, %v575
  %v797 = vadd.f32 %v796, %v580
  %v798 = vadd.f32 %v797, %v583
  %v799 = vadd.f32 %v798, %v588
  %v800 = vadd.f32 %v799, %v591
  %v801 = vadd.f32 %v800, %v596
  %v802 = vadd.f32 %v801, %v599
  %v803 = vadd.f32 %v802, %v604
  %v804 = vadd.f32 %v803, %v607
  %v805 = vadd.f32 %v804, %v612
  %v806 = vadd.f32 %v805, %v615
  %v807 = vadd.f32 %v806, %v620
  %v808 = vadd.f32 %v807, %v623
  %v809 = vadd.f32 %v808, %v628
  %v810 = vadd.f32 %v809, %v631
  %v811 = vadd.f32 %v810, %v636
  %v812 = vadd.f32 %v811, %v639
  %v813 = vadd.f32 %v812, %v644
  %v814 = vadd.f32 %v813, %v647
  %v815 = vadd.f32 %v814, %v652
  %v816 = vadd.f32 %v815, %v655
  %v817 = vadd.f32 %v816, %v660
  %v818 = vadd.f32 %v817, %v663
  %v819 = vadd.f32 %v818, %v668
  %v820 = vadd.f32 %v819, %v671
  %v821 = vadd.f32 %v820, %v676
  %v822 = vadd.f32 %v821, %v679
  %v823 = vadd.f32 %v822, %v684
  %v824 = vadd.f32 %v823, %v687
  %v825 = vadd.f32 %v824, %v692
  %v826 = vadd.f32 %v825, %v695
  %v827 = vadd.f32 %v826, %v700
  %v828 = vadd.f32 %v827, %v703
  %v829 = vadd.f32 %v828, %v708
  %v830 = vadd.f32 %v829, %v711
  %v831 = vadd.f32 %v830, %v716
  %v832 = vadd.f32 %v831, %v719
  %v833 = vadd.f32 %v832, %v724
  %v834 = vadd.f32 %v833, %v727
  %v835 = vadd.f32 %v834, %v732
  %v836 = vadd.f32 %v835, %v735
  %v837 = vadd.f32 %v836, %v740
  %v838 = vadd.f32 %v837, %v743
  %v839 = vadd.f32 %v838, %v748
  %v840 = vadd.f32 %v839, %v751
  %v841 = vadd.f32 %v840, %v756
  %v842 = vadd.f32 %v841, %v759
  %v843 = vadd.f32 %v842, %v764
  %v844 = vadd.f32 %v843, %v767
  %v845 = vadd.f32 %v844, %v772
  %v846 = vadd.f32 %v845, %v775
  %v847 = vadd.f32 %v846, %v780
  %v848 = vadd.f32 %v847, %v783
  %v849 = vrot.slane %v848, 4
  %v850 = vadd.f32 %v848, %v849
  %v851 = vrot.slane %v850, 2
  %v852 = vadd.f32 %v850, %v851
  %v853 = vrot.slane %v852, 1
  %v854 = vadd.f32 %v852, %v853
  %v855 = vmul.f32 %v532, %v532
  %v856 = vmul.f32 %v535, %v535
  %v857 = vmul.f32 %v540, %v540
  %v858 = vmul.f32 %v543, %v543
  %v859 = vmul.f32 %v548, %v548
  %v860 = vmul.f32 %v551, %v551
  %v861 = vmul.f32 %v556, %v556
  %v862 = vmul.f32 %v559, %v559
  %v863 = vmul.f32 %v564, %v564
  %v864 = vmul.f32 %v567, %v567
  %v865 = vmul.f32 %v572, %v572
  %v866 = vmul.f32 %v575, %v575
  %v867 = vmul.f32 %v580, %v580
  %v868 = vmul.f32 %v583, %v583
  %v869 = vmul.f32 %v588, %v588
  %v870 = vmul.f32 %v591, %v591
  %v871 = vmul.f32 %v596, %v596
  %v872 = vmul.f32 %v599, %v599
  %v873 = vmul.f32 %v604, %v604
  %v874 = vmul.f32 %v607, %v607
  %v875 = vmul.f32 %v612, %v612
  %v876 = vmul.f32 %v615, %v615
  %v877 = vmul.f32 %v620, %v620
  %v878 = vmul.f32 %v623, %v623
  %v879 = vmul.f32 %v628, %v628
  %v880 = vmul.f32 %v631, %v631
  %v881 = vmul.f32 %v636, %v636
  %v882 = vmul.f32 %v639, %v639
  %v883 = vmul.f32 %v644, %v644
  %v884 = vmul.f32 %v647, %v647
  %v885 = vmul.f32 %v652, %v652
  %v886 = vmul.f32 %v655, %v655
  %v887 = vmul.f32 %v660, %v660
  %v888 = vmul.f32 %v663, %v663
  %v889 = vmul.f32 %v668, %v668
  %v890 = vmul.f32 %v671, %v671
  %v891 = vmul.f32 %v676, %v676
  %v892 = vmul.f32 %v679, %v679
  %v893 = vmul.f32 %v684, %v684
  %v894 = vmul.f32 %v687, %v687
  %v895 = vmul.f32 %v692, %v692
  %v896 = vmul.f32 %v695, %v695
  %v897 = vmul.f32 %v700, %v700
  %v898 = vmul.f32 %v703, %v703
  %v899 = vmul.f32 %v708, %v708
  %v900 = vmul.f32 %v711, %v711
  %v901 = vmul.f32 %v716, %v716
  %v902 = vmul.f32 %v719, %v719
  %v903 = vmul.f32 %v724, %v724
  %v904 = vmul.f32 %v727, %v727
  %v905 = vmul.f32 %v732, %v732
  %v906 = vmul.f32 %v735, %v735
  %v907 = vmul.f32 %v740, %v740
  %v908 = vmul.f32 %v743, %v743
  %v909 = vmul.f32 %v748, %v748
  %v910 = vmul.f32 %v751, %v751
  %v911 = vmul.f32 %v756, %v756
  %v912 = vmul.f32 %v759, %v759
  %v913 = vmul.f32 %v764, %v764
  %v914 = vmul.f32 %v767, %v767
  %v915 = vmul.f32 %v772, %v772
  %v916 = vmul.f32 %v775, %v775
  %v917 = vmul.f32 %v780, %v780
  %v918 = vmul.f32 %v783, %v783
  %v919 = vadd.f32 %v855, %v856
  %v920 = vadd.f32 %v919, %v857
  %v921 = vadd.f32 %v920, %v858
  %v922 = vadd.f32 %v921, %v859
  %v923 = vadd.f32 %v922, %v860
  %v924 = vadd.f32 %v923, %v861
  %v925 = vadd.f32 %v924, %v862
  %v926 = vadd.f32 %v925, %v863
  %v927 = vadd.f32 %v926, %v864
  %v928 = vadd.f32 %v927, %v865
  %v929 = vadd.f32 %v928, %v866
  %v930 = vadd.f32 %v929, %v867
  %v931 = vadd.f32 %v930, %v868
  %v932 = vadd.f32 %v931, %v869
  %v933 = vadd.f32 %v932, %v870
  %v934 = vadd.f32 %v933, %v871
  %v935 = vadd.f32 %v934, %v872
  %v936 = vadd.f32 %v935, %v873
  %v937 = vadd.f32 %v936, %v874
  %v938 = vadd.f32 %v937, %v875
  %v939 = vadd.f32 %v938, %v876
  %v940 = vadd.f32 %v939, %v877
  %v941 = vadd.f32 %v940, %v878
  %v942 = vadd.f32 %v941, %v879
  %v943 = vadd.f32 %v942, %v880
  %v944 = vadd.f32 %v943, %v881
  %v945 = vadd.f32 %v944, %v882
  %v946 = vadd.f32 %v945, %v883
  %v947 = vadd.f32 %v946, %v884
  %v948 = vadd.f32 %v947, %v885
  %v949 = vadd.f32 %v948, %v886
  %v950 = vadd.f32 %v949, %v887
  %v951 = vadd.f32 %v950, %v888
  %v952 = vadd.f32 %v951, %v889
  %v953 = vadd.f32 %v952, %v890
  %v954 = vadd.f32 %v953, %v891
  %v955 = vadd.f32 %v954, %v892
  %v956 = vadd.f32 %v955, %v893
  %v957 = vadd.f32 %v956, %v894
  %v958 = vadd.f32 %v957, %v895
  %v959 = vadd.f32 %v958, %v896
  %v960 = vadd.f32 %v959, %v897
  %v961 = vadd.f32 %v960, %v898
  %v962 = vadd.f32 %v961, %v899
  %v963 = vadd.f32 %v962, %v900
  %v964 = vadd.f32 %v963, %v901
  %v965 = vadd.f32 %v964, %v902
  %v966 = vadd.f32 %v965, %v903
  %v967 = vadd.f32 %v966, %v904
  %v968 = vadd.f32 %v967, %v905
  %v969 = vadd.f32 %v968, %v906
  %v970 = vadd.f32 %v969, %v907
  %v971 = vadd.f32 %v970, %v908
  %v972 = vadd.f32 %v971, %v909
  %v973 = vadd.f32 %v972, %v910
  %v974 = vadd.f32 %v973, %v911
  %v975 = vadd.f32 %v974, %v912
  %v976 = vadd.f32 %v975, %v913
  %v977 = vadd.f32 %v976, %v914
  %v978 = vadd.f32 %v977, %v915
  %v979 = vadd.f32 %v978, %v916
  %v980 = vadd.f32 %v979, %v917
  %v981 = vadd.f32 %v980, %v918
  %v982 = vrot.slane %v981, 4
  %v983 = vadd.f32 %v981, %v982
  %v984 = vrot.slane %v983, 2
  %v985 = vadd.f32 %v983, %v984
  %v986 = vrot.slane %v985, 1
  %v987 = vadd.f32 %v985, %v986
  %vm988 = vcmask 1040384
  %v989 = vsel %vm988, %v854, %v987
  %990 = vst [vmem:[%s4] sm:$0x3] %v989
  // Predicated region
  $region18: #{bottleneck_forward_impl.6} parent=0 // pred_check
    _
  $region19: #{bottleneck_forward_impl.6} parent=0 // pred_check_branch
    %992 = sbr.rel (0) target = $region21
  $region20: #{bottleneck_forward_impl.6} parent=0 // pred_region
    _
  $region21: #{bottleneck_forward_impl.6} parent=0 // pred_fallthru
    _
  // Predicated region
  $region22: #{bottleneck_forward_impl.6} parent=0 // pred_check
    _
  $region23: #{bottleneck_forward_impl.6} parent=0 // pred_check_branch
    %994 = sbr.rel (0) target = $region25
  $region24: #{bottleneck_forward_impl.6} parent=0 // pred_region
    _
  $region25: #{bottleneck_forward_impl.6} parent=0 // pred_fallthru
    _

// kernel: bottleneck_forward_impl.4
$region0: #{bottleneck_forward_impl.4}
  #allocation0 [shape = 'u32[]', space=smem, size = 0x4, offset = 0x4, fixed_abs, tag = 'smem constant byte address 0x4 - core index']
  #allocation1 [shape = 'u32[144,128]{1,0:T(1,128)}', space=vmem, size = 0x12000, scoped, tag = 'internal scratch']
  %s0 = inlined_call_operand.vmem [shape: f32[2,128,256], index: 0, kind: input, shape index: {}]
  %s1 = inlined_call_operand.vmem [shape: bf16[128,32], index: 1, kind: input, shape index: {}]
  %s2 = inlined_call_operand.vmem [shape: bf16[2,256,32], index: 2, kind: output, shape index: {0}]
  %s3 = inlined_call_operand.vmem [shape: f32[2,1,2,32], index: 3, kind: output, shape index: {1}]
  %4 = xla_tuple %s2, %s3
  %s5 = sld [smem:[#allocation0]]
  $region49: #{bottleneck_forward_impl.4} parent=0
    _
  %s7 = ssub.s32 1, %s5
  %s8 = scalar_select 0, %s7, %s5
  loop: start=0, step=1, limit=4
  $region2: #{bottleneck_forward_impl.4} parent=0 // loop_pre_header
    _
  $region3: #{bottleneck_forward_impl.4} parent=0 // loop_header
    %s10 = sphi 0, %s14
    %p11 = scmp.ge.s32.totalorder %s10, 4
    %s17 = sphi 0, %s29
    %s18 = sphi 0, %s25
    %s19 = sphi 0, %s17
    %s20 = sphi 0, %s18
    %s21 = sphi 0, %s19
    %s22 = sphi 0, %s20
    %s34 = sphi 0, %s36
    %s37 = sphi 0, %s34
    %s38 = sphi 0, %s37
    %s54 = sphi 0, %s38
    %s58 = sphi 0, %s58
    %s60 = sphi 0, %s58
    %s61 = sphi 0, %s60
    %s75 = sphi 0, %s61
    %s83 = sphi 0, %s85
    %s86 = sphi 0, %s83
    %s87 = sphi 0, %s86
    %s103 = sphi 0, %s87
    %s111 = sphi 0, %s113
    %s114 = sphi 0, %s111
    %s115 = sphi 0, %s114
    %s131 = sphi 0, %s115
  $region4: #{bottleneck_forward_impl.4} parent=0 // loop_header_branch
    %13 = sbr.rel (%p11) target = $region8
  $region5: #{bottleneck_forward_impl.4} parent=0 // loop_body
    %s15 = ssub.s32 %s10, 1
    %s16 = ssub.s32 %s10, 2
    %s23 = sadd.s32 1, %s18
    %p24 = scmp.ge.s32.totalorder %s23, 1
    %s25 = scalar_select %p24, 0, %s23
    %s26 = sadd.s32 1, %s17
    %s27 = scalar_select %p24, %s26, %s17
    %p28 = scmp.ge.s32.totalorder %s27, 2
    %s29 = scalar_select %p28, 0, %s27
    %s30 = ssub.s32 %s17, %s29
    %s31 = ssub.s32 %s18, %s25
    %s32 = sor.u32 %s30, %s31
    %p33 = scmp.eq.s32.totalorder %s32, 0
    %s35 = sadd.s32 %s34, 1
    %s36 = scalar_select %p33, %s34, %s35
    %p39 = pneg %p33
    %p40 = scmp.eq.s32.totalorder %s10, 1
    %p41 = por %p39, %p40
    %p42 = scmp.ne.s32.totalorder %s34, %s37
    %p43 = scmp.eq.s32.totalorder %s10, 0
    %p44 = por %p42, %p43
    %p45 = scmp.ne.s32.totalorder %s34, %s37
    %p46 = scmp.eq.s32.totalorder %s15, 1
    %p47 = por %p45, %p46
    %p48 = scmp.ne.s32.totalorder %s37, %s38
    %p49 = scmp.eq.s32.totalorder %s15, 0
    %p50 = por %p48, %p49
    %p51 = scmp.ne.s32.totalorder %s37, %s38
    %p52 = scmp.eq.s32.totalorder %s16, 1
    %p53 = por %p51, %p52
    %p55 = scmp.ne.s32.totalorder %s38, %s54
    %p56 = scmp.eq.s32.totalorder %s16, 0
    %p57 = por %p55, %p56
    %s59 = sadd.s32 %s58, 1
    %p62 = scmp.eq.s32.totalorder %s10, 1
    %p63 = scmp.ne.s32.totalorder %s58, %s60
    %p64 = scmp.eq.s32.totalorder %s10, 0
    %p65 = por %p63, %p64
    %p66 = scmp.ne.s32.totalorder %s58, %s60
    %p67 = scmp.eq.s32.totalorder %s15, 1
    %p68 = por %p66, %p67
    %p69 = scmp.ne.s32.totalorder %s60, %s61
    %p70 = scmp.eq.s32.totalorder %s15, 0
    %p71 = por %p69, %p70
    %p72 = scmp.ne.s32.totalorder %s60, %s61
    %p73 = scmp.eq.s32.totalorder %s16, 1
    %p74 = por %p72, %p73
    %p76 = scmp.ne.s32.totalorder %s61, %s75
    %p77 = scmp.eq.s32.totalorder %s16, 0
    %p78 = por %p76, %p77
    %s79 = ssub.s32 %s17, %s29
    %s80 = ssub.s32 %s18, %s25
    %s81 = sor.u32 %s79, %s80
    %p82 = scmp.eq.s32.totalorder %s81, 0
    %s84 = sadd.s32 %s83, 1
    %s85 = scalar_select %p82, %s83, %s84
    %p88 = pneg %p82
    %p89 = scmp.eq.s32.totalorder %s10, 1
    %p90 = por %p88, %p89
    %p91 = scmp.ne.s32.totalorder %s83, %s86
    %p92 = scmp.eq.s32.totalorder %s10, 0
    %p93 = por %p91, %p92
    %p94 = scmp.ne.s32.totalorder %s83, %s86
    %p95 = scmp.eq.s32.totalorder %s15, 1
    %p96 = por %p94, %p95
    %p97 = scmp.ne.s32.totalorder %s86, %s87
    %p98 = scmp.eq.s32.totalorder %s15, 0
    %p99 = por %p97, %p98
    %p100 = scmp.ne.s32.totalorder %s86, %s87
    %p101 = scmp.eq.s32.totalorder %s16, 1
    %p102 = por %p100, %p101
    %p104 = scmp.ne.s32.totalorder %s87, %s103
    %p105 = scmp.eq.s32.totalorder %s16, 0
    %p106 = por %p104, %p105
    %s107 = ssub.s32 %s17, %s29
    %s108 = ssub.s32 %s18, %s25
    %s109 = sor.u32 %s107, %s108
    %p110 = scmp.eq.s32.totalorder %s109, 0
    %s112 = sadd.s32 %s111, 1
    %s113 = scalar_select %p110, %s111, %s112
    %p116 = pneg %p110
    %p117 = scmp.eq.s32.totalorder %s10, 1
    %p118 = por %p116, %p117
    %p119 = scmp.ne.s32.totalorder %s111, %s114
    %p120 = scmp.eq.s32.totalorder %s10, 0
    %p121 = por %p119, %p120
    %p122 = scmp.ne.s32.totalorder %s111, %s114
    %p123 = scmp.eq.s32.totalorder %s15, 1
    %p124 = por %p122, %p123
    %p125 = scmp.ne.s32.totalorder %s114, %s115
    %p126 = scmp.eq.s32.totalorder %s15, 0
    %p127 = por %p125, %p126
    %p128 = scmp.ne.s32.totalorder %s114, %s115
    %p129 = scmp.eq.s32.totalorder %s16, 1
    %p130 = por %p128, %p129
    %p132 = scmp.ne.s32.totalorder %s115, %s131
    %p133 = scmp.eq.s32.totalorder %s16, 0
    %p134 = por %p132, %p133
    %p135 = scmp.le.s32.totalorder 1, %s10
    %p136 = scmp.lt.s32.totalorder %s10, 3
    %p137 = pnand %p135, %p136
    %p138 = pneg %p137
    // Predicated region
    $region9: #{bottleneck_forward_impl.4} parent=5 // pred_check
      _
    $region10: #{bottleneck_forward_impl.4} parent=5 // pred_check_branch
      %140 = sbr.rel (%p137) target = $region12
    $region11: #{bottleneck_forward_impl.4} parent=5 // pred_region
      %s141 = ssub.s32 %s10, 1
      // Predicated region
      $region13: #{bottleneck_forward_impl.4} parent=11 // pred_check
        %p142 = pneg %p71
      $region14: #{bottleneck_forward_impl.4} parent=11 // pred_check_branch
        %144 = sbr.rel (%p142) target = $region16
      $region15: #{bottleneck_forward_impl.4} parent=11 // pred_region
        _
      $region16: #{bottleneck_forward_impl.4} parent=11 // pred_fallthru
        _
    $region12: #{bottleneck_forward_impl.4} parent=5 // pred_fallthru
      _
    %p145 = scmp.lt.s32.totalorder %s10, 2
    // Predicated region
    $region17: #{bottleneck_forward_impl.4} parent=5 // pred_check
      %p146 = pneg %p145
    $region18: #{bottleneck_forward_impl.4} parent=5 // pred_check_branch
      %148 = sbr.rel (%p146) target = $region20
    $region19: #{bottleneck_forward_impl.4} parent=5 // pred_region
      // Predicated region
      $region21: #{bottleneck_forward_impl.4} parent=19 // pred_check
        %p149 = pneg %p44
      $region22: #{bottleneck_forward_impl.4} parent=19 // pred_check_branch
        %151 = sbr.rel (%p149) target = $region24
      $region23: #{bottleneck_forward_impl.4} parent=19 // pred_region
        %s152 = smul.u32 2, %s18
        %p153 = scmp.lt.s32.totalorder %s17, 1
        %s154 = scalar_select %p153, %s17, 1
        %p155 = scmp.lt.s32.totalorder %s152, 1
        %s156 = scalar_select %p155, %s152, 1
        %s157 = smul.addr %s154, 32
        %s158 = sadd.s32 %s156, %s157
        %s159 = smul.addr %s158, 8
        %s160 = scalar_lea.vmem %s0, %s159
        %s161 = smul.u32 2, %s18
      $region24: #{bottleneck_forward_impl.4} parent=19 // pred_fallthru
        _
    $region20: #{bottleneck_forward_impl.4} parent=5 // pred_fallthru
      _
    %p162 = scmp.le.s32.totalorder 1, %s10
    %p163 = scmp.lt.s32.totalorder %s10, 3
    %p164 = pnand %p162, %p163
    %p165 = pneg %p164
    // Predicated region
    $region25: #{bottleneck_forward_impl.4} parent=5 // pred_check
      _
    $region26: #{bottleneck_forward_impl.4} parent=5 // pred_check_branch
      %167 = sbr.rel (%p164) target = $region28
    $region27: #{bottleneck_forward_impl.4} parent=5 // pred_region
      %s168 = ssub.s32 %s10, 1
      %s169 = smul.u32 2, %s20
      %p170 = scmp.lt.s32.totalorder %s19, 1
      %s171 = scalar_select %p170, %s19, 1
      %p172 = scmp.lt.s32.totalorder %s169, 1
      %s173 = scalar_select %p172, %s169, 1
      %s174 = smul.addr %s171, 32
      %s175 = sadd.s32 %s173, %s174
      %s176 = smul.addr %s175, 8
      %s177 = scalar_lea.vmem %s0, %s176
      %p178 = pneg %p50
      %p179 = pneg %p47
      %p180 = pneg %p71
      %p181 = pneg %p68
      %p182 = pneg %p99
      %p183 = pneg %p96
      %s184 = smul.u32 32, %s20
      %p185 = scmp.lt.s32.totalorder %s19, 1
      %s186 = scalar_select %p185, %s19, 1
      %p187 = scmp.lt.s32.totalorder %s184, 31
      %s188 = scalar_select %p187, %s184, 31
      %s189 = smul.addr %s186, 32
      %s190 = sadd.s32 %s188, %s189
      %s191 = smul.addr %s190, 4
      %s192 = scalar_lea.vmem %s2, %s191
      %p193 = pneg %p127
      %p194 = pneg %p124
      %p195 = scmp.lt.s32.totalorder %s19, 1
      %s196 = scalar_select %p195, %s19, 1
      %p197 = scmp.lt.s32.totalorder %s20, 0
      %s198 = scalar_select %p197, %s20, 0
      %s199 = sadd.s32 %s198, %s196
      %s200 = smul.addr %s199, 2
      %s201 = scalar_lea.vmem %s3, %s200
      %s202 = smul.u32 2, %s20
      %p203 = scmp.lt.s32.totalorder %s19, 1
      %s204 = scalar_select %p203, %s19, 1
      %p205 = scmp.lt.s32.totalorder %s202, 1
      %s206 = scalar_select %p205, %s202, 1
      %s207 = smul.addr %s204, 32
      %s208 = sadd.s32 %s206, %s207
      %s209 = smul.addr %s208, 8
      %s210 = scalar_lea.vmem %s0, %s209
      %s211 = smul.u32 2, %s20
      %s212 = smul.u32 32, %s20
      %p213 = scmp.lt.s32.totalorder %s19, 1
      %s214 = scalar_select %p213, %s19, 1
      %p215 = scmp.lt.s32.totalorder %s212, 31
      %s216 = scalar_select %p215, %s212, 31
      %s217 = smul.addr %s214, 32
      %s218 = sadd.s32 %s216, %s217
      %s219 = smul.addr %s218, 4
      %s220 = scalar_lea.vmem %s2, %s219
      %s221 = smul.u32 32, %s20
      %p222 = scmp.lt.s32.totalorder %s19, 1
      %s223 = scalar_select %p222, %s19, 1
      %p224 = scmp.lt.s32.totalorder %s20, 0
      %s225 = scalar_select %p224, %s20, 0
      %s226 = sadd.s32 %s225, %s223
      %s227 = smul.addr %s226, 2
      %s228 = scalar_lea.vmem %s3, %s227
      %v230 = vld [vmem:[%s210] sm:$0xff]
      %v231 = vld [vmem:[%s210 + $0x8] sm:$0xff]
      %v232 = vld [vmem:[%s210 + $0x10] sm:$0xff]
      %v233 = vld [vmem:[%s210 + $0x18] sm:$0xff]
      %v234 = vld [vmem:[%s210 + $0x20] sm:$0xff]
      %v235 = vld [vmem:[%s210 + $0x28] sm:$0xff]
      %v236 = vld [vmem:[%s210 + $0x30] sm:$0xff]
      %v237 = vld [vmem:[%s210 + $0x38] sm:$0xff]
      %v238 = vld [vmem:[%s210 + $0x40] sm:$0xff]
      %v239 = vld [vmem:[%s210 + $0x48] sm:$0xff]
      %v240 = vld [vmem:[%s210 + $0x50] sm:$0xff]
      %v241 = vld [vmem:[%s210 + $0x58] sm:$0xff]
      %v242 = vld [vmem:[%s210 + $0x60] sm:$0xff]
      %v243 = vld [vmem:[%s210 + $0x68] sm:$0xff]
      %v244 = vld [vmem:[%s210 + $0x70] sm:$0xff]
      %v245 = vld [vmem:[%s210 + $0x78] sm:$0xff]
      %v246 = vld [vmem:[%s210 + $0x80] sm:$0xff]
      %v247 = vld [vmem:[%s210 + $0x88] sm:$0xff]
      %v248 = vld [vmem:[%s210 + $0x90] sm:$0xff]
      %v249 = vld [vmem:[%s210 + $0x98] sm:$0xff]
      %v250 = vld [vmem:[%s210 + $0xa0] sm:$0xff]
      %v251 = vld [vmem:[%s210 + $0xa8] sm:$0xff]
      %v252 = vld [vmem:[%s210 + $0xb0] sm:$0xff]
      %v253 = vld [vmem:[%s210 + $0xb8] sm:$0xff]
      %v254 = vld [vmem:[%s210 + $0xc0] sm:$0xff]
      %v255 = vld [vmem:[%s210 + $0xc8] sm:$0xff]
      %v256 = vld [vmem:[%s210 + $0xd0] sm:$0xff]
      %v257 = vld [vmem:[%s210 + $0xd8] sm:$0xff]
      %v258 = vld [vmem:[%s210 + $0xe0] sm:$0xff]
      %v259 = vld [vmem:[%s210 + $0xe8] sm:$0xff]
      %v260 = vld [vmem:[%s210 + $0xf0] sm:$0xff]
      %v261 = vld [vmem:[%s210 + $0xf8] sm:$0xff]
      %v262 = vpack.c.bf16 %v232, %v230
      %v263 = vpack.c.bf16 %v233, %v231
      %v264 = vpack.c.bf16 %v236, %v234
      %v265 = vpack.c.bf16 %v237, %v235
      %v266 = vpack.c.bf16 %v240, %v238
      %v267 = vpack.c.bf16 %v241, %v239
      %v268 = vpack.c.bf16 %v244, %v242
      %v269 = vpack.c.bf16 %v245, %v243
      %v270 = vpack.c.bf16 %v248, %v246
      %v271 = vpack.c.bf16 %v249, %v247
      %v272 = vpack.c.bf16 %v252, %v250
      %v273 = vpack.c.bf16 %v253, %v251
      %v274 = vpack.c.bf16 %v256, %v254
      %v275 = vpack.c.bf16 %v257, %v255
      %v276 = vpack.c.bf16 %v260, %v258
      %v277 = vpack.c.bf16 %v261, %v259
      %v278 = vld [vmem:[%s1] sm:$0xf]
      %v279 = vld [vmem:[%s1 + $0x4] sm:$0xf]
      %v280 = vld [vmem:[%s1 + $0x8] sm:$0xf]
      %v281 = vld [vmem:[%s1 + $0xc] sm:$0xf]
      %v282 = vld [vmem:[%s1 + $0x10] sm:$0xf]
      %v283 = vld [vmem:[%s1 + $0x14] sm:$0xf]
      %v284 = vld [vmem:[%s1 + $0x18] sm:$0xf]
      %v285 = vld [vmem:[%s1 + $0x1c] sm:$0xf]
      %v286 = vld [vmem:[%s1 + $0x20] sm:$0xf]
      %v287 = vld [vmem:[%s1 + $0x24] sm:$0xf]
      %v288 = vld [vmem:[%s1 + $0x28] sm:$0xf]
      %v289 = vld [vmem:[%s1 + $0x2c] sm:$0xf]
      %v290 = vld [vmem:[%s1 + $0x30] sm:$0xf]
      %v291 = vld [vmem:[%s1 + $0x34] sm:$0xf]
      %v292 = vld [vmem:[%s1 + $0x38] sm:$0xf]
      %v293 = vld [vmem:[%s1 + $0x3c] sm:$0xf]
      %294 = vxpose.xlu0.c.b16.start [1/8] %v262, 128
      %295 = vxpose.xlu0.c.b16.cont [2/8] %v264, 128
      %296 = vxpose.xlu0.c.b16.cont [3/8] %v266, 128
      %297 = vxpose.xlu0.c.b16.cont [4/8] %v268, 128
      %298 = vxpose.xlu0.c.b16.cont [5/8] %v270, 128
      %299 = vxpose.xlu0.c.b16.cont [6/8] %v272, 128
      %300 = vxpose.xlu0.c.b16.cont [7/8] %v274, 128
      %301 = vxpose.xlu0.c.b16.end [8/8] %v276, 128
      %v302 = vpop.trf.xlu0
      %v303 = vpop.trf.xlu0
      %v304 = vpop.trf.xlu0
      %v305 = vpop.trf.xlu0
      %v306 = vpop.trf.xlu0
      %v307 = vpop.trf.xlu0
      %v308 = vpop.trf.xlu0
      %v309 = vpop.trf.xlu0
      %310 = vxpose.xlu0.c.b16.start [1/8] %v263, 128
      %311 = vxpose.xlu0.c.b16.cont [2/8] %v265, 128
      %312 = vxpose.xlu0.c.b16.cont [3/8] %v267, 128
      %313 = vxpose.xlu0.c.b16.cont [4/8] %v269, 128
      %314 = vxpose.xlu0.c.b16.cont [5/8] %v271, 128
      %315 = vxpose.xlu0.c.b16.cont [6/8] %v273, 128
      %316 = vxpose.xlu0.c.b16.cont [7/8] %v275, 128
      %317 = vxpose.xlu0.c.b16.end [8/8] %v277, 128
      %v318 = vpop.trf.xlu0
      %v319 = vpop.trf.xlu0
      %v320 = vpop.trf.xlu0
      %v321 = vpop.trf.xlu0
      %v322 = vpop.trf.xlu0
      %v323 = vpop.trf.xlu0
      %v324 = vpop.trf.xlu0
      %v325 = vpop.trf.xlu0
      %v342 = vunpack.c.l.b16 %v278
      %v343 = vunpack.c.l.b16 %v279
      %v344 = vunpack.c.l.b16 %v280
      %v345 = vunpack.c.l.b16 %v281
      %v346 = vunpack.c.l.b16 %v282
      %v347 = vunpack.c.l.b16 %v283
      %v348 = vunpack.c.l.b16 %v284
      %v349 = vunpack.c.l.b16 %v285
      %v350 = vunpack.c.l.b16 %v286
      %v351 = vunpack.c.l.b16 %v287
      %v352 = vunpack.c.l.b16 %v288
      %v353 = vunpack.c.l.b16 %v289
      %v354 = vunpack.c.l.b16 %v290
      %v355 = vunpack.c.l.b16 %v291
      %v356 = vunpack.c.l.b16 %v292
      %v357 = vunpack.c.l.b16 %v293
      %v358 = vpack.c.b16 %v343, %v342
      %v359 = vpack.c.b16 %v345, %v344
      %v360 = vpack.c.b16 %v347, %v346
      %v361 = vpack.c.b16 %v349, %v348
      %v362 = vpack.c.b16 %v351, %v350
      %v363 = vpack.c.b16 %v353, %v352
      %v364 = vpack.c.b16 %v355, %v354
      %v365 = vpack.c.b16 %v357, %v356
      %374 = vmatprep.subr.bf16.mxu0 0
      %375 = vmatpush1.bf16.msra.mxu0 %v358
      %376 = vmatprep.subr.bf16.mxu0 0
      %377 = vmatpush1.bf16.msra.mxu0 %v359
      %378 = vmatprep.subr.bf16.mxu0 0
      %379 = vmatpush1.bf16.msra.mxu0 %v360
      %380 = vmatprep.subr.bf16.mxu0 0
      %381 = vmatpush1.bf16.msra.mxu0 %v361
      %382 = vmatprep.subr.bf16.mxu0 0
      %383 = vmatpush1.bf16.msra.mxu0 %v362
      %384 = vmatprep.subr.bf16.mxu0 0
      %385 = vmatpush1.bf16.msra.mxu0 %v363
      %386 = vmatprep.subr.bf16.mxu0 0
      %387 = vmatpush1.bf16.msra.mxu0 %v364
      %388 = vmatprep.subr.bf16.mxu0 0
      %389 = vmatpush1.bf16.msra.mxu0 %v365
      %390 = vmatprep.subr.bf16.mxu0 0
      %391 = vmatpush1.bf16.msra.mxu0 0
      %392 = vmatprep.subr.bf16.mxu0 0
      %393 = vmatpush1.bf16.msra.mxu0 0
      %394 = vmatprep.subr.bf16.mxu0 0
      %395 = vmatpush1.bf16.msra.mxu0 0
      %396 = vmatprep.subr.bf16.mxu0 0
      %397 = vmatpush1.bf16.msra.mxu0 0
      %398 = vmatprep.subr.bf16.mxu0 0
      %399 = vmatpush1.bf16.msra.mxu0 0
      %400 = vmatprep.subr.bf16.mxu0 0
      %401 = vmatpush1.bf16.msra.mxu0 0
      %402 = vmatprep.subr.bf16.mxu0 0
      %403 = vmatpush1.bf16.msra.mxu0 0
      %404 = vmatprep.subr.bf16.mxu0 0
      %405 = vmatpush1.bf16.msra.mxu0 0
      %406 = vmatprep.mubr.bf16.mxu0 0
      %407 = vmatmul.mubr.bf16.gmra.mrb[0].mxu0 %v302
      %v408 = vpop.f32.mrb[0].mxu0
      %v409 = vadd.f32 0.0, %v408
      %v410 = vpop.f32.mrb[0].mxu0
      %v411 = vpop.f32.mrb[0].mxu0
      %v412 = vadd.f32 0.0, %v411
      %v413 = vpop.f32.mrb[0].mxu0
      %414 = vmatprep.mubr.bf16.mxu0 0
      %415 = vmatmul.mubr.bf16.gmra.mrb[0].mxu0 %v303
      %v416 = vpop.f32.mrb[0].mxu0
      %v417 = vadd.f32 0.0, %v416
      %v418 = vpop.f32.mrb[0].mxu0
      %v419 = vpop.f32.mrb[0].mxu0
      %v420 = vadd.f32 0.0, %v419
      %v421 = vpop.f32.mrb[0].mxu0
      %422 = vmatprep.mubr.bf16.mxu0 0
      %423 = vmatmul.mubr.bf16.gmra.mrb[0].mxu0 %v304
      %v424 = vpop.f32.mrb[0].mxu0
      %v425 = vadd.f32 0.0, %v424
      %v426 = vpop.f32.mrb[0].mxu0
      %v427 = vpop.f32.mrb[0].mxu0
      %v428 = vadd.f32 0.0, %v427
      %v429 = vpop.f32.mrb[0].mxu0
      %430 = vmatprep.mubr.bf16.mxu0 0
      %431 = vmatmul.mubr.bf16.gmra.mrb[0].mxu0 %v305
      %v432 = vpop.f32.mrb[0].mxu0
      %v433 = vadd.f32 0.0, %v432
      %v434 = vpop.f32.mrb[0].mxu0
      %v435 = vpop.f32.mrb[0].mxu0
      %v436 = vadd.f32 0.0, %v435
      %v437 = vpop.f32.mrb[0].mxu0
      %438 = vmatprep.mubr.bf16.mxu0 0
      %439 = vmatmul.mubr.bf16.gmra.mrb[0].mxu0 %v306
      %v440 = vpop.f32.mrb[0].mxu0
      %v441 = vadd.f32 0.0, %v440
      %v442 = vpop.f32.mrb[0].mxu0
      %v443 = vpop.f32.mrb[0].mxu0
      %v444 = vadd.f32 0.0, %v443
      %v445 = vpop.f32.mrb[0].mxu0
      %446 = vmatprep.mubr.bf16.mxu0 0
      %447 = vmatmul.mubr.bf16.gmra.mrb[0].mxu0 %v307
      %v448 = vpop.f32.mrb[0].mxu0
      %v449 = vadd.f32 0.0, %v448
      %v450 = vpop.f32.mrb[0].mxu0
      %v451 = vpop.f32.mrb[0].mxu0
      %v452 = vadd.f32 0.0, %v451
      %v453 = vpop.f32.mrb[0].mxu0
      %454 = vmatprep.mubr.bf16.mxu0 0
      %455 = vmatmul.mubr.bf16.gmra.mrb[0].mxu0 %v308
      %v456 = vpop.f32.mrb[0].mxu0
      %v457 = vadd.f32 0.0, %v456
      %v458 = vpop.f32.mrb[0].mxu0
      %v459 = vpop.f32.mrb[0].mxu0
      %v460 = vadd.f32 0.0, %v459
      %v461 = vpop.f32.mrb[0].mxu0
      %462 = vmatprep.mubr.bf16.mxu0 0
      %463 = vmatmul.mubr.bf16.gmra.mrb[0].mxu0 %v309
      %v464 = vpop.f32.mrb[0].mxu0
      %v465 = vadd.f32 0.0, %v464
      %v466 = vpop.f32.mrb[0].mxu0
      %v467 = vpop.f32.mrb[0].mxu0
      %v468 = vadd.f32 0.0, %v467
      %v469 = vpop.f32.mrb[0].mxu0
      %470 = vmatprep.mubr.bf16.mxu0 0
      %471 = vmatmul.mubr.bf16.gmra.mrb[0].mxu0 %v318
      %v472 = vpop.f32.mrb[0].mxu0
      %v473 = vadd.f32 0.0, %v472
      %v474 = vpop.f32.mrb[0].mxu0
      %v475 = vpop.f32.mrb[0].mxu0
      %v476 = vadd.f32 0.0, %v475
      %v477 = vpop.f32.mrb[0].mxu0
      %478 = vmatprep.mubr.bf16.mxu0 0
      %479 = vmatmul.mubr.bf16.gmra.mrb[0].mxu0 %v319
      %v480 = vpop.f32.mrb[0].mxu0
      %v481 = vadd.f32 0.0, %v480
      %v482 = vpop.f32.mrb[0].mxu0
      %v483 = vpop.f32.mrb[0].mxu0
      %v484 = vadd.f32 0.0, %v483
      %v485 = vpop.f32.mrb[0].mxu0
      %486 = vmatprep.mubr.bf16.mxu0 0
      %487 = vmatmul.mubr.bf16.gmra.mrb[0].mxu0 %v320
      %v488 = vpop.f32.mrb[0].mxu0
      %v489 = vadd.f32 0.0, %v488
      %v490 = vpop.f32.mrb[0].mxu0
      %v491 = vpop.f32.mrb[0].mxu0
      %v492 = vadd.f32 0.0, %v491
      %v493 = vpop.f32.mrb[0].mxu0
      %494 = vmatprep.mubr.bf16.mxu0 0
      %495 = vmatmul.mubr.bf16.gmra.mrb[0].mxu0 %v321
      %v496 = vpop.f32.mrb[0].mxu0
      %v497 = vadd.f32 0.0, %v496
      %v498 = vpop.f32.mrb[0].mxu0
      %v499 = vpop.f32.mrb[0].mxu0
      %v500 = vadd.f32 0.0, %v499
      %v501 = vpop.f32.mrb[0].mxu0
      %502 = vmatprep.mubr.bf16.mxu0 0
      %503 = vmatmul.mubr.bf16.gmra.mrb[0].mxu0 %v322
      %v504 = vpop.f32.mrb[0].mxu0
      %v505 = vadd.f32 0.0, %v504
      %v506 = vpop.f32.mrb[0].mxu0
      %v507 = vpop.f32.mrb[0].mxu0
      %v508 = vadd.f32 0.0, %v507
      %v509 = vpop.f32.mrb[0].mxu0
      %510 = vmatprep.mubr.bf16.mxu0 0
      %511 = vmatmul.mubr.bf16.gmra.mrb[0].mxu0 %v323
      %v512 = vpop.f32.mrb[0].mxu0
      %v513 = vadd.f32 0.0, %v512
      %v514 = vpop.f32.mrb[0].mxu0
      %v515 = vpop.f32.mrb[0].mxu0
      %v516 = vadd.f32 0.0, %v515
      %v517 = vpop.f32.mrb[0].mxu0
      %518 = vmatprep.mubr.bf16.mxu0 0
      %519 = vmatmul.mubr.bf16.gmra.mrb[0].mxu0 %v324
      %v520 = vpop.f32.mrb[0].mxu0
      %v521 = vadd.f32 0.0, %v520
      %v522 = vpop.f32.mrb[0].mxu0
      %v523 = vpop.f32.mrb[0].mxu0
      %v524 = vadd.f32 0.0, %v523
      %v525 = vpop.f32.mrb[0].mxu0
      %526 = vmatprep.mubr.bf16.mxu0 0
      %527 = vmatmul.mubr.bf16.gmra.mrb[0].mxu0 %v325
      %v528 = vpop.f32.mrb[0].mxu0
      %v529 = vadd.f32 0.0, %v528
      %v530 = vpop.f32.mrb[0].mxu0
      %v531 = vpop.f32.mrb[0].mxu0
      %v532 = vadd.f32 0.0, %v531
      %v533 = vpop.f32.mrb[0].mxu0
      %534 = vdwg.mxu0
      %v535 = vpack.c.bf16 %v412, %v409
      %v536 = vpack.c.bf16 %v420, %v417
      %v537 = vpack.c.bf16 %v428, %v425
      %v538 = vpack.c.bf16 %v436, %v433
      %v539 = vpack.c.bf16 %v444, %v441
      %v540 = vpack.c.bf16 %v452, %v449
      %v541 = vpack.c.bf16 %v460, %v457
      %v542 = vpack.c.bf16 %v468, %v465
      %v543 = vpack.c.bf16 %v476, %v473
      %v544 = vpack.c.bf16 %v484, %v481
      %v545 = vpack.c.bf16 %v492, %v489
      %v546 = vpack.c.bf16 %v500, %v497
      %v547 = vpack.c.bf16 %v508, %v505
      %v548 = vpack.c.bf16 %v516, %v513
      %v549 = vpack.c.bf16 %v524, %v521
      %v550 = vpack.c.bf16 %v532, %v529
      %v567 = vunpack.c.l.b16 %v535
      %v568 = vunpack.c.h.b16 %v535
      %v569 = vunpack.c.l.b16 %v536
      %v570 = vunpack.c.h.b16 %v536
      %v571 = vunpack.c.l.b16 %v537
      %v572 = vunpack.c.h.b16 %v537
      %v573 = vunpack.c.l.b16 %v538
      %v574 = vunpack.c.h.b16 %v538
      %v575 = vunpack.c.l.b16 %v539
      %v576 = vunpack.c.h.b16 %v539
      %v577 = vunpack.c.l.b16 %v540
      %v578 = vunpack.c.h.b16 %v540
      %v579 = vunpack.c.l.b16 %v541
      %v580 = vunpack.c.h.b16 %v541
      %v581 = vunpack.c.l.b16 %v542
      %v582 = vunpack.c.h.b16 %v542
      %v583 = vunpack.c.l.b16 %v543
      %v584 = vunpack.c.h.b16 %v543
      %v585 = vunpack.c.l.b16 %v544
      %v586 = vunpack.c.h.b16 %v544
      %v587 = vunpack.c.l.b16 %v545
      %v588 = vunpack.c.h.b16 %v545
      %v589 = vunpack.c.l.b16 %v546
      %v590 = vunpack.c.h.b16 %v546
      %v591 = vunpack.c.l.b16 %v547
      %v592 = vunpack.c.h.b16 %v547
      %v593 = vunpack.c.l.b16 %v548
      %v594 = vunpack.c.h.b16 %v548
      %v595 = vunpack.c.l.b16 %v549
      %v596 = vunpack.c.h.b16 %v549
      %v597 = vunpack.c.l.b16 %v550
      %v598 = vunpack.c.h.b16 %v550
      %v599 = vpack.c.b16 %v567, %v567
      %v600 = vpack.c.b16 %v568, %v568
      %v601 = vpack.c.b16 %v569, %v569
      %v602 = vpack.c.b16 %v570, %v570
      %v603 = vpack.c.b16 %v571, %v571
      %v604 = vpack.c.b16 %v572, %v572
      %v605 = vpack.c.b16 %v573, %v573
      %v606 = vpack.c.b16 %v574, %v574
      %v607 = vpack.c.b16 %v575, %v575
      %v608 = vpack.c.b16 %v576, %v576
      %v609 = vpack.c.b16 %v577, %v577
      %v610 = vpack.c.b16 %v578, %v578
      %v611 = vpack.c.b16 %v579, %v579
      %v612 = vpack.c.b16 %v580, %v580
      %v613 = vpack.c.b16 %v581, %v581
      %v614 = vpack.c.b16 %v582, %v582
      %v615 = vpack.c.b16 %v583, %v583
      %v616 = vpack.c.b16 %v584, %v584
      %v617 = vpack.c.b16 %v585, %v585
      %v618 = vpack.c.b16 %v586, %v586
      %v619 = vpack.c.b16 %v587, %v587
      %v620 = vpack.c.b16 %v588, %v588
      %v621 = vpack.c.b16 %v589, %v589
      %v622 = vpack.c.b16 %v590, %v590
      %v623 = vpack.c.b16 %v591, %v591
      %v624 = vpack.c.b16 %v592, %v592
      %v625 = vpack.c.b16 %v593, %v593
      %v626 = vpack.c.b16 %v594, %v594
      %v627 = vpack.c.b16 %v595, %v595
      %v628 = vpack.c.b16 %v596, %v596
      %v629 = vpack.c.b16 %v597, %v597
      %v630 = vpack.c.b16 %v598, %v598
      %vm663 = vcmask 257024
      %664 = vst.msk [vmem:[%s220] sm:$0xf] %vm663, %v599
      %665 = vst.msk [vmem:[%s220 + $0x4] sm:$0xf] %vm663, %v600
      %666 = vst.msk [vmem:[%s220 + $0x8] sm:$0xf] %vm663, %v601
      %667 = vst.msk [vmem:[%s220 + $0xc] sm:$0xf] %vm663, %v602
      %668 = vst.msk [vmem:[%s220 + $0x10] sm:$0xf] %vm663, %v603
      %669 = vst.msk [vmem:[%s220 + $0x14] sm:$0xf] %vm663, %v604
      %670 = vst.msk [vmem:[%s220 + $0x18] sm:$0xf] %vm663, %v605
      %671 = vst.msk [vmem:[%s220 + $0x1c] sm:$0xf] %vm663, %v606
      %672 = vst.msk [vmem:[%s220 + $0x20] sm:$0xf] %vm663, %v607
      %673 = vst.msk [vmem:[%s220 + $0x24] sm:$0xf] %vm663, %v608
      %674 = vst.msk [vmem:[%s220 + $0x28] sm:$0xf] %vm663, %v609
      %675 = vst.msk [vmem:[%s220 + $0x2c] sm:$0xf] %vm663, %v610
      %676 = vst.msk [vmem:[%s220 + $0x30] sm:$0xf] %vm663, %v611
      %677 = vst.msk [vmem:[%s220 + $0x34] sm:$0xf] %vm663, %v612
      %678 = vst.msk [vmem:[%s220 + $0x38] sm:$0xf] %vm663, %v613
      %679 = vst.msk [vmem:[%s220 + $0x3c] sm:$0xf] %vm663, %v614
      %680 = vst.msk [vmem:[%s220 + $0x40] sm:$0xf] %vm663, %v615
      %681 = vst.msk [vmem:[%s220 + $0x44] sm:$0xf] %vm663, %v616
      %682 = vst.msk [vmem:[%s220 + $0x48] sm:$0xf] %vm663, %v617
      %683 = vst.msk [vmem:[%s220 + $0x4c] sm:$0xf] %vm663, %v618
      %684 = vst.msk [vmem:[%s220 + $0x50] sm:$0xf] %vm663, %v619
      %685 = vst.msk [vmem:[%s220 + $0x54] sm:$0xf] %vm663, %v620
      %686 = vst.msk [vmem:[%s220 + $0x58] sm:$0xf] %vm663, %v621
      %687 = vst.msk [vmem:[%s220 + $0x5c] sm:$0xf] %vm663, %v622
      %688 = vst.msk [vmem:[%s220 + $0x60] sm:$0xf] %vm663, %v623
      %689 = vst.msk [vmem:[%s220 + $0x64] sm:$0xf] %vm663, %v624
      %690 = vst.msk [vmem:[%s220 + $0x68] sm:$0xf] %vm663, %v625
      %691 = vst.msk [vmem:[%s220 + $0x6c] sm:$0xf] %vm663, %v626
      %692 = vst.msk [vmem:[%s220 + $0x70] sm:$0xf] %vm663, %v627
      %693 = vst.msk [vmem:[%s220 + $0x74] sm:$0xf] %vm663, %v628
      %694 = vst.msk [vmem:[%s220 + $0x78] sm:$0xf] %vm663, %v629
      %695 = vst.msk [vmem:[%s220 + $0x7c] sm:$0xf] %vm663, %v630
      %v696 = vunpack.c.l.bf16 %v535
      %v697 = vunpack.c.h.bf16 %v535
      %v698 = vunpack.c.l.bf16 %v536
      %v699 = vunpack.c.h.bf16 %v536
      %v700 = vunpack.c.l.bf16 %v537
      %v701 = vunpack.c.h.bf16 %v537
      %v702 = vunpack.c.l.bf16 %v538
      %v703 = vunpack.c.h.bf16 %v538
      %v704 = vunpack.c.l.bf16 %v539
      %v705 = vunpack.c.h.bf16 %v539
      %v706 = vunpack.c.l.bf16 %v540
      %v707 = vunpack.c.h.bf16 %v540
      %v708 = vunpack.c.l.bf16 %v541
      %v709 = vunpack.c.h.bf16 %v541
      %v710 = vunpack.c.l.bf16 %v542
      %v711 = vunpack.c.h.bf16 %v542
      %v712 = vunpack.c.l.bf16 %v543
      %v713 = vunpack.c.h.bf16 %v543
      %v714 = vunpack.c.l.bf16 %v544
      %v715 = vunpack.c.h.bf16 %v544
      %v716 = vunpack.c.l.bf16 %v545
      %v717 = vunpack.c.h.bf16 %v545
      %v718 = vunpack.c.l.bf16 %v546
      %v719 = vunpack.c.h.bf16 %v546
      %v720 = vunpack.c.l.bf16 %v547
      %v721 = vunpack.c.h.bf16 %v547
      %v722 = vunpack.c.l.bf16 %v548
      %v723 = vunpack.c.h.bf16 %v548
      %v724 = vunpack.c.l.bf16 %v549
      %v725 = vunpack.c.h.bf16 %v549
      %v726 = vunpack.c.l.bf16 %v550
      %v727 = vunpack.c.h.bf16 %v550
      %vm728 = vcmask 261120
      %v729 = vsel %vm728, %v696, 0.0
      %v730 = vsel %vm728, %v697, 0.0
      %v731 = vadd.f32 %v729, %v730
      %v732 = vsel %vm728, %v698, 0.0
      %v733 = vadd.f32 %v731, %v732
      %v734 = vsel %vm728, %v699, 0.0
      %v735 = vadd.f32 %v733, %v734
      %v736 = vsel %vm728, %v700, 0.0
      %v737 = vadd.f32 %v735, %v736
      %v738 = vsel %vm728, %v701, 0.0
      %v739 = vadd.f32 %v737, %v738
      %v740 = vsel %vm728, %v702, 0.0
      %v741 = vadd.f32 %v739, %v740
      %v742 = vsel %vm728, %v703, 0.0
      %v743 = vadd.f32 %v741, %v742
      %v744 = vsel %vm728, %v704, 0.0
      %v745 = vadd.f32 %v743, %v744
      %v746 = vsel %vm728, %v705, 0.0
      %v747 = vadd.f32 %v745, %v746
      %v748 = vsel %vm728, %v706, 0.0
      %v749 = vadd.f32 %v747, %v748
      %v750 = vsel %vm728, %v707, 0.0
      %v751 = vadd.f32 %v749, %v750
      %v752 = vsel %vm728, %v708, 0.0
      %v753 = vadd.f32 %v751, %v752
      %v754 = vsel %vm728, %v709, 0.0
      %v755 = vadd.f32 %v753, %v754
      %v756 = vsel %vm728, %v710, 0.0
      %v757 = vadd.f32 %v755, %v756
      %v758 = vsel %vm728, %v711, 0.0
      %v759 = vadd.f32 %v757, %v758
      %v760 = vsel %vm728, %v712, 0.0
      %v761 = vadd.f32 %v759, %v760
      %v762 = vsel %vm728, %v713, 0.0
      %v763 = vadd.f32 %v761, %v762
      %v764 = vsel %vm728, %v714, 0.0
      %v765 = vadd.f32 %v763, %v764
      %v766 = vsel %vm728, %v715, 0.0
      %v767 = vadd.f32 %v765, %v766
      %v768 = vsel %vm728, %v716, 0.0
      %v769 = vadd.f32 %v767, %v768
      %v770 = vsel %vm728, %v717, 0.0
      %v771 = vadd.f32 %v769, %v770
      %v772 = vsel %vm728, %v718, 0.0
      %v773 = vadd.f32 %v771, %v772
      %v774 = vsel %vm728, %v719, 0.0
      %v775 = vadd.f32 %v773, %v774
      %v776 = vsel %vm728, %v720, 0.0
      %v777 = vadd.f32 %v775, %v776
      %v778 = vsel %vm728, %v721, 0.0
      %v779 = vadd.f32 %v777, %v778
      %v780 = vsel %vm728, %v722, 0.0
      %v781 = vadd.f32 %v779, %v780
      %v782 = vsel %vm728, %v723, 0.0
      %v783 = vadd.f32 %v781, %v782
      %v784 = vsel %vm728, %v724, 0.0
      %v785 = vadd.f32 %v783, %v784
      %v786 = vsel %vm728, %v725, 0.0
      %v787 = vadd.f32 %v785, %v786
      %v788 = vsel %vm728, %v726, 0.0
      %v789 = vadd.f32 %v787, %v788
      %v790 = vsel %vm728, %v727, 0.0
      %v791 = vadd.f32 %v789, %v790
      %v792 = vrot.slane %v791, 4
      %v793 = vadd.f32 %v791, %v792
      %v794 = vrot.slane %v793, 2
      %v795 = vadd.f32 %v793, %v794
      %v796 = vrot.slane %v795, 1
      %v797 = vadd.f32 %v795, %v796
      %v798 = vmul.f32 %v696, %v696
      %v799 = vmul.f32 %v697, %v697
      %v800 = vmul.f32 %v698, %v698
      %v801 = vmul.f32 %v699, %v699
      %v802 = vmul.f32 %v700, %v700
      %v803 = vmul.f32 %v701, %v701
      %v804 = vmul.f32 %v702, %v702
      %v805 = vmul.f32 %v703, %v703
      %v806 = vmul.f32 %v704, %v704
      %v807 = vmul.f32 %v705, %v705
      %v808 = vmul.f32 %v706, %v706
      %v809 = vmul.f32 %v707, %v707
      %v810 = vmul.f32 %v708, %v708
      %v811 = vmul.f32 %v709, %v709
      %v812 = vmul.f32 %v710, %v710
      %v813 = vmul.f32 %v711, %v711
      %v814 = vmul.f32 %v712, %v712
      %v815 = vmul.f32 %v713, %v713
      %v816 = vmul.f32 %v714, %v714
      %v817 = vmul.f32 %v715, %v715
      %v818 = vmul.f32 %v716, %v716
      %v819 = vmul.f32 %v717, %v717
      %v820 = vmul.f32 %v718, %v718
      %v821 = vmul.f32 %v719, %v719
      %v822 = vmul.f32 %v720, %v720
      %v823 = vmul.f32 %v721, %v721
      %v824 = vmul.f32 %v722, %v722
      %v825 = vmul.f32 %v723, %v723
      %v826 = vmul.f32 %v724, %v724
      %v827 = vmul.f32 %v725, %v725
      %v828 = vmul.f32 %v726, %v726
      %v829 = vmul.f32 %v727, %v727
      %v830 = vsel %vm728, %v798, 0.0
      %v831 = vsel %vm728, %v799, 0.0
      %v832 = vadd.f32 %v830, %v831
      %v833 = vsel %vm728, %v800, 0.0
      %v834 = vadd.f32 %v832, %v833
      %v835 = vsel %vm728, %v801, 0.0
      %v836 = vadd.f32 %v834, %v835
      %v837 = vsel %vm728, %v802, 0.0
      %v838 = vadd.f32 %v836, %v837
      %v839 = vsel %vm728, %v803, 0.0
      %v840 = vadd.f32 %v838, %v839
      %v841 = vsel %vm728, %v804, 0.0
      %v842 = vadd.f32 %v840, %v841
      %v843 = vsel %vm728, %v805, 0.0
      %v844 = vadd.f32 %v842, %v843
      %v845 = vsel %vm728, %v806, 0.0
      %v846 = vadd.f32 %v844, %v845
      %v847 = vsel %vm728, %v807, 0.0
      %v848 = vadd.f32 %v846, %v847
      %v849 = vsel %vm728, %v808, 0.0
      %v850 = vadd.f32 %v848, %v849
      %v851 = vsel %vm728, %v809, 0.0
      %v852 = vadd.f32 %v850, %v851
      %v853 = vsel %vm728, %v810, 0.0
      %v854 = vadd.f32 %v852, %v853
      %v855 = vsel %vm728, %v811, 0.0
      %v856 = vadd.f32 %v854, %v855
      %v857 = vsel %vm728, %v812, 0.0
      %v858 = vadd.f32 %v856, %v857
      %v859 = vsel %vm728, %v813, 0.0
      %v860 = vadd.f32 %v858, %v859
      %v861 = vsel %vm728, %v814, 0.0
      %v862 = vadd.f32 %v860, %v861
      %v863 = vsel %vm728, %v815, 0.0
      %v864 = vadd.f32 %v862, %v863
      %v865 = vsel %vm728, %v816, 0.0
      %v866 = vadd.f32 %v864, %v865
      %v867 = vsel %vm728, %v817, 0.0
      %v868 = vadd.f32 %v866, %v867
      %v869 = vsel %vm728, %v818, 0.0
      %v870 = vadd.f32 %v868, %v869
      %v871 = vsel %vm728, %v819, 0.0
      %v872 = vadd.f32 %v870, %v871
      %v873 = vsel %vm728, %v820, 0.0
      %v874 = vadd.f32 %v872, %v873
      %v875 = vsel %vm728, %v821, 0.0
      %v876 = vadd.f32 %v874, %v875
      %v877 = vsel %vm728, %v822, 0.0
      %v878 = vadd.f32 %v876, %v877
      %v879 = vsel %vm728, %v823, 0.0
      %v880 = vadd.f32 %v878, %v879
      %v881 = vsel %vm728, %v824, 0.0
      %v882 = vadd.f32 %v880, %v881
      %v883 = vsel %vm728, %v825, 0.0
      %v884 = vadd.f32 %v882, %v883
      %v885 = vsel %vm728, %v826, 0.0
      %v886 = vadd.f32 %v884, %v885
      %v887 = vsel %vm728, %v827, 0.0
      %v888 = vadd.f32 %v886, %v887
      %v889 = vsel %vm728, %v828, 0.0
      %v890 = vadd.f32 %v888, %v889
      %v891 = vsel %vm728, %v829, 0.0
      %v892 = vadd.f32 %v890, %v891
      %v893 = vrot.slane %v892, 4
      %v894 = vadd.f32 %v892, %v893
      %v895 = vrot.slane %v894, 2
      %v896 = vadd.f32 %v894, %v895
      %v897 = vrot.slane %v896, 1
      %v898 = vadd.f32 %v896, %v897
      %vm899 = vcmask 1040384
      %v900 = vsel %vm899, %v797, %v898
      %vm901 = vcmask 254976
      %902 = vst.msk [vmem:[%s228] sm:$0x3] %vm901, %v900
      %s903 = smul.u32 32, %s20
      %p904 = scmp.lt.s32.totalorder %s19, 1
      %s905 = scalar_select %p904, %s19, 1
      %p906 = scmp.lt.s32.totalorder %s903, 31
      %s907 = scalar_select %p906, %s903, 31
      %s908 = smul.addr %s905, 32
      %s909 = sadd.s32 %s907, %s908
      %s910 = smul.addr %s909, 4
      %s911 = scalar_lea.vmem %s2, %s910
      %p912 = scmp.lt.s32.totalorder %s19, 1
      %s913 = scalar_select %p912, %s19, 1
      %p914 = scmp.lt.s32.totalorder %s20, 0
      %s915 = scalar_select %p914, %s20, 0
      %s916 = sadd.s32 %s915, %s913
      %s917 = smul.addr %s916, 2
      %s918 = scalar_lea.vmem %s3, %s917
      // Predicated region
      $region29: #{bottleneck_forward_impl.4} parent=27 // pred_check
        %p919 = pneg %p96
      $region30: #{bottleneck_forward_impl.4} parent=27 // pred_check_branch
        %921 = sbr.rel (%p919) target = $region32
      $region31: #{bottleneck_forward_impl.4} parent=27 // pred_region
        %s922 = smul.u32 32, %s20
      $region32: #{bottleneck_forward_impl.4} parent=27 // pred_fallthru
        _
      // Predicated region
      $region33: #{bottleneck_forward_impl.4} parent=27 // pred_check
        %p923 = pneg %p124
      $region34: #{bottleneck_forward_impl.4} parent=27 // pred_check_branch
        %925 = sbr.rel (%p923) target = $region36
      $region35: #{bottleneck_forward_impl.4} parent=27 // pred_region
        _
      $region36: #{bottleneck_forward_impl.4} parent=27 // pred_fallthru
        _
    $region28: #{bottleneck_forward_impl.4} parent=5 // pred_fallthru
      _
    %p926 = scmp.le.s32.totalorder 2, %s10
    // Predicated region
    $region37: #{bottleneck_forward_impl.4} parent=5 // pred_check
      %p927 = pneg %p926
    $region38: #{bottleneck_forward_impl.4} parent=5 // pred_check_branch
      %929 = sbr.rel (%p927) target = $region40
    $region39: #{bottleneck_forward_impl.4} parent=5 // pred_region
      %s930 = ssub.s32 %s10, 2
      // Predicated region
      $region41: #{bottleneck_forward_impl.4} parent=39 // pred_check
        %p931 = pneg %p102
      $region42: #{bottleneck_forward_impl.4} parent=39 // pred_check_branch
        %933 = sbr.rel (%p931) target = $region44
      $region43: #{bottleneck_forward_impl.4} parent=39 // pred_region
        %s934 = smul.u32 32, %s22
        %p935 = scmp.lt.s32.totalorder %s21, 1
        %s936 = scalar_select %p935, %s21, 1
        %p937 = scmp.lt.s32.totalorder %s934, 31
        %s938 = scalar_select %p937, %s934, 31
        %s939 = smul.addr %s936, 32
        %s940 = sadd.s32 %s938, %s939
        %s941 = smul.addr %s940, 4
        %s942 = scalar_lea.vmem %s2, %s941
      $region44: #{bottleneck_forward_impl.4} parent=39 // pred_fallthru
        _
      // Predicated region
      $region45: #{bottleneck_forward_impl.4} parent=39 // pred_check
        %p943 = pneg %p130
      $region46: #{bottleneck_forward_impl.4} parent=39 // pred_check_branch
        %945 = sbr.rel (%p943) target = $region48
      $region47: #{bottleneck_forward_impl.4} parent=39 // pred_region
        %p946 = scmp.lt.s32.totalorder %s21, 1
        %s947 = scalar_select %p946, %s21, 1
        %p948 = scmp.lt.s32.totalorder %s22, 0
        %s949 = scalar_select %p948, %s22, 0
        %s950 = sadd.s32 %s949, %s947
        %s951 = smul.addr %s950, 2
        %s952 = scalar_lea.vmem %s3, %s951
      $region48: #{bottleneck_forward_impl.4} parent=39 // pred_fallthru
        _
    $region40: #{bottleneck_forward_impl.4} parent=5 // pred_fallthru
      _
  $region6: #{bottleneck_forward_impl.4} parent=0 // loop_footer
    %s14 = sadd.s32 1, %s10
  $region7: #{bottleneck_forward_impl.4} parent=0 // loop_footer_branch
    %9 = sbr.rel target = $region3
  $region8: #{bottleneck_forward_impl.4} parent=0 // loop_exit
    _

// kernel: bottleneck_forward_impl.7
$region0: #{bottleneck_forward_impl.7}
  #allocation0 [shape = 'u32[]', space=smem, size = 0x4, offset = 0x4, fixed_abs, tag = 'smem constant byte address 0x4 - core index']
  #allocation1 [shape = 'u32[144,128]{1,0:T(1,128)}', space=vmem, size = 0x12000, scoped, tag = 'internal scratch']
  %s0 = inlined_call_operand.vmem [shape: bf16[2,256,32], index: 0, kind: input, shape index: {}]
  %s1 = inlined_call_operand.vmem [shape: f32[1,32], index: 1, kind: input, shape index: {}]
  %s2 = inlined_call_operand.vmem [shape: f32[1,32], index: 2, kind: input, shape index: {}]
  %s3 = inlined_call_operand.vmem [shape: bf16[32,128], index: 3, kind: input, shape index: {}]
  %s4 = inlined_call_operand.vmem [shape: f32[128,1], index: 4, kind: input, shape index: {}]
  %s5 = inlined_call_operand.vmem [shape: f32[128,1], index: 5, kind: input, shape index: {}]
  %s6 = inlined_call_operand.vmem [shape: f32[2,128,256], index: 6, kind: input, shape index: {}]
  %s7 = inlined_call_operand.vmem [shape: f32[2,128,256], index: 7, kind: output, shape index: {}]
  %s8 = sld [smem:[#allocation0]]
  $region61: #{bottleneck_forward_impl.7} parent=0
    _
  %s10 = ssub.s32 1, %s8
  %s11 = scalar_select 0, %s10, %s8
  loop: start=0, step=1, limit=4
  $region2: #{bottleneck_forward_impl.7} parent=0 // loop_pre_header
    _
  $region3: #{bottleneck_forward_impl.7} parent=0 // loop_header
    %s13 = sphi 0, %s17
    %p14 = scmp.ge.s32.totalorder %s13, 4
    %s20 = sphi 0, %s32
    %s21 = sphi 0, %s28
    %s22 = sphi 0, %s20
    %s23 = sphi 0, %s21
    %s24 = sphi 0, %s22
    %s25 = sphi 0, %s23
    %s37 = sphi 0, %s39
    %s40 = sphi 0, %s37
    %s41 = sphi 0, %s40
    %s57 = sphi 0, %s41
    %s61 = sphi 0, %s61
    %s63 = sphi 0, %s61
    %s64 = sphi 0, %s63
    %s78 = sphi 0, %s64
    %s82 = sphi 0, %s82
    %s84 = sphi 0, %s82
    %s85 = sphi 0, %s84
    %s99 = sphi 0, %s85
    %s103 = sphi 0, %s103
    %s105 = sphi 0, %s103
    %s106 = sphi 0, %s105
    %s120 = sphi 0, %s106
    %s124 = sphi 0, %s124
    %s126 = sphi 0, %s124
    %s127 = sphi 0, %s126
    %s141 = sphi 0, %s127
    %s145 = sphi 0, %s145
    %s147 = sphi 0, %s145
    %s148 = sphi 0, %s147
    %s162 = sphi 0, %s148
    %s170 = sphi 0, %s172
    %s173 = sphi 0, %s170
    %s174 = sphi 0, %s173
    %s190 = sphi 0, %s174
    %s198 = sphi 0, %s200
    %s201 = sphi 0, %s198
    %s202 = sphi 0, %s201
    %s218 = sphi 0, %s202
  $region4: #{bottleneck_forward_impl.7} parent=0 // loop_header_branch
    %16 = sbr.rel (%p14) target = $region8
  $region5: #{bottleneck_forward_impl.7} parent=0 // loop_body
    %s18 = ssub.s32 %s13, 1
    %s19 = ssub.s32 %s13, 2
    %s26 = sadd.s32 1, %s21
    %p27 = scmp.ge.s32.totalorder %s26, 1
    %s28 = scalar_select %p27, 0, %s26
    %s29 = sadd.s32 1, %s20
    %s30 = scalar_select %p27, %s29, %s20
    %p31 = scmp.ge.s32.totalorder %s30, 2
    %s32 = scalar_select %p31, 0, %s30
    %s33 = ssub.s32 %s20, %s32
    %s34 = ssub.s32 %s21, %s28
    %s35 = sor.u32 %s33, %s34
    %p36 = scmp.eq.s32.totalorder %s35, 0
    %s38 = sadd.s32 %s37, 1
    %s39 = scalar_select %p36, %s37, %s38
    %p42 = pneg %p36
    %p43 = scmp.eq.s32.totalorder %s13, 1
    %p44 = por %p42, %p43
    %p45 = scmp.ne.s32.totalorder %s37, %s40
    %p46 = scmp.eq.s32.totalorder %s13, 0
    %p47 = por %p45, %p46
    %p48 = scmp.ne.s32.totalorder %s37, %s40
    %p49 = scmp.eq.s32.totalorder %s18, 1
    %p50 = por %p48, %p49
    %p51 = scmp.ne.s32.totalorder %s40, %s41
    %p52 = scmp.eq.s32.totalorder %s18, 0
    %p53 = por %p51, %p52
    %p54 = scmp.ne.s32.totalorder %s40, %s41
    %p55 = scmp.eq.s32.totalorder %s19, 1
    %p56 = por %p54, %p55
    %p58 = scmp.ne.s32.totalorder %s41, %s57
    %p59 = scmp.eq.s32.totalorder %s19, 0
    %p60 = por %p58, %p59
    %s62 = sadd.s32 %s61, 1
    %p65 = scmp.eq.s32.totalorder %s13, 1
    %p66 = scmp.ne.s32.totalorder %s61, %s63
    %p67 = scmp.eq.s32.totalorder %s13, 0
    %p68 = por %p66, %p67
    %p69 = scmp.ne.s32.totalorder %s61, %s63
    %p70 = scmp.eq.s32.totalorder %s18, 1
    %p71 = por %p69, %p70
    %p72 = scmp.ne.s32.totalorder %s63, %s64
    %p73 = scmp.eq.s32.totalorder %s18, 0
    %p74 = por %p72, %p73
    %p75 = scmp.ne.s32.totalorder %s63, %s64
    %p76 = scmp.eq.s32.totalorder %s19, 1
    %p77 = por %p75, %p76
    %p79 = scmp.ne.s32.totalorder %s64, %s78
    %p80 = scmp.eq.s32.totalorder %s19, 0
    %p81 = por %p79, %p80
    %s83 = sadd.s32 %s82, 1
    %p86 = scmp.eq.s32.totalorder %s13, 1
    %p87 = scmp.ne.s32.totalorder %s82, %s84
    %p88 = scmp.eq.s32.totalorder %s13, 0
    %p89 = por %p87, %p88
    %p90 = scmp.ne.s32.totalorder %s82, %s84
    %p91 = scmp.eq.s32.totalorder %s18, 1
    %p92 = por %p90, %p91
    %p93 = scmp.ne.s32.totalorder %s84, %s85
    %p94 = scmp.eq.s32.totalorder %s18, 0
    %p95 = por %p93, %p94
    %p96 = scmp.ne.s32.totalorder %s84, %s85
    %p97 = scmp.eq.s32.totalorder %s19, 1
    %p98 = por %p96, %p97
    %p100 = scmp.ne.s32.totalorder %s85, %s99
    %p101 = scmp.eq.s32.totalorder %s19, 0
    %p102 = por %p100, %p101
    %s104 = sadd.s32 %s103, 1
    %p107 = scmp.eq.s32.totalorder %s13, 1
    %p108 = scmp.ne.s32.totalorder %s103, %s105
    %p109 = scmp.eq.s32.totalorder %s13, 0
    %p110 = por %p108, %p109
    %p111 = scmp.ne.s32.totalorder %s103, %s105
    %p112 = scmp.eq.s32.totalorder %s18, 1
    %p113 = por %p111, %p112
    %p114 = scmp.ne.s32.totalorder %s105, %s106
    %p115 = scmp.eq.s32.totalorder %s18, 0
    %p116 = por %p114, %p115
    %p117 = scmp.ne.s32.totalorder %s105, %s106
    %p118 = scmp.eq.s32.totalorder %s19, 1
    %p119 = por %p117, %p118
    %p121 = scmp.ne.s32.totalorder %s106, %s120
    %p122 = scmp.eq.s32.totalorder %s19, 0
    %p123 = por %p121, %p122
    %s125 = sadd.s32 %s124, 1
    %p128 = scmp.eq.s32.totalorder %s13, 1
    %p129 = scmp.ne.s32.totalorder %s124, %s126
    %p130 = scmp.eq.s32.totalorder %s13, 0
    %p131 = por %p129, %p130
    %p132 = scmp.ne.s32.totalorder %s124, %s126
    %p133 = scmp.eq.s32.totalorder %s18, 1
    %p134 = por %p132, %p133
    %p135 = scmp.ne.s32.totalorder %s126, %s127
    %p136 = scmp.eq.s32.totalorder %s18, 0
    %p137 = por %p135, %p136
    %p138 = scmp.ne.s32.totalorder %s126, %s127
    %p139 = scmp.eq.s32.totalorder %s19, 1
    %p140 = por %p138, %p139
    %p142 = scmp.ne.s32.totalorder %s127, %s141
    %p143 = scmp.eq.s32.totalorder %s19, 0
    %p144 = por %p142, %p143
    %s146 = sadd.s32 %s145, 1
    %p149 = scmp.eq.s32.totalorder %s13, 1
    %p150 = scmp.ne.s32.totalorder %s145, %s147
    %p151 = scmp.eq.s32.totalorder %s13, 0
    %p152 = por %p150, %p151
    %p153 = scmp.ne.s32.totalorder %s145, %s147
    %p154 = scmp.eq.s32.totalorder %s18, 1
    %p155 = por %p153, %p154
    %p156 = scmp.ne.s32.totalorder %s147, %s148
    %p157 = scmp.eq.s32.totalorder %s18, 0
    %p158 = por %p156, %p157
    %p159 = scmp.ne.s32.totalorder %s147, %s148
    %p160 = scmp.eq.s32.totalorder %s19, 1
    %p161 = por %p159, %p160
    %p163 = scmp.ne.s32.totalorder %s148, %s162
    %p164 = scmp.eq.s32.totalorder %s19, 0
    %p165 = por %p163, %p164
    %s166 = ssub.s32 %s20, %s32
    %s167 = ssub.s32 %s21, %s28
    %s168 = sor.u32 %s166, %s167
    %p169 = scmp.eq.s32.totalorder %s168, 0
    %s171 = sadd.s32 %s170, 1
    %s172 = scalar_select %p169, %s170, %s171
    %p175 = pneg %p169
    %p176 = scmp.eq.s32.totalorder %s13, 1
    %p177 = por %p175, %p176
    %p178 = scmp.ne.s32.totalorder %s170, %s173
    %p179 = scmp.eq.s32.totalorder %s13, 0
    %p180 = por %p178, %p179
    %p181 = scmp.ne.s32.totalorder %s170, %s173
    %p182 = scmp.eq.s32.totalorder %s18, 1
    %p183 = por %p181, %p182
    %p184 = scmp.ne.s32.totalorder %s173, %s174
    %p185 = scmp.eq.s32.totalorder %s18, 0
    %p186 = por %p184, %p185
    %p187 = scmp.ne.s32.totalorder %s173, %s174
    %p188 = scmp.eq.s32.totalorder %s19, 1
    %p189 = por %p187, %p188
    %p191 = scmp.ne.s32.totalorder %s174, %s190
    %p192 = scmp.eq.s32.totalorder %s19, 0
    %p193 = por %p191, %p192
    %s194 = ssub.s32 %s20, %s32
    %s195 = ssub.s32 %s21, %s28
    %s196 = sor.u32 %s194, %s195
    %p197 = scmp.eq.s32.totalorder %s196, 0
    %s199 = sadd.s32 %s198, 1
    %s200 = scalar_select %p197, %s198, %s199
    %p203 = pneg %p197
    %p204 = scmp.eq.s32.totalorder %s13, 1
    %p205 = por %p203, %p204
    %p206 = scmp.ne.s32.totalorder %s198, %s201
    %p207 = scmp.eq.s32.totalorder %s13, 0
    %p208 = por %p206, %p207
    %p209 = scmp.ne.s32.totalorder %s198, %s201
    %p210 = scmp.eq.s32.totalorder %s18, 1
    %p211 = por %p209, %p210
    %p212 = scmp.ne.s32.totalorder %s201, %s202
    %p213 = scmp.eq.s32.totalorder %s18, 0
    %p214 = por %p212, %p213
    %p215 = scmp.ne.s32.totalorder %s201, %s202
    %p216 = scmp.eq.s32.totalorder %s19, 1
    %p217 = por %p215, %p216
    %p219 = scmp.ne.s32.totalorder %s202, %s218
    %p220 = scmp.eq.s32.totalorder %s19, 0
    %p221 = por %p219, %p220
    %p222 = scmp.le.s32.totalorder 1, %s13
    %p223 = scmp.lt.s32.totalorder %s13, 3
    %p224 = pnand %p222, %p223
    %p225 = pneg %p224
    // Predicated region
    $region9: #{bottleneck_forward_impl.7} parent=5 // pred_check
      _
    $region10: #{bottleneck_forward_impl.7} parent=5 // pred_check_branch
      %227 = sbr.rel (%p224) target = $region12
    $region11: #{bottleneck_forward_impl.7} parent=5 // pred_region
      %s228 = ssub.s32 %s13, 1
      // Predicated region
      $region13: #{bottleneck_forward_impl.7} parent=11 // pred_check
        %p229 = pneg %p74
      $region14: #{bottleneck_forward_impl.7} parent=11 // pred_check_branch
        %231 = sbr.rel (%p229) target = $region16
      $region15: #{bottleneck_forward_impl.7} parent=11 // pred_region
        _
      $region16: #{bottleneck_forward_impl.7} parent=11 // pred_fallthru
        _
      // Predicated region
      $region17: #{bottleneck_forward_impl.7} parent=11 // pred_check
        %p232 = pneg %p95
      $region18: #{bottleneck_forward_impl.7} parent=11 // pred_check_branch
        %234 = sbr.rel (%p232) target = $region20
      $region19: #{bottleneck_forward_impl.7} parent=11 // pred_region
        _
      $region20: #{bottleneck_forward_impl.7} parent=11 // pred_fallthru
        _
      // Predicated region
      $region21: #{bottleneck_forward_impl.7} parent=11 // pred_check
        %p235 = pneg %p116
      $region22: #{bottleneck_forward_impl.7} parent=11 // pred_check_branch
        %237 = sbr.rel (%p235) target = $region24
      $region23: #{bottleneck_forward_impl.7} parent=11 // pred_region
        _
      $region24: #{bottleneck_forward_impl.7} parent=11 // pred_fallthru
        _
      // Predicated region
      $region25: #{bottleneck_forward_impl.7} parent=11 // pred_check
        %p238 = pneg %p137
      $region26: #{bottleneck_forward_impl.7} parent=11 // pred_check_branch
        %240 = sbr.rel (%p238) target = $region28
      $region27: #{bottleneck_forward_impl.7} parent=11 // pred_region
        _
      $region28: #{bottleneck_forward_impl.7} parent=11 // pred_fallthru
        _
      // Predicated region
      $region29: #{bottleneck_forward_impl.7} parent=11 // pred_check
        %p241 = pneg %p158
      $region30: #{bottleneck_forward_impl.7} parent=11 // pred_check_branch
        %243 = sbr.rel (%p241) target = $region32
      $region31: #{bottleneck_forward_impl.7} parent=11 // pred_region
        _
      $region32: #{bottleneck_forward_impl.7} parent=11 // pred_fallthru
        _
    $region12: #{bottleneck_forward_impl.7} parent=5 // pred_fallthru
      _
    %p244 = scmp.lt.s32.totalorder %s13, 2
    // Predicated region
    $region33: #{bottleneck_forward_impl.7} parent=5 // pred_check
      %p245 = pneg %p244
    $region34: #{bottleneck_forward_impl.7} parent=5 // pred_check_branch
      %247 = sbr.rel (%p245) target = $region36
    $region35: #{bottleneck_forward_impl.7} parent=5 // pred_region
      // Predicated region
      $region37: #{bottleneck_forward_impl.7} parent=35 // pred_check
        %p248 = pneg %p47
      $region38: #{bottleneck_forward_impl.7} parent=35 // pred_check_branch
        %250 = sbr.rel (%p248) target = $region40
      $region39: #{bottleneck_forward_impl.7} parent=35 // pred_region
        %s251 = smul.u32 32, %s21
        %p252 = scmp.lt.s32.totalorder %s20, 1
        %s253 = scalar_select %p252, %s20, 1
        %p254 = scmp.lt.s32.totalorder %s251, 31
        %s255 = scalar_select %p254, %s251, 31
        %s256 = smul.addr %s253, 32
        %s257 = sadd.s32 %s255, %s256
        %s258 = smul.addr %s257, 4
        %s259 = scalar_lea.vmem %s0, %s258
        %s260 = smul.u32 32, %s21
      $region40: #{bottleneck_forward_impl.7} parent=35 // pred_fallthru
        _
      // Predicated region
      $region41: #{bottleneck_forward_impl.7} parent=35 // pred_check
        %p261 = pneg %p180
      $region42: #{bottleneck_forward_impl.7} parent=35 // pred_check_branch
        %263 = sbr.rel (%p261) target = $region44
      $region43: #{bottleneck_forward_impl.7} parent=35 // pred_region
        %s264 = smul.u32 2, %s21
        %p265 = scmp.lt.s32.totalorder %s20, 1
        %s266 = scalar_select %p265, %s20, 1
        %p267 = scmp.lt.s32.totalorder %s264, 1
        %s268 = scalar_select %p267, %s264, 1
        %s269 = smul.addr %s266, 32
        %s270 = sadd.s32 %s268, %s269
        %s271 = smul.addr %s270, 8
        %s272 = scalar_lea.vmem %s6, %s271
        %s273 = smul.u32 2, %s21
      $region44: #{bottleneck_forward_impl.7} parent=35 // pred_fallthru
        _
    $region36: #{bottleneck_forward_impl.7} parent=5 // pred_fallthru
      _
    %p274 = scmp.le.s32.totalorder 1, %s13
    %p275 = scmp.lt.s32.totalorder %s13, 3
    %p276 = pnand %p274, %p275
    %p277 = pneg %p276
    // Predicated region
    $region45: #{bottleneck_forward_impl.7} parent=5 // pred_check
      _
    $region46: #{bottleneck_forward_impl.7} parent=5 // pred_check_branch
      %279 = sbr.rel (%p276) target = $region48
    $region47: #{bottleneck_forward_impl.7} parent=5 // pred_region
      %s280 = ssub.s32 %s13, 1
      %s281 = smul.u32 32, %s23
      %p282 = scmp.lt.s32.totalorder %s22, 1
      %s283 = scalar_select %p282, %s22, 1
      %p284 = scmp.lt.s32.totalorder %s281, 31
      %s285 = scalar_select %p284, %s281, 31
      %s286 = smul.addr %s283, 32
      %s287 = sadd.s32 %s285, %s286
      %s288 = smul.addr %s287, 4
      %s289 = scalar_lea.vmem %s0, %s288
      %p290 = pneg %p53
      %p291 = pneg %p50
      %p292 = pneg %p74
      %p293 = pneg %p71
      %p294 = pneg %p95
      %p295 = pneg %p92
      %p296 = pneg %p116
      %p297 = pneg %p113
      %p298 = pneg %p137
      %p299 = pneg %p134
      %p300 = pneg %p158
      %p301 = pneg %p155
      %s302 = smul.u32 2, %s23
      %p303 = scmp.lt.s32.totalorder %s22, 1
      %s304 = scalar_select %p303, %s22, 1
      %p305 = scmp.lt.s32.totalorder %s302, 1
      %s306 = scalar_select %p305, %s302, 1
      %s307 = smul.addr %s304, 32
      %s308 = sadd.s32 %s306, %s307
      %s309 = smul.addr %s308, 8
      %s310 = scalar_lea.vmem %s6, %s309
      %p311 = pneg %p186
      %p312 = pneg %p183
      %p313 = pneg %p214
      %p314 = pneg %p211
      %s315 = smul.u32 2, %s23
      %p316 = scmp.lt.s32.totalorder %s22, 1
      %s317 = scalar_select %p316, %s22, 1
      %p318 = scmp.lt.s32.totalorder %s315, 1
      %s319 = scalar_select %p318, %s315, 1
      %s320 = smul.addr %s317, 32
      %s321 = sadd.s32 %s319, %s320
      %s322 = smul.addr %s321, 8
      %s323 = scalar_lea.vmem %s7, %s322
      %s324 = smul.u32 32, %s23
      %p325 = scmp.lt.s32.totalorder %s22, 1
      %s326 = scalar_select %p325, %s22, 1
      %p327 = scmp.lt.s32.totalorder %s324, 31
      %s328 = scalar_select %p327, %s324, 31
      %s329 = smul.addr %s326, 32
      %s330 = sadd.s32 %s328, %s329
      %s331 = smul.addr %s330, 4
      %s332 = scalar_lea.vmem %s0, %s331
      %s333 = smul.u32 32, %s23
      %s334 = smul.u32 2, %s23
      %p335 = scmp.lt.s32.totalorder %s22, 1
      %s336 = scalar_select %p335, %s22, 1
      %p337 = scmp.lt.s32.totalorder %s334, 1
      %s338 = scalar_select %p337, %s334, 1
      %s339 = smul.addr %s336, 32
      %s340 = sadd.s32 %s338, %s339
      %s341 = smul.addr %s340, 8
      %s342 = scalar_lea.vmem %s6, %s341
      %s343 = smul.u32 2, %s23
      %s344 = smul.u32 2, %s23
      %p345 = scmp.lt.s32.totalorder %s22, 1
      %s346 = scalar_select %p345, %s22, 1
      %p347 = scmp.lt.s32.totalorder %s344, 1
      %s348 = scalar_select %p347, %s344, 1
      %s349 = smul.addr %s346, 32
      %s350 = sadd.s32 %s348, %s349
      %s351 = smul.addr %s350, 8
      %s352 = scalar_lea.vmem %s7, %s351
      %s353 = smul.u32 2, %s23
      %v355 = vld [vmem:[%s332] sm:$0xf]
      %v356 = vld [vmem:[%s332 + $0x4] sm:$0xf]
      %v357 = vld [vmem:[%s332 + $0x8] sm:$0xf]
      %v358 = vld [vmem:[%s332 + $0xc] sm:$0xf]
      %v359 = vld [vmem:[%s332 + $0x10] sm:$0xf]
      %v360 = vld [vmem:[%s332 + $0x14] sm:$0xf]
      %v361 = vld [vmem:[%s332 + $0x18] sm:$0xf]
      %v362 = vld [vmem:[%s332 + $0x1c] sm:$0xf]
      %v363 = vld [vmem:[%s332 + $0x20] sm:$0xf]
      %v364 = vld [vmem:[%s332 + $0x24] sm:$0xf]
      %v365 = vld [vmem:[%s332 + $0x28] sm:$0xf]
      %v366 = vld [vmem:[%s332 + $0x2c] sm:$0xf]
      %v367 = vld [vmem:[%s332 + $0x30] sm:$0xf]
      %v368 = vld [vmem:[%s332 + $0x34] sm:$0xf]
      %v369 = vld [vmem:[%s332 + $0x38] sm:$0xf]
      %v370 = vld [vmem:[%s332 + $0x3c] sm:$0xf]
      %v371 = vld [vmem:[%s332 + $0x40] sm:$0xf]
      %v372 = vld [vmem:[%s332 + $0x44] sm:$0xf]
      %v373 = vld [vmem:[%s332 + $0x48] sm:$0xf]
      %v374 = vld [vmem:[%s332 + $0x4c] sm:$0xf]
      %v375 = vld [vmem:[%s332 + $0x50] sm:$0xf]
      %v376 = vld [vmem:[%s332 + $0x54] sm:$0xf]
      %v377 = vld [vmem:[%s332 + $0x58] sm:$0xf]
      %v378 = vld [vmem:[%s332 + $0x5c] sm:$0xf]
      %v379 = vld [vmem:[%s332 + $0x60] sm:$0xf]
      %v380 = vld [vmem:[%s332 + $0x64] sm:$0xf]
      %v381 = vld [vmem:[%s332 + $0x68] sm:$0xf]
      %v382 = vld [vmem:[%s332 + $0x6c] sm:$0xf]
      %v383 = vld [vmem:[%s332 + $0x70] sm:$0xf]
      %v384 = vld [vmem:[%s332 + $0x74] sm:$0xf]
      %v385 = vld [vmem:[%s332 + $0x78] sm:$0xf]
      %v386 = vld [vmem:[%s332 + $0x7c] sm:$0xf]
      %v387 = vunpack.c.l.bf16 %v355
      %v388 = vunpack.c.l.bf16 %v356
      %v389 = vunpack.c.l.bf16 %v357
      %v390 = vunpack.c.l.bf16 %v358
      %v391 = vunpack.c.l.bf16 %v359
      %v392 = vunpack.c.l.bf16 %v360
      %v393 = vunpack.c.l.bf16 %v361
      %v394 = vunpack.c.l.bf16 %v362
      %v395 = vunpack.c.l.bf16 %v363
      %v396 = vunpack.c.l.bf16 %v364
      %v397 = vunpack.c.l.bf16 %v365
      %v398 = vunpack.c.l.bf16 %v366
      %v399 = vunpack.c.l.bf16 %v367
      %v400 = vunpack.c.l.bf16 %v368
      %v401 = vunpack.c.l.bf16 %v369
      %v402 = vunpack.c.l.bf16 %v370
      %v403 = vunpack.c.l.bf16 %v371
      %v404 = vunpack.c.l.bf16 %v372
      %v405 = vunpack.c.l.bf16 %v373
      %v406 = vunpack.c.l.bf16 %v374
      %v407 = vunpack.c.l.bf16 %v375
      %v408 = vunpack.c.l.bf16 %v376
      %v409 = vunpack.c.l.bf16 %v377
      %v410 = vunpack.c.l.bf16 %v378
      %v411 = vunpack.c.l.bf16 %v379
      %v412 = vunpack.c.l.bf16 %v380
      %v413 = vunpack.c.l.bf16 %v381
      %v414 = vunpack.c.l.bf16 %v382
      %v415 = vunpack.c.l.bf16 %v383
      %v416 = vunpack.c.l.bf16 %v384
      %v417 = vunpack.c.l.bf16 %v385
      %v418 = vunpack.c.l.bf16 %v386
      %v419 = vld [vmem:[%s1] sm:$0x1]
      %v421 = vlaneseq
      %v422 = vshrl.u32 %v421, 7
      %v423 = vsub.s32 0, %v422
      %v424 = vrot.slane %v419, %v423
      %v426 = vmul.f32 %v387, %v424
      %v427 = vmul.f32 %v388, %v424
      %v428 = vmul.f32 %v389, %v424
      %v429 = vmul.f32 %v390, %v424
      %v430 = vmul.f32 %v391, %v424
      %v431 = vmul.f32 %v392, %v424
      %v432 = vmul.f32 %v393, %v424
      %v433 = vmul.f32 %v394, %v424
      %v434 = vmul.f32 %v395, %v424
      %v435 = vmul.f32 %v396, %v424
      %v436 = vmul.f32 %v397, %v424
      %v437 = vmul.f32 %v398, %v424
      %v438 = vmul.f32 %v399, %v424
      %v439 = vmul.f32 %v400, %v424
      %v440 = vmul.f32 %v401, %v424
      %v441 = vmul.f32 %v402, %v424
      %v442 = vmul.f32 %v403, %v424
      %v443 = vmul.f32 %v404, %v424
      %v444 = vmul.f32 %v405, %v424
      %v445 = vmul.f32 %v406, %v424
      %v446 = vmul.f32 %v407, %v424
      %v447 = vmul.f32 %v408, %v424
      %v448 = vmul.f32 %v409, %v424
      %v449 = vmul.f32 %v410, %v424
      %v450 = vmul.f32 %v411, %v424
      %v451 = vmul.f32 %v412, %v424
      %v452 = vmul.f32 %v413, %v424
      %v453 = vmul.f32 %v414, %v424
      %v454 = vmul.f32 %v415, %v424
      %v455 = vmul.f32 %v416, %v424
      %v456 = vmul.f32 %v417, %v424
      %v457 = vmul.f32 %v418, %v424
      %v458 = vld [vmem:[%s2] sm:$0x1]
      %v460 = vlaneseq
      %v461 = vshrl.u32 %v460, 7
      %v462 = vsub.s32 0, %v461
      %v463 = vrot.slane %v458, %v462
      %v465 = vadd.f32 %v426, %v463
      %v466 = vadd.f32 %v427, %v463
      %v467 = vadd.f32 %v428, %v463
      %v468 = vadd.f32 %v429, %v463
      %v469 = vadd.f32 %v430, %v463
      %v470 = vadd.f32 %v431, %v463
      %v471 = vadd.f32 %v432, %v463
      %v472 = vadd.f32 %v433, %v463
      %v473 = vadd.f32 %v434, %v463
      %v474 = vadd.f32 %v435, %v463
      %v475 = vadd.f32 %v436, %v463
      %v476 = vadd.f32 %v437, %v463
      %v477 = vadd.f32 %v438, %v463
      %v478 = vadd.f32 %v439, %v463
      %v479 = vadd.f32 %v440, %v463
      %v480 = vadd.f32 %v441, %v463
      %v481 = vadd.f32 %v442, %v463
      %v482 = vadd.f32 %v443, %v463
      %v483 = vadd.f32 %v444, %v463
      %v484 = vadd.f32 %v445, %v463
      %v485 = vadd.f32 %v446, %v463
      %v486 = vadd.f32 %v447, %v463
      %v487 = vadd.f32 %v448, %v463
      %v488 = vadd.f32 %v449, %v463
      %v489 = vadd.f32 %v450, %v463
      %v490 = vadd.f32 %v451, %v463
      %v491 = vadd.f32 %v452, %v463
      %v492 = vadd.f32 %v453, %v463
      %v493 = vadd.f32 %v454, %v463
      %v494 = vadd.f32 %v455, %v463
      %v495 = vadd.f32 %v456, %v463
      %v496 = vadd.f32 %v457, %v463
      %v497 = vmax.f32 %v465, 0.0
      %v498 = vmax.f32 %v466, 0.0
      %v499 = vmax.f32 %v467, 0.0
      %v500 = vmax.f32 %v468, 0.0
      %v501 = vmax.f32 %v469, 0.0
      %v502 = vmax.f32 %v470, 0.0
      %v503 = vmax.f32 %v471, 0.0
      %v504 = vmax.f32 %v472, 0.0
      %v505 = vmax.f32 %v473, 0.0
      %v506 = vmax.f32 %v474, 0.0
      %v507 = vmax.f32 %v475, 0.0
      %v508 = vmax.f32 %v476, 0.0
      %v509 = vmax.f32 %v477, 0.0
      %v510 = vmax.f32 %v478, 0.0
      %v511 = vmax.f32 %v479, 0.0
      %v512 = vmax.f32 %v480, 0.0
      %v513 = vmax.f32 %v481, 0.0
      %v514 = vmax.f32 %v482, 0.0
      %v515 = vmax.f32 %v483, 0.0
      %v516 = vmax.f32 %v484, 0.0
      %v517 = vmax.f32 %v485, 0.0
      %v518 = vmax.f32 %v486, 0.0
      %v519 = vmax.f32 %v487, 0.0
      %v520 = vmax.f32 %v488, 0.0
      %v521 = vmax.f32 %v489, 0.0
      %v522 = vmax.f32 %v490, 0.0
      %v523 = vmax.f32 %v491, 0.0
      %v524 = vmax.f32 %v492, 0.0
      %v525 = vmax.f32 %v493, 0.0
      %v526 = vmax.f32 %v494, 0.0
      %v527 = vmax.f32 %v495, 0.0
      %v528 = vmax.f32 %v496, 0.0
      %v529 = vld [vmem:[%s3] sm:$0xf]
      %v530 = vld [vmem:[%s3 + $0x4] sm:$0xf]
      %v531 = vld [vmem:[%s3 + $0x8] sm:$0xf]
      %v532 = vld [vmem:[%s3 + $0xc] sm:$0xf]
      %v533 = vpack.c.bf16 %v498, %v497
      %v534 = vpack.c.bf16 %v500, %v499
      %v535 = vpack.c.bf16 %v502, %v501
      %v536 = vpack.c.bf16 %v504, %v503
      %v537 = vpack.c.bf16 %v506, %v505
      %v538 = vpack.c.bf16 %v508, %v507
      %v539 = vpack.c.bf16 %v510, %v509
      %v540 = vpack.c.bf16 %v512, %v511
      %v541 = vpack.c.bf16 %v514, %v513
      %v542 = vpack.c.bf16 %v516, %v515
      %v543 = vpack.c.bf16 %v518, %v517
      %v544 = vpack.c.bf16 %v520, %v519
      %v545 = vpack.c.bf16 %v522, %v521
      %v546 = vpack.c.bf16 %v524, %v523
      %v547 = vpack.c.bf16 %v526, %v525
      %v548 = vpack.c.bf16 %v528, %v527
      %v553 = vunpack.c.l.b16 %v529
      %v554 = vunpack.c.l.b16 %v530
      %v555 = vunpack.c.l.b16 %v531
      %v556 = vunpack.c.l.b16 %v532
      %v557 = vpack.c.b16 %v554, %v553
      %v558 = vpack.c.b16 %v556, %v555
      %561 = vxpose.xlu0.c.b16.start [1/8] %v557, 128
      %562 = vxpose.xlu0.c.b16.cont [2/8] %v558, 128
      %563 = vxpose.xlu0.c.b16.cont [3/8] 0, 128
      %564 = vxpose.xlu0.c.b16.cont [4/8] 0, 128
      %565 = vxpose.xlu0.c.b16.cont [5/8] 0, 128
      %566 = vxpose.xlu0.c.b16.cont [6/8] 0, 128
      %567 = vxpose.xlu0.c.b16.cont [7/8] 0, 128
      %568 = vxpose.xlu0.c.b16.end [8/8] 0, 128
      %v569 = vpop.trf.xlu0
      %v570 = vpop.trf.xlu0
      %v571 = vpop.trf.xlu0
      %v572 = vpop.trf.xlu0
      %v573 = vpop.trf.xlu0
      %v574 = vpop.trf.xlu0
      %v575 = vpop.trf.xlu0
      %v576 = vpop.trf.xlu0
      %vm577 = vcmask 261120
      %v579 = vsel %vm577, %v569, 0
      %v582 = vsel %vm577, %v570, 0
      %v585 = vsel %vm577, %v571, 0
      %v588 = vsel %vm577, %v572, 0
      %v591 = vsel %vm577, %v573, 0
      %v594 = vsel %vm577, %v574, 0
      %v597 = vsel %vm577, %v575, 0
      %v600 = vsel %vm577, %v576, 0
      %v603 = vsel %vm577, %v533, 0
      %v606 = vsel %vm577, %v534, 0
      %v609 = vsel %vm577, %v535, 0
      %v612 = vsel %vm577, %v536, 0
      %v615 = vsel %vm577, %v537, 0
      %v618 = vsel %vm577, %v538, 0
      %v621 = vsel %vm577, %v539, 0
      %v624 = vsel %vm577, %v540, 0
      %v627 = vsel %vm577, %v541, 0
      %v630 = vsel %vm577, %v542, 0
      %v633 = vsel %vm577, %v543, 0
      %v636 = vsel %vm577, %v544, 0
      %v639 = vsel %vm577, %v545, 0
      %v642 = vsel %vm577, %v546, 0
      %v645 = vsel %vm577, %v547, 0
      %v648 = vsel %vm577, %v548, 0
      %650 = vmatprep.subr.bf16.mxu0 0
      %651 = vmatpush1.bf16.xpose.msra.mxu0 %v603
      %652 = vmatprep.subr.bf16.mxu0 0
      %653 = vmatpush1.bf16.xpose.msra.mxu0 %v606
      %654 = vmatprep.subr.bf16.mxu0 0
      %655 = vmatpush1.bf16.xpose.msra.mxu0 %v609
      %656 = vmatprep.subr.bf16.mxu0 0
      %657 = vmatpush1.bf16.xpose.msra.mxu0 %v612
      %658 = vmatprep.subr.bf16.mxu0 0
      %659 = vmatpush1.bf16.xpose.msra.mxu0 %v615
      %660 = vmatprep.subr.bf16.mxu0 0
      %661 = vmatpush1.bf16.xpose.msra.mxu0 %v618
      %662 = vmatprep.subr.bf16.mxu0 0
      %663 = vmatpush1.bf16.xpose.msra.mxu0 %v621
      %664 = vmatprep.subr.bf16.mxu0 0
      %665 = vmatpush1.bf16.xpose.msra.mxu0 %v624
      %666 = vmatprep.subr.bf16.mxu0 0
      %667 = vmatpush1.bf16.xpose.msra.mxu0 %v627
      %668 = vmatprep.subr.bf16.mxu0 0
      %669 = vmatpush1.bf16.xpose.msra.mxu0 %v630
      %670 = vmatprep.subr.bf16.mxu0 0
      %671 = vmatpush1.bf16.xpose.msra.mxu0 %v633
      %672 = vmatprep.subr.bf16.mxu0 0
      %673 = vmatpush1.bf16.xpose.msra.mxu0 %v636
      %674 = vmatprep.subr.bf16.mxu0 0
      %675 = vmatpush1.bf16.xpose.msra.mxu0 %v639
      %676 = vmatprep.subr.bf16.mxu0 0
      %677 = vmatpush1.bf16.xpose.msra.mxu0 %v642
      %678 = vmatprep.subr.bf16.mxu0 0
      %679 = vmatpush1.bf16.xpose.msra.mxu0 %v645
      %680 = vmatprep.subr.bf16.mxu0 0
      %681 = vmatpush1.bf16.xpose.msra.mxu0 %v648
      %682 = vmatprep.mubr.bf16.mxu0 0
      %683 = vmatmul.mubr.bf16.gmra.mrb[0].mxu0 %v579
      %v684 = vpop.f32.mrb[0].mxu0
      %v685 = vadd.f32 0.0, %v684
      %v686 = vpop.f32.mrb[0].mxu0
      %v687 = vadd.f32 0.0, %v686
      %v688 = vpop.f32.mrb[0].mxu0
      %v689 = vadd.f32 0.0, %v688
      %v690 = vpop.f32.mrb[0].mxu0
      %v691 = vadd.f32 0.0, %v690
      %692 = vmatprep.mubr.bf16.mxu0 0
      %693 = vmatmul.mubr.bf16.gmra.mrb[0].mxu0 %v582
      %v694 = vpop.f32.mrb[0].mxu0
      %v695 = vadd.f32 0.0, %v694
      %v696 = vpop.f32.mrb[0].mxu0
      %v697 = vadd.f32 0.0, %v696
      %v698 = vpop.f32.mrb[0].mxu0
      %v699 = vadd.f32 0.0, %v698
      %v700 = vpop.f32.mrb[0].mxu0
      %v701 = vadd.f32 0.0, %v700
      %702 = vmatprep.mubr.bf16.mxu0 0
      %703 = vmatmul.mubr.bf16.gmra.mrb[0].mxu0 %v585
      %v704 = vpop.f32.mrb[0].mxu0
      %v705 = vadd.f32 0.0, %v704
      %v706 = vpop.f32.mrb[0].mxu0
      %v707 = vadd.f32 0.0, %v706
      %v708 = vpop.f32.mrb[0].mxu0
      %v709 = vadd.f32 0.0, %v708
      %v710 = vpop.f32.mrb[0].mxu0
      %v711 = vadd.f32 0.0, %v710
      %712 = vmatprep.mubr.bf16.mxu0 0
      %713 = vmatmul.mubr.bf16.gmra.mrb[0].mxu0 %v588
      %v714 = vpop.f32.mrb[0].mxu0
      %v715 = vadd.f32 0.0, %v714
      %v716 = vpop.f32.mrb[0].mxu0
      %v717 = vadd.f32 0.0, %v716
      %v718 = vpop.f32.mrb[0].mxu0
      %v719 = vadd.f32 0.0, %v718
      %v720 = vpop.f32.mrb[0].mxu0
      %v721 = vadd.f32 0.0, %v720
      %722 = vmatprep.mubr.bf16.mxu0 0
      %723 = vmatmul.mubr.bf16.gmra.mrb[0].mxu0 %v591
      %v724 = vpop.f32.mrb[0].mxu0
      %v725 = vadd.f32 0.0, %v724
      %v726 = vpop.f32.mrb[0].mxu0
      %v727 = vadd.f32 0.0, %v726
      %v728 = vpop.f32.mrb[0].mxu0
      %v729 = vadd.f32 0.0, %v728
      %v730 = vpop.f32.mrb[0].mxu0
      %v731 = vadd.f32 0.0, %v730
      %732 = vmatprep.mubr.bf16.mxu0 0
      %733 = vmatmul.mubr.bf16.gmra.mrb[0].mxu0 %v594
      %v734 = vpop.f32.mrb[0].mxu0
      %v735 = vadd.f32 0.0, %v734
      %v736 = vpop.f32.mrb[0].mxu0
      %v737 = vadd.f32 0.0, %v736
      %v738 = vpop.f32.mrb[0].mxu0
      %v739 = vadd.f32 0.0, %v738
      %v740 = vpop.f32.mrb[0].mxu0
      %v741 = vadd.f32 0.0, %v740
      %742 = vmatprep.mubr.bf16.mxu0 0
      %743 = vmatmul.mubr.bf16.gmra.mrb[0].mxu0 %v597
      %v744 = vpop.f32.mrb[0].mxu0
      %v745 = vadd.f32 0.0, %v744
      %v746 = vpop.f32.mrb[0].mxu0
      %v747 = vadd.f32 0.0, %v746
      %v748 = vpop.f32.mrb[0].mxu0
      %v749 = vadd.f32 0.0, %v748
      %v750 = vpop.f32.mrb[0].mxu0
      %v751 = vadd.f32 0.0, %v750
      %752 = vmatprep.mubr.bf16.mxu0 0
      %753 = vmatmul.mubr.bf16.gmra.mrb[0].mxu0 %v600
      %v754 = vpop.f32.mrb[0].mxu0
      %v755 = vadd.f32 0.0, %v754
      %v756 = vpop.f32.mrb[0].mxu0
      %v757 = vadd.f32 0.0, %v756
      %v758 = vpop.f32.mrb[0].mxu0
      %v759 = vadd.f32 0.0, %v758
      %v760 = vpop.f32.mrb[0].mxu0
      %v761 = vadd.f32 0.0, %v760
      %762 = vdwg.mxu0
      %v763 = vld [vmem:[%s4] sm:$0xff]
      %v764 = vld [vmem:[%s4 + $0x8] sm:$0xff]
      %v765 = vld [vmem:[%s4 + $0x10] sm:$0xff]
      %v766 = vld [vmem:[%s4 + $0x18] sm:$0xff]
      %v767 = vld [vmem:[%s4 + $0x20] sm:$0xff]
      %v768 = vld [vmem:[%s4 + $0x28] sm:$0xff]
      %v769 = vld [vmem:[%s4 + $0x30] sm:$0xff]
      %v770 = vld [vmem:[%s4 + $0x38] sm:$0xff]
      %v771 = vld [vmem:[%s4 + $0x40] sm:$0xff]
      %v772 = vld [vmem:[%s4 + $0x48] sm:$0xff]
      %v773 = vld [vmem:[%s4 + $0x50] sm:$0xff]
      %v774 = vld [vmem:[%s4 + $0x58] sm:$0xff]
      %v775 = vld [vmem:[%s4 + $0x60] sm:$0xff]
      %v776 = vld [vmem:[%s4 + $0x68] sm:$0xff]
      %v777 = vld [vmem:[%s4 + $0x70] sm:$0xff]
      %v778 = vld [vmem:[%s4 + $0x78] sm:$0xff]
      %780 = vset.pattern.permute.xlu0 0
      %781 = vperm.xlu0 %780, %v763
      %v782 = vpop.permute.xlu0 %781
      %785 = vset.pattern.permute.xlu0 0
      %786 = vperm.xlu0 %785, %v764
      %v787 = vpop.permute.xlu0 %786
      %790 = vset.pattern.permute.xlu0 0
      %791 = vperm.xlu0 %790, %v765
      %v792 = vpop.permute.xlu0 %791
      %795 = vset.pattern.permute.xlu0 0
      %796 = vperm.xlu0 %795, %v766
      %v797 = vpop.permute.xlu0 %796
      %800 = vset.pattern.permute.xlu0 0
      %801 = vperm.xlu0 %800, %v767
      %v802 = vpop.permute.xlu0 %801
      %805 = vset.pattern.permute.xlu0 0
      %806 = vperm.xlu0 %805, %v768
      %v807 = vpop.permute.xlu0 %806
      %810 = vset.pattern.permute.xlu0 0
      %811 = vperm.xlu0 %810, %v769
      %v812 = vpop.permute.xlu0 %811
      %815 = vset.pattern.permute.xlu0 0
      %816 = vperm.xlu0 %815, %v770
      %v817 = vpop.permute.xlu0 %816
      %820 = vset.pattern.permute.xlu0 0
      %821 = vperm.xlu0 %820, %v771
      %v822 = vpop.permute.xlu0 %821
      %825 = vset.pattern.permute.xlu0 0
      %826 = vperm.xlu0 %825, %v772
      %v827 = vpop.permute.xlu0 %826
      %830 = vset.pattern.permute.xlu0 0
      %831 = vperm.xlu0 %830, %v773
      %v832 = vpop.permute.xlu0 %831
      %835 = vset.pattern.permute.xlu0 0
      %836 = vperm.xlu0 %835, %v774
      %v837 = vpop.permute.xlu0 %836
      %840 = vset.pattern.permute.xlu0 0
      %841 = vperm.xlu0 %840, %v775
      %v842 = vpop.permute.xlu0 %841
      %845 = vset.pattern.permute.xlu0 0
      %846 = vperm.xlu0 %845, %v776
      %v847 = vpop.permute.xlu0 %846
      %850 = vset.pattern.permute.xlu0 0
      %851 = vperm.xlu0 %850, %v777
      %v852 = vpop.permute.xlu0 %851
      %855 = vset.pattern.permute.xlu0 0
      %856 = vperm.xlu0 %855, %v778
      %v857 = vpop.permute.xlu0 %856
      %v859 = vmul.f32 %v685, %v782
      %v860 = vmul.f32 %v687, %v782
      %v861 = vmul.f32 %v689, %v787
      %v862 = vmul.f32 %v691, %v787
      %v863 = vmul.f32 %v695, %v792
      %v864 = vmul.f32 %v697, %v792
      %v865 = vmul.f32 %v699, %v797
      %v866 = vmul.f32 %v701, %v797
      %v867 = vmul.f32 %v705, %v802
      %v868 = vmul.f32 %v707, %v802
      %v869 = vmul.f32 %v709, %v807
      %v870 = vmul.f32 %v711, %v807
      %v871 = vmul.f32 %v715, %v812
      %v872 = vmul.f32 %v717, %v812
      %v873 = vmul.f32 %v719, %v817
      %v874 = vmul.f32 %v721, %v817
      %v875 = vmul.f32 %v725, %v822
      %v876 = vmul.f32 %v727, %v822
      %v877 = vmul.f32 %v729, %v827
      %v878 = vmul.f32 %v731, %v827
      %v879 = vmul.f32 %v735, %v832
      %v880 = vmul.f32 %v737, %v832
      %v881 = vmul.f32 %v739, %v837
      %v882 = vmul.f32 %v741, %v837
      %v883 = vmul.f32 %v745, %v842
      %v884 = vmul.f32 %v747, %v842
      %v885 = vmul.f32 %v749, %v847
      %v886 = vmul.f32 %v751, %v847
      %v887 = vmul.f32 %v755, %v852
      %v888 = vmul.f32 %v757, %v852
      %v889 = vmul.f32 %v759, %v857
      %v890 = vmul.f32 %v761, %v857
      %v891 = vld [vmem:[%s5] sm:$0xff]
      %v892 = vld [vmem:[%s5 + $0x8] sm:$0xff]
      %v893 = vld [vmem:[%s5 + $0x10] sm:$0xff]
      %v894 = vld [vmem:[%s5 + $0x18] sm:$0xff]
      %v895 = vld [vmem:[%s5 + $0x20] sm:$0xff]
      %v896 = vld [vmem:[%s5 + $0x28] sm:$0xff]
      %v897 = vld [vmem:[%s5 + $0x30] sm:$0xff]
      %v898 = vld [vmem:[%s5 + $0x38] sm:$0xff]
      %v899 = vld [vmem:[%s5 + $0x40] sm:$0xff]
      %v900 = vld [vmem:[%s5 + $0x48] sm:$0xff]
      %v901 = vld [vmem:[%s5 + $0x50] sm:$0xff]
      %v902 = vld [vmem:[%s5 + $0x58] sm:$0xff]
      %v903 = vld [vmem:[%s5 + $0x60] sm:$0xff]
      %v904 = vld [vmem:[%s5 + $0x68] sm:$0xff]
      %v905 = vld [vmem:[%s5 + $0x70] sm:$0xff]
      %v906 = vld [vmem:[%s5 + $0x78] sm:$0xff]
      %908 = vset.pattern.permute.xlu0 0
      %909 = vperm.xlu0 %908, %v891
      %v910 = vpop.permute.xlu0 %909
      %913 = vset.pattern.permute.xlu0 0
      %914 = vperm.xlu0 %913, %v892
      %v915 = vpop.permute.xlu0 %914
      %918 = vset.pattern.permute.xlu0 0
      %919 = vperm.xlu0 %918, %v893
      %v920 = vpop.permute.xlu0 %919
      %923 = vset.pattern.permute.xlu0 0
      %924 = vperm.xlu0 %923, %v894
      %v925 = vpop.permute.xlu0 %924
      %928 = vset.pattern.permute.xlu0 0
      %929 = vperm.xlu0 %928, %v895
      %v930 = vpop.permute.xlu0 %929
      %933 = vset.pattern.permute.xlu0 0
      %934 = vperm.xlu0 %933, %v896
      %v935 = vpop.permute.xlu0 %934
      %938 = vset.pattern.permute.xlu0 0
      %939 = vperm.xlu0 %938, %v897
      %v940 = vpop.permute.xlu0 %939
      %943 = vset.pattern.permute.xlu0 0
      %944 = vperm.xlu0 %943, %v898
      %v945 = vpop.permute.xlu0 %944
      %948 = vset.pattern.permute.xlu0 0
      %949 = vperm.xlu0 %948, %v899
      %v950 = vpop.permute.xlu0 %949
      %953 = vset.pattern.permute.xlu0 0
      %954 = vperm.xlu0 %953, %v900
      %v955 = vpop.permute.xlu0 %954
      %958 = vset.pattern.permute.xlu0 0
      %959 = vperm.xlu0 %958, %v901
      %v960 = vpop.permute.xlu0 %959
      %963 = vset.pattern.permute.xlu0 0
      %964 = vperm.xlu0 %963, %v902
      %v965 = vpop.permute.xlu0 %964
      %968 = vset.pattern.permute.xlu0 0
      %969 = vperm.xlu0 %968, %v903
      %v970 = vpop.permute.xlu0 %969
      %973 = vset.pattern.permute.xlu0 0
      %974 = vperm.xlu0 %973, %v904
      %v975 = vpop.permute.xlu0 %974
      %978 = vset.pattern.permute.xlu0 0
      %979 = vperm.xlu0 %978, %v905
      %v980 = vpop.permute.xlu0 %979
      %983 = vset.pattern.permute.xlu0 0
      %984 = vperm.xlu0 %983, %v906
      %v985 = vpop.permute.xlu0 %984
      %v987 = vadd.f32 %v859, %v910
      %v988 = vadd.f32 %v860, %v910
      %v989 = vadd.f32 %v861, %v915
      %v990 = vadd.f32 %v862, %v915
      %v991 = vadd.f32 %v863, %v920
      %v992 = vadd.f32 %v864, %v920
      %v993 = vadd.f32 %v865, %v925
      %v994 = vadd.f32 %v866, %v925
      %v995 = vadd.f32 %v867, %v930
      %v996 = vadd.f32 %v868, %v930
      %v997 = vadd.f32 %v869, %v935
      %v998 = vadd.f32 %v870, %v935
      %v999 = vadd.f32 %v871, %v940
      %v1000 = vadd.f32 %v872, %v940
      %v1001 = vadd.f32 %v873, %v945
      %v1002 = vadd.f32 %v874, %v945
      %v1003 = vadd.f32 %v875, %v950
      %v1004 = vadd.f32 %v876, %v950
      %v1005 = vadd.f32 %v877, %v955
      %v1006 = vadd.f32 %v878, %v955
      %v1007 = vadd.f32 %v879, %v960
      %v1008 = vadd.f32 %v880, %v960
      %v1009 = vadd.f32 %v881, %v965
      %v1010 = vadd.f32 %v882, %v965
      %v1011 = vadd.f32 %v883, %v970
      %v1012 = vadd.f32 %v884, %v970
      %v1013 = vadd.f32 %v885, %v975
      %v1014 = vadd.f32 %v886, %v975
      %v1015 = vadd.f32 %v887, %v980
      %v1016 = vadd.f32 %v888, %v980
      %v1017 = vadd.f32 %v889, %v985
      %v1018 = vadd.f32 %v890, %v985
      %v1019 = vld [vmem:[%s342] sm:$0xff]
      %v1020 = vld [vmem:[%s342 + $0x8] sm:$0xff]
      %v1021 = vld [vmem:[%s342 + $0x10] sm:$0xff]
      %v1022 = vld [vmem:[%s342 + $0x18] sm:$0xff]
      %v1023 = vld [vmem:[%s342 + $0x20] sm:$0xff]
      %v1024 = vld [vmem:[%s342 + $0x28] sm:$0xff]
      %v1025 = vld [vmem:[%s342 + $0x30] sm:$0xff]
      %v1026 = vld [vmem:[%s342 + $0x38] sm:$0xff]
      %v1027 = vld [vmem:[%s342 + $0x40] sm:$0xff]
      %v1028 = vld [vmem:[%s342 + $0x48] sm:$0xff]
      %v1029 = vld [vmem:[%s342 + $0x50] sm:$0xff]
      %v1030 = vld [vmem:[%s342 + $0x58] sm:$0xff]
      %v1031 = vld [vmem:[%s342 + $0x60] sm:$0xff]
      %v1032 = vld [vmem:[%s342 + $0x68] sm:$0xff]
      %v1033 = vld [vmem:[%s342 + $0x70] sm:$0xff]
      %v1034 = vld [vmem:[%s342 + $0x78] sm:$0xff]
      %v1035 = vld [vmem:[%s342 + $0x80] sm:$0xff]
      %v1036 = vld [vmem:[%s342 + $0x88] sm:$0xff]
      %v1037 = vld [vmem:[%s342 + $0x90] sm:$0xff]
      %v1038 = vld [vmem:[%s342 + $0x98] sm:$0xff]
      %v1039 = vld [vmem:[%s342 + $0xa0] sm:$0xff]
      %v1040 = vld [vmem:[%s342 + $0xa8] sm:$0xff]
      %v1041 = vld [vmem:[%s342 + $0xb0] sm:$0xff]
      %v1042 = vld [vmem:[%s342 + $0xb8] sm:$0xff]
      %v1043 = vld [vmem:[%s342 + $0xc0] sm:$0xff]
      %v1044 = vld [vmem:[%s342 + $0xc8] sm:$0xff]
      %v1045 = vld [vmem:[%s342 + $0xd0] sm:$0xff]
      %v1046 = vld [vmem:[%s342 + $0xd8] sm:$0xff]
      %v1047 = vld [vmem:[%s342 + $0xe0] sm:$0xff]
      %v1048 = vld [vmem:[%s342 + $0xe8] sm:$0xff]
      %v1049 = vld [vmem:[%s342 + $0xf0] sm:$0xff]
      %v1050 = vld [vmem:[%s342 + $0xf8] sm:$0xff]
      %v1051 = vadd.f32 %v987, %v1019
      %v1052 = vadd.f32 %v988, %v1020
      %v1053 = vadd.f32 %v989, %v1021
      %v1054 = vadd.f32 %v990, %v1022
      %v1055 = vadd.f32 %v991, %v1023
      %v1056 = vadd.f32 %v992, %v1024
      %v1057 = vadd.f32 %v993, %v1025
      %v1058 = vadd.f32 %v994, %v1026
      %v1059 = vadd.f32 %v995, %v1027
      %v1060 = vadd.f32 %v996, %v1028
      %v1061 = vadd.f32 %v997, %v1029
      %v1062 = vadd.f32 %v998, %v1030
      %v1063 = vadd.f32 %v999, %v1031
      %v1064 = vadd.f32 %v1000, %v1032
      %v1065 = vadd.f32 %v1001, %v1033
      %v1066 = vadd.f32 %v1002, %v1034
      %v1067 = vadd.f32 %v1003, %v1035
      %v1068 = vadd.f32 %v1004, %v1036
      %v1069 = vadd.f32 %v1005, %v1037
      %v1070 = vadd.f32 %v1006, %v1038
      %v1071 = vadd.f32 %v1007, %v1039
      %v1072 = vadd.f32 %v1008, %v1040
      %v1073 = vadd.f32 %v1009, %v1041
      %v1074 = vadd.f32 %v1010, %v1042
      %v1075 = vadd.f32 %v1011, %v1043
      %v1076 = vadd.f32 %v1012, %v1044
      %v1077 = vadd.f32 %v1013, %v1045
      %v1078 = vadd.f32 %v1014, %v1046
      %v1079 = vadd.f32 %v1015, %v1047
      %v1080 = vadd.f32 %v1016, %v1048
      %v1081 = vadd.f32 %v1017, %v1049
      %v1082 = vadd.f32 %v1018, %v1050
      %v1083 = vmax.f32 %v1051, 0.0
      %v1084 = vmax.f32 %v1052, 0.0
      %v1085 = vmax.f32 %v1053, 0.0
      %v1086 = vmax.f32 %v1054, 0.0
      %v1087 = vmax.f32 %v1055, 0.0
      %v1088 = vmax.f32 %v1056, 0.0
      %v1089 = vmax.f32 %v1057, 0.0
      %v1090 = vmax.f32 %v1058, 0.0
      %v1091 = vmax.f32 %v1059, 0.0
      %v1092 = vmax.f32 %v1060, 0.0
      %v1093 = vmax.f32 %v1061, 0.0
      %v1094 = vmax.f32 %v1062, 0.0
      %v1095 = vmax.f32 %v1063, 0.0
      %v1096 = vmax.f32 %v1064, 0.0
      %v1097 = vmax.f32 %v1065, 0.0
      %v1098 = vmax.f32 %v1066, 0.0
      %v1099 = vmax.f32 %v1067, 0.0
      %v1100 = vmax.f32 %v1068, 0.0
      %v1101 = vmax.f32 %v1069, 0.0
      %v1102 = vmax.f32 %v1070, 0.0
      %v1103 = vmax.f32 %v1071, 0.0
      %v1104 = vmax.f32 %v1072, 0.0
      %v1105 = vmax.f32 %v1073, 0.0
      %v1106 = vmax.f32 %v1074, 0.0
      %v1107 = vmax.f32 %v1075, 0.0
      %v1108 = vmax.f32 %v1076, 0.0
      %v1109 = vmax.f32 %v1077, 0.0
      %v1110 = vmax.f32 %v1078, 0.0
      %v1111 = vmax.f32 %v1079, 0.0
      %v1112 = vmax.f32 %v1080, 0.0
      %v1113 = vmax.f32 %v1081, 0.0
      %v1114 = vmax.f32 %v1082, 0.0
      %1115 = vst [vmem:[%s352] sm:$0xff] %v1083
      %1116 = vst [vmem:[%s352 + $0x8] sm:$0xff] %v1084
      %1117 = vst [vmem:[%s352 + $0x10] sm:$0xff] %v1085
      %1118 = vst [vmem:[%s352 + $0x18] sm:$0xff] %v1086
      %1119 = vst [vmem:[%s352 + $0x20] sm:$0xff] %v1087
      %1120 = vst [vmem:[%s352 + $0x28] sm:$0xff] %v1088
      %1121 = vst [vmem:[%s352 + $0x30] sm:$0xff] %v1089
      %1122 = vst [vmem:[%s352 + $0x38] sm:$0xff] %v1090
      %1123 = vst [vmem:[%s352 + $0x40] sm:$0xff] %v1091
      %1124 = vst [vmem:[%s352 + $0x48] sm:$0xff] %v1092
      %1125 = vst [vmem:[%s352 + $0x50] sm:$0xff] %v1093
      %1126 = vst [vmem:[%s352 + $0x58] sm:$0xff] %v1094
      %1127 = vst [vmem:[%s352 + $0x60] sm:$0xff] %v1095
      %1128 = vst [vmem:[%s352 + $0x68] sm:$0xff] %v1096
      %1129 = vst [vmem:[%s352 + $0x70] sm:$0xff] %v1097
      %1130 = vst [vmem:[%s352 + $0x78] sm:$0xff] %v1098
      %1131 = vst [vmem:[%s352 + $0x80] sm:$0xff] %v1099
      %1132 = vst [vmem:[%s352 + $0x88] sm:$0xff] %v1100
      %1133 = vst [vmem:[%s352 + $0x90] sm:$0xff] %v1101
      %1134 = vst [vmem:[%s352 + $0x98] sm:$0xff] %v1102
      %1135 = vst [vmem:[%s352 + $0xa0] sm:$0xff] %v1103
      %1136 = vst [vmem:[%s352 + $0xa8] sm:$0xff] %v1104
      %1137 = vst [vmem:[%s352 + $0xb0] sm:$0xff] %v1105
      %1138 = vst [vmem:[%s352 + $0xb8] sm:$0xff] %v1106
      %1139 = vst [vmem:[%s352 + $0xc0] sm:$0xff] %v1107
      %1140 = vst [vmem:[%s352 + $0xc8] sm:$0xff] %v1108
      %1141 = vst [vmem:[%s352 + $0xd0] sm:$0xff] %v1109
      %1142 = vst [vmem:[%s352 + $0xd8] sm:$0xff] %v1110
      %1143 = vst [vmem:[%s352 + $0xe0] sm:$0xff] %v1111
      %1144 = vst [vmem:[%s352 + $0xe8] sm:$0xff] %v1112
      %1145 = vst [vmem:[%s352 + $0xf0] sm:$0xff] %v1113
      %1146 = vst [vmem:[%s352 + $0xf8] sm:$0xff] %v1114
      %s1147 = smul.u32 2, %s23
      %p1148 = scmp.lt.s32.totalorder %s22, 1
      %s1149 = scalar_select %p1148, %s22, 1
      %p1150 = scmp.lt.s32.totalorder %s1147, 1
      %s1151 = scalar_select %p1150, %s1147, 1
      %s1152 = smul.addr %s1149, 32
      %s1153 = sadd.s32 %s1151, %s1152
      %s1154 = smul.addr %s1153, 8
      %s1155 = scalar_lea.vmem %s7, %s1154
      // Predicated region
      $region49: #{bottleneck_forward_impl.7} parent=47 // pred_check
        %p1156 = pneg %p211
      $region50: #{bottleneck_forward_impl.7} parent=47 // pred_check_branch
        %1158 = sbr.rel (%p1156) target = $region52
      $region51: #{bottleneck_forward_impl.7} parent=47 // pred_region
        %s1159 = smul.u32 2, %s23
      $region52: #{bottleneck_forward_impl.7} parent=47 // pred_fallthru
        _
    $region48: #{bottleneck_forward_impl.7} parent=5 // pred_fallthru
      _
    %p1160 = scmp.le.s32.totalorder 2, %s13
    // Predicated region
    $region53: #{bottleneck_forward_impl.7} parent=5 // pred_check
      %p1161 = pneg %p1160
    $region54: #{bottleneck_forward_impl.7} parent=5 // pred_check_branch
      %1163 = sbr.rel (%p1161) target = $region56
    $region55: #{bottleneck_forward_impl.7} parent=5 // pred_region
      %s1164 = ssub.s32 %s13, 2
      // Predicated region
      $region57: #{bottleneck_forward_impl.7} parent=55 // pred_check
        %p1165 = pneg %p217
      $region58: #{bottleneck_forward_impl.7} parent=55 // pred_check_branch
        %1167 = sbr.rel (%p1165) target = $region60
      $region59: #{bottleneck_forward_impl.7} parent=55 // pred_region
        %s1168 = smul.u32 2, %s25
        %p1169 = scmp.lt.s32.totalorder %s24, 1
        %s1170 = scalar_select %p1169, %s24, 1
        %p1171 = scmp.lt.s32.totalorder %s1168, 1
        %s1172 = scalar_select %p1171, %s1168, 1
        %s1173 = smul.addr %s1170, 32
        %s1174 = sadd.s32 %s1172, %s1173
        %s1175 = smul.addr %s1174, 8
        %s1176 = scalar_lea.vmem %s7, %s1175
      $region60: #{bottleneck_forward_impl.7} parent=55 // pred_fallthru
        _
    $region56: #{bottleneck_forward_impl.7} parent=5 // pred_fallthru
      _
  $region6: #{bottleneck_forward_impl.7} parent=0 // loop_footer
    %s17 = sadd.s32 1, %s13
  $region7: #{bottleneck_forward_impl.7} parent=0 // loop_footer_branch
    %12 = sbr.rel target = $region3
  $region8: #{bottleneck_forward_impl.7} parent=0 // loop_exit
    _

// kernel: bottleneck_forward_impl.5
$region0: #{bottleneck_forward_impl.5}
  #allocation0 [shape = 'u32[]', space=smem, size = 0x4, offset = 0x4, fixed_abs, tag = 'smem constant byte address 0x4 - core index']
  #allocation1 [shape = 'u32[144,128]{1,0:T(1,128)}', space=vmem, size = 0x12000, scoped, tag = 'internal scratch']
  %s0 = inlined_call_operand.vmem [shape: bf16[2,16,16,32], index: 0, kind: input, shape index: {}]
  %s1 = inlined_call_operand.vmem [shape: f32[1,32], index: 1, kind: input, shape index: {}]
  %s2 = inlined_call_operand.vmem [shape: f32[1,32], index: 2, kind: input, shape index: {}]
  %s3 = inlined_call_operand.vmem [shape: bf16[3,96,32], index: 3, kind: input, shape index: {}]
  %s4 = inlined_call_operand.vmem [shape: bf16[2,256,32], index: 4, kind: output, shape index: {0}]
  %s5 = inlined_call_operand.vmem [shape: f32[2,2,32], index: 5, kind: output, shape index: {1}]
  %6 = xla_tuple %s4, %s5
  %s7 = sld [smem:[#allocation0]]
  $region57: #{bottleneck_forward_impl.5} parent=0
    _
  %s9 = ssub.s32 1, %s7
  %s10 = scalar_select 0, %s9, %s7
  loop: start=0, step=1, limit=4
  $region2: #{bottleneck_forward_impl.5} parent=0 // loop_pre_header
    _
  $region3: #{bottleneck_forward_impl.5} parent=0 // loop_header
    %s12 = sphi 0, %s16
    %p13 = scmp.ge.s32.totalorder %s12, 4
    %s22 = sphi 0, %s24
    %s25 = sphi 0, %s22
    %s26 = sphi 0, %s25
    %s42 = sphi 0, %s26
    %s46 = sphi 0, %s46
    %s48 = sphi 0, %s46
    %s49 = sphi 0, %s48
    %s63 = sphi 0, %s49
    %s67 = sphi 0, %s67
    %s69 = sphi 0, %s67
    %s70 = sphi 0, %s69
    %s84 = sphi 0, %s70
    %s88 = sphi 0, %s88
    %s90 = sphi 0, %s88
    %s91 = sphi 0, %s90
    %s105 = sphi 0, %s91
    %s111 = sphi 0, %s113
    %s114 = sphi 0, %s111
    %s115 = sphi 0, %s114
    %s131 = sphi 0, %s115
    %s137 = sphi 0, %s139
    %s140 = sphi 0, %s137
    %s141 = sphi 0, %s140
    %s157 = sphi 0, %s141
  $region4: #{bottleneck_forward_impl.5} parent=0 // loop_header_branch
    %15 = sbr.rel (%p13) target = $region8
  $region5: #{bottleneck_forward_impl.5} parent=0 // loop_body
    %s17 = ssub.s32 %s12, 1
    %s18 = ssub.s32 %s12, 2
    %s19 = sadd.s32 %s12, 1
    %s20 = ssub.s32 %s12, %s19
    %p21 = scmp.eq.s32.totalorder %s20, 0
    %s23 = sadd.s32 %s22, 1
    %s24 = scalar_select %p21, %s22, %s23
    %p27 = pneg %p21
    %p28 = scmp.eq.s32.totalorder %s12, 1
    %p29 = por %p27, %p28
    %p30 = scmp.ne.s32.totalorder %s22, %s25
    %p31 = scmp.eq.s32.totalorder %s12, 0
    %p32 = por %p30, %p31
    %p33 = scmp.ne.s32.totalorder %s22, %s25
    %p34 = scmp.eq.s32.totalorder %s17, 1
    %p35 = por %p33, %p34
    %p36 = scmp.ne.s32.totalorder %s25, %s26
    %p37 = scmp.eq.s32.totalorder %s17, 0
    %p38 = por %p36, %p37
    %p39 = scmp.ne.s32.totalorder %s25, %s26
    %p40 = scmp.eq.s32.totalorder %s18, 1
    %p41 = por %p39, %p40
    %p43 = scmp.ne.s32.totalorder %s26, %s42
    %p44 = scmp.eq.s32.totalorder %s18, 0
    %p45 = por %p43, %p44
    %s47 = sadd.s32 %s46, 1
    %p50 = scmp.eq.s32.totalorder %s12, 1
    %p51 = scmp.ne.s32.totalorder %s46, %s48
    %p52 = scmp.eq.s32.totalorder %s12, 0
    %p53 = por %p51, %p52
    %p54 = scmp.ne.s32.totalorder %s46, %s48
    %p55 = scmp.eq.s32.totalorder %s17, 1
    %p56 = por %p54, %p55
    %p57 = scmp.ne.s32.totalorder %s48, %s49
    %p58 = scmp.eq.s32.totalorder %s17, 0
    %p59 = por %p57, %p58
    %p60 = scmp.ne.s32.totalorder %s48, %s49
    %p61 = scmp.eq.s32.totalorder %s18, 1
    %p62 = por %p60, %p61
    %p64 = scmp.ne.s32.totalorder %s49, %s63
    %p65 = scmp.eq.s32.totalorder %s18, 0
    %p66 = por %p64, %p65
    %s68 = sadd.s32 %s67, 1
    %p71 = scmp.eq.s32.totalorder %s12, 1
    %p72 = scmp.ne.s32.totalorder %s67, %s69
    %p73 = scmp.eq.s32.totalorder %s12, 0
    %p74 = por %p72, %p73
    %p75 = scmp.ne.s32.totalorder %s67, %s69
    %p76 = scmp.eq.s32.totalorder %s17, 1
    %p77 = por %p75, %p76
    %p78 = scmp.ne.s32.totalorder %s69, %s70
    %p79 = scmp.eq.s32.totalorder %s17, 0
    %p80 = por %p78, %p79
    %p81 = scmp.ne.s32.totalorder %s69, %s70
    %p82 = scmp.eq.s32.totalorder %s18, 1
    %p83 = por %p81, %p82
    %p85 = scmp.ne.s32.totalorder %s70, %s84
    %p86 = scmp.eq.s32.totalorder %s18, 0
    %p87 = por %p85, %p86
    %s89 = sadd.s32 %s88, 1
    %p92 = scmp.eq.s32.totalorder %s12, 1
    %p93 = scmp.ne.s32.totalorder %s88, %s90
    %p94 = scmp.eq.s32.totalorder %s12, 0
    %p95 = por %p93, %p94
    %p96 = scmp.ne.s32.totalorder %s88, %s90
    %p97 = scmp.eq.s32.totalorder %s17, 1
    %p98 = por %p96, %p97
    %p99 = scmp.ne.s32.totalorder %s90, %s91
    %p100 = scmp.eq.s32.totalorder %s17, 0
    %p101 = por %p99, %p100
    %p102 = scmp.ne.s32.totalorder %s90, %s91
    %p103 = scmp.eq.s32.totalorder %s18, 1
    %p104 = por %p102, %p103
    %p106 = scmp.ne.s32.totalorder %s91, %s105
    %p107 = scmp.eq.s32.totalorder %s18, 0
    %p108 = por %p106, %p107
    %s109 = ssub.s32 %s12, %s19
    %p110 = scmp.eq.s32.totalorder %s109, 0
    %s112 = sadd.s32 %s111, 1
    %s113 = scalar_select %p110, %s111, %s112
    %p116 = pneg %p110
    %p117 = scmp.eq.s32.totalorder %s12, 1
    %p118 = por %p116, %p117
    %p119 = scmp.ne.s32.totalorder %s111, %s114
    %p120 = scmp.eq.s32.totalorder %s12, 0
    %p121 = por %p119, %p120
    %p122 = scmp.ne.s32.totalorder %s111, %s114
    %p123 = scmp.eq.s32.totalorder %s17, 1
    %p124 = por %p122, %p123
    %p125 = scmp.ne.s32.totalorder %s114, %s115
    %p126 = scmp.eq.s32.totalorder %s17, 0
    %p127 = por %p125, %p126
    %p128 = scmp.ne.s32.totalorder %s114, %s115
    %p129 = scmp.eq.s32.totalorder %s18, 1
    %p130 = por %p128, %p129
    %p132 = scmp.ne.s32.totalorder %s115, %s131
    %p133 = scmp.eq.s32.totalorder %s18, 0
    %p134 = por %p132, %p133
    %s135 = ssub.s32 %s12, %s19
    %p136 = scmp.eq.s32.totalorder %s135, 0
    %s138 = sadd.s32 %s137, 1
    %s139 = scalar_select %p136, %s137, %s138
    %p142 = pneg %p136
    %p143 = scmp.eq.s32.totalorder %s12, 1
    %p144 = por %p142, %p143
    %p145 = scmp.ne.s32.totalorder %s137, %s140
    %p146 = scmp.eq.s32.totalorder %s12, 0
    %p147 = por %p145, %p146
    %p148 = scmp.ne.s32.totalorder %s137, %s140
    %p149 = scmp.eq.s32.totalorder %s17, 1
    %p150 = por %p148, %p149
    %p151 = scmp.ne.s32.totalorder %s140, %s141
    %p152 = scmp.eq.s32.totalorder %s17, 0
    %p153 = por %p151, %p152
    %p154 = scmp.ne.s32.totalorder %s140, %s141
    %p155 = scmp.eq.s32.totalorder %s18, 1
    %p156 = por %p154, %p155
    %p158 = scmp.ne.s32.totalorder %s141, %s157
    %p159 = scmp.eq.s32.totalorder %s18, 0
    %p160 = por %p158, %p159
    %p161 = scmp.le.s32.totalorder 1, %s12
    %p162 = scmp.lt.s32.totalorder %s12, 3
    %p163 = pnand %p161, %p162
    %p164 = pneg %p163
    // Predicated region
    $region9: #{bottleneck_forward_impl.5} parent=5 // pred_check
      _
    $region10: #{bottleneck_forward_impl.5} parent=5 // pred_check_branch
      %166 = sbr.rel (%p163) target = $region12
    $region11: #{bottleneck_forward_impl.5} parent=5 // pred_region
      %s167 = ssub.s32 %s12, 1
      // Predicated region
      $region13: #{bottleneck_forward_impl.5} parent=11 // pred_check
        %p168 = pneg %p59
      $region14: #{bottleneck_forward_impl.5} parent=11 // pred_check_branch
        %170 = sbr.rel (%p168) target = $region16
      $region15: #{bottleneck_forward_impl.5} parent=11 // pred_region
        _
      $region16: #{bottleneck_forward_impl.5} parent=11 // pred_fallthru
        _
      // Predicated region
      $region17: #{bottleneck_forward_impl.5} parent=11 // pred_check
        %p171 = pneg %p80
      $region18: #{bottleneck_forward_impl.5} parent=11 // pred_check_branch
        %173 = sbr.rel (%p171) target = $region20
      $region19: #{bottleneck_forward_impl.5} parent=11 // pred_region
        _
      $region20: #{bottleneck_forward_impl.5} parent=11 // pred_fallthru
        _
      // Predicated region
      $region21: #{bottleneck_forward_impl.5} parent=11 // pred_check
        %p174 = pneg %p101
      $region22: #{bottleneck_forward_impl.5} parent=11 // pred_check_branch
        %176 = sbr.rel (%p174) target = $region24
      $region23: #{bottleneck_forward_impl.5} parent=11 // pred_region
        _
      $region24: #{bottleneck_forward_impl.5} parent=11 // pred_fallthru
        _
    $region12: #{bottleneck_forward_impl.5} parent=5 // pred_fallthru
      _
    %p177 = scmp.lt.s32.totalorder %s12, 2
    // Predicated region
    $region25: #{bottleneck_forward_impl.5} parent=5 // pred_check
      %p178 = pneg %p177
    $region26: #{bottleneck_forward_impl.5} parent=5 // pred_check_branch
      %180 = sbr.rel (%p178) target = $region28
    $region27: #{bottleneck_forward_impl.5} parent=5 // pred_region
      // Predicated region
      $region29: #{bottleneck_forward_impl.5} parent=27 // pred_check
        %p181 = pneg %p32
      $region30: #{bottleneck_forward_impl.5} parent=27 // pred_check_branch
        %183 = sbr.rel (%p181) target = $region32
      $region31: #{bottleneck_forward_impl.5} parent=27 // pred_region
        %p184 = scmp.lt.s32.totalorder %s12, 1
        %s185 = scalar_select %p184, %s12, 1
        %s186 = smul.addr %s185, 32
        %s187 = smul.addr %s186, 4
        %s188 = scalar_lea.vmem %s0, %s187
      $region32: #{bottleneck_forward_impl.5} parent=27 // pred_fallthru
        _
    $region28: #{bottleneck_forward_impl.5} parent=5 // pred_fallthru
      _
    %p189 = scmp.le.s32.totalorder 1, %s12
    %p190 = scmp.lt.s32.totalorder %s12, 3
    %p191 = pnand %p189, %p190
    %p192 = pneg %p191
    // Predicated region
    $region33: #{bottleneck_forward_impl.5} parent=5 // pred_check
      _
    $region34: #{bottleneck_forward_impl.5} parent=5 // pred_check_branch
      %194 = sbr.rel (%p191) target = $region36
    $region35: #{bottleneck_forward_impl.5} parent=5 // pred_region
      %s195 = ssub.s32 %s12, 1
      %p196 = scmp.lt.s32.totalorder %s17, 1
      %s197 = scalar_select %p196, %s17, 1
      %s198 = smul.addr %s197, 32
      %s199 = smul.addr %s198, 4
      %s200 = scalar_lea.vmem %s0, %s199
      %p201 = pneg %p38
      %p202 = pneg %p35
      %p203 = pneg %p59
      %p204 = pneg %p56
      %p205 = pneg %p80
      %p206 = pneg %p77
      %p207 = pneg %p101
      %p208 = pneg %p98
      %p209 = pneg %p127
      %p210 = pneg %p124
      %p211 = scmp.lt.s32.totalorder %s17, 1
      %s212 = scalar_select %p211, %s17, 1
      %s213 = smul.addr %s212, 32
      %s214 = smul.addr %s213, 4
      %s215 = scalar_lea.vmem %s4, %s214
      %p216 = pneg %p153
      %p217 = pneg %p150
      %p218 = scmp.lt.s32.totalorder %s17, 1
      %s219 = scalar_select %p218, %s17, 1
      %s220 = smul.addr %s219, 2
      %s221 = scalar_lea.vmem %s5, %s220
      %p222 = scmp.lt.s32.totalorder %s17, 1
      %s223 = scalar_select %p222, %s17, 1
      %s224 = smul.addr %s223, 32
      %s225 = smul.addr %s224, 4
      %s226 = scalar_lea.vmem %s0, %s225
      %p227 = scmp.lt.s32.totalorder %s17, 1
      %s228 = scalar_select %p227, %s17, 1
      %s229 = smul.addr %s228, 32
      %s230 = smul.addr %s229, 4
      %s231 = scalar_lea.vmem %s4, %s230
      %p232 = scmp.lt.s32.totalorder %s17, 1
      %s233 = scalar_select %p232, %s17, 1
      %s234 = smul.addr %s233, 2
      %s235 = scalar_lea.vmem %s5, %s234
      %v237 = vld [vmem:[%s226] sm:$0xf]
      %v238 = vld [vmem:[%s226 + $0x4] sm:$0xf]
      %v239 = vld [vmem:[%s226 + $0x8] sm:$0xf]
      %v240 = vld [vmem:[%s226 + $0xc] sm:$0xf]
      %v241 = vld [vmem:[%s226 + $0x10] sm:$0xf]
      %v242 = vld [vmem:[%s226 + $0x14] sm:$0xf]
      %v243 = vld [vmem:[%s226 + $0x18] sm:$0xf]
      %v244 = vld [vmem:[%s226 + $0x1c] sm:$0xf]
      %v245 = vld [vmem:[%s226 + $0x20] sm:$0xf]
      %v246 = vld [vmem:[%s226 + $0x24] sm:$0xf]
      %v247 = vld [vmem:[%s226 + $0x28] sm:$0xf]
      %v248 = vld [vmem:[%s226 + $0x2c] sm:$0xf]
      %v249 = vld [vmem:[%s226 + $0x30] sm:$0xf]
      %v250 = vld [vmem:[%s226 + $0x34] sm:$0xf]
      %v251 = vld [vmem:[%s226 + $0x38] sm:$0xf]
      %v252 = vld [vmem:[%s226 + $0x3c] sm:$0xf]
      %v253 = vld [vmem:[%s226 + $0x40] sm:$0xf]
      %v254 = vld [vmem:[%s226 + $0x44] sm:$0xf]
      %v255 = vld [vmem:[%s226 + $0x48] sm:$0xf]
      %v256 = vld [vmem:[%s226 + $0x4c] sm:$0xf]
      %v257 = vld [vmem:[%s226 + $0x50] sm:$0xf]
      %v258 = vld [vmem:[%s226 + $0x54] sm:$0xf]
      %v259 = vld [vmem:[%s226 + $0x58] sm:$0xf]
      %v260 = vld [vmem:[%s226 + $0x5c] sm:$0xf]
      %v261 = vld [vmem:[%s226 + $0x60] sm:$0xf]
      %v262 = vld [vmem:[%s226 + $0x64] sm:$0xf]
      %v263 = vld [vmem:[%s226 + $0x68] sm:$0xf]
      %v264 = vld [vmem:[%s226 + $0x6c] sm:$0xf]
      %v265 = vld [vmem:[%s226 + $0x70] sm:$0xf]
      %v266 = vld [vmem:[%s226 + $0x74] sm:$0xf]
      %v267 = vld [vmem:[%s226 + $0x78] sm:$0xf]
      %v268 = vld [vmem:[%s226 + $0x7c] sm:$0xf]
      %v269 = vunpack.c.l.bf16 %v237
      %v270 = vunpack.c.l.bf16 %v238
      %v271 = vunpack.c.l.bf16 %v239
      %v272 = vunpack.c.l.bf16 %v240
      %v273 = vunpack.c.l.bf16 %v241
      %v274 = vunpack.c.l.bf16 %v242
      %v275 = vunpack.c.l.bf16 %v243
      %v276 = vunpack.c.l.bf16 %v244
      %v277 = vunpack.c.l.bf16 %v245
      %v278 = vunpack.c.l.bf16 %v246
      %v279 = vunpack.c.l.bf16 %v247
      %v280 = vunpack.c.l.bf16 %v248
      %v281 = vunpack.c.l.bf16 %v249
      %v282 = vunpack.c.l.bf16 %v250
      %v283 = vunpack.c.l.bf16 %v251
      %v284 = vunpack.c.l.bf16 %v252
      %v285 = vunpack.c.l.bf16 %v253
      %v286 = vunpack.c.l.bf16 %v254
      %v287 = vunpack.c.l.bf16 %v255
      %v288 = vunpack.c.l.bf16 %v256
      %v289 = vunpack.c.l.bf16 %v257
      %v290 = vunpack.c.l.bf16 %v258
      %v291 = vunpack.c.l.bf16 %v259
      %v292 = vunpack.c.l.bf16 %v260
      %v293 = vunpack.c.l.bf16 %v261
      %v294 = vunpack.c.l.bf16 %v262
      %v295 = vunpack.c.l.bf16 %v263
      %v296 = vunpack.c.l.bf16 %v264
      %v297 = vunpack.c.l.bf16 %v265
      %v298 = vunpack.c.l.bf16 %v266
      %v299 = vunpack.c.l.bf16 %v267
      %v300 = vunpack.c.l.bf16 %v268
      %v301 = vld [vmem:[%s1] sm:$0x1]
      %v303 = vlaneseq
      %v304 = vshrl.u32 %v303, 7
      %v305 = vsub.s32 0, %v304
      %v306 = vrot.slane %v301, %v305
      %v308 = vmul.f32 %v269, %v306
      %v309 = vmul.f32 %v270, %v306
      %v310 = vmul.f32 %v271, %v306
      %v311 = vmul.f32 %v272, %v306
      %v312 = vmul.f32 %v273, %v306
      %v313 = vmul.f32 %v274, %v306
      %v314 = vmul.f32 %v275, %v306
      %v315 = vmul.f32 %v276, %v306
      %v316 = vmul.f32 %v277, %v306
      %v317 = vmul.f32 %v278, %v306
      %v318 = vmul.f32 %v279, %v306
      %v319 = vmul.f32 %v280, %v306
      %v320 = vmul.f32 %v281, %v306
      %v321 = vmul.f32 %v282, %v306
      %v322 = vmul.f32 %v283, %v306
      %v323 = vmul.f32 %v284, %v306
      %v324 = vmul.f32 %v285, %v306
      %v325 = vmul.f32 %v286, %v306
      %v326 = vmul.f32 %v287, %v306
      %v327 = vmul.f32 %v288, %v306
      %v328 = vmul.f32 %v289, %v306
      %v329 = vmul.f32 %v290, %v306
      %v330 = vmul.f32 %v291, %v306
      %v331 = vmul.f32 %v292, %v306
      %v332 = vmul.f32 %v293, %v306
      %v333 = vmul.f32 %v294, %v306
      %v334 = vmul.f32 %v295, %v306
      %v335 = vmul.f32 %v296, %v306
      %v336 = vmul.f32 %v297, %v306
      %v337 = vmul.f32 %v298, %v306
      %v338 = vmul.f32 %v299, %v306
      %v339 = vmul.f32 %v300, %v306
      %v340 = vld [vmem:[%s2] sm:$0x1]
      %v342 = vlaneseq
      %v343 = vshrl.u32 %v342, 7
      %v344 = vsub.s32 0, %v343
      %v345 = vrot.slane %v340, %v344
      %v347 = vadd.f32 %v308, %v345
      %v348 = vadd.f32 %v309, %v345
      %v349 = vadd.f32 %v310, %v345
      %v350 = vadd.f32 %v311, %v345
      %v351 = vadd.f32 %v312, %v345
      %v352 = vadd.f32 %v313, %v345
      %v353 = vadd.f32 %v314, %v345
      %v354 = vadd.f32 %v315, %v345
      %v355 = vadd.f32 %v316, %v345
      %v356 = vadd.f32 %v317, %v345
      %v357 = vadd.f32 %v318, %v345
      %v358 = vadd.f32 %v319, %v345
      %v359 = vadd.f32 %v320, %v345
      %v360 = vadd.f32 %v321, %v345
      %v361 = vadd.f32 %v322, %v345
      %v362 = vadd.f32 %v323, %v345
      %v363 = vadd.f32 %v324, %v345
      %v364 = vadd.f32 %v325, %v345
      %v365 = vadd.f32 %v326, %v345
      %v366 = vadd.f32 %v327, %v345
      %v367 = vadd.f32 %v328, %v345
      %v368 = vadd.f32 %v329, %v345
      %v369 = vadd.f32 %v330, %v345
      %v370 = vadd.f32 %v331, %v345
      %v371 = vadd.f32 %v332, %v345
      %v372 = vadd.f32 %v333, %v345
      %v373 = vadd.f32 %v334, %v345
      %v374 = vadd.f32 %v335, %v345
      %v375 = vadd.f32 %v336, %v345
      %v376 = vadd.f32 %v337, %v345
      %v377 = vadd.f32 %v338, %v345
      %v378 = vadd.f32 %v339, %v345
      %v379 = vmax.f32 %v347, 0.0
      %v380 = vmax.f32 %v348, 0.0
      %v381 = vmax.f32 %v349, 0.0
      %v382 = vmax.f32 %v350, 0.0
      %v383 = vmax.f32 %v351, 0.0
      %v384 = vmax.f32 %v352, 0.0
      %v385 = vmax.f32 %v353, 0.0
      %v386 = vmax.f32 %v354, 0.0
      %v387 = vmax.f32 %v355, 0.0
      %v388 = vmax.f32 %v356, 0.0
      %v389 = vmax.f32 %v357, 0.0
      %v390 = vmax.f32 %v358, 0.0
      %v391 = vmax.f32 %v359, 0.0
      %v392 = vmax.f32 %v360, 0.0
      %v393 = vmax.f32 %v361, 0.0
      %v394 = vmax.f32 %v362, 0.0
      %v395 = vmax.f32 %v363, 0.0
      %v396 = vmax.f32 %v364, 0.0
      %v397 = vmax.f32 %v365, 0.0
      %v398 = vmax.f32 %v366, 0.0
      %v399 = vmax.f32 %v367, 0.0
      %v400 = vmax.f32 %v368, 0.0
      %v401 = vmax.f32 %v369, 0.0
      %v402 = vmax.f32 %v370, 0.0
      %v403 = vmax.f32 %v371, 0.0
      %v404 = vmax.f32 %v372, 0.0
      %v405 = vmax.f32 %v373, 0.0
      %v406 = vmax.f32 %v374, 0.0
      %v407 = vmax.f32 %v375, 0.0
      %v408 = vmax.f32 %v376, 0.0
      %v409 = vmax.f32 %v377, 0.0
      %v410 = vmax.f32 %v378, 0.0
      %v411 = vpack.c.bf16 %v380, %v379
      %v412 = vpack.c.bf16 %v382, %v381
      %v413 = vpack.c.bf16 %v384, %v383
      %v414 = vpack.c.bf16 %v386, %v385
      %v415 = vpack.c.bf16 %v388, %v387
      %v416 = vpack.c.bf16 %v390, %v389
      %v417 = vpack.c.bf16 %v392, %v391
      %v418 = vpack.c.bf16 %v394, %v393
      %v419 = vpack.c.bf16 %v396, %v395
      %v420 = vpack.c.bf16 %v398, %v397
      %v421 = vpack.c.bf16 %v400, %v399
      %v422 = vpack.c.bf16 %v402, %v401
      %v423 = vpack.c.bf16 %v404, %v403
      %v424 = vpack.c.bf16 %v406, %v405
      %v425 = vpack.c.bf16 %v408, %v407
      %v426 = vpack.c.bf16 %v410, %v409
      %v428 = vshrl.u32 %v411, 16
      %v430 = vrot.slane %v428, 7
      %v431 = vshll.u32 %v411, 16
      %v433 = vor.u32 %v430, %v431
      %v435 = vshrl.u32 %v412, 16
      %v437 = vrot.slane %v435, 7
      %v438 = vshll.u32 %v412, 16
      %v440 = vor.u32 %v437, %v438
      %v442 = vshrl.u32 %v413, 16
      %v444 = vrot.slane %v442, 7
      %v445 = vshll.u32 %v413, 16
      %v447 = vor.u32 %v444, %v445
      %v449 = vshrl.u32 %v414, 16
      %v451 = vrot.slane %v449, 7
      %v452 = vshll.u32 %v414, 16
      %v454 = vor.u32 %v451, %v452
      %v456 = vshrl.u32 %v415, 16
      %v458 = vrot.slane %v456, 7
      %v459 = vshll.u32 %v415, 16
      %v461 = vor.u32 %v458, %v459
      %v463 = vshrl.u32 %v416, 16
      %v465 = vrot.slane %v463, 7
      %v466 = vshll.u32 %v416, 16
      %v468 = vor.u32 %v465, %v466
      %v470 = vshrl.u32 %v417, 16
      %v472 = vrot.slane %v470, 7
      %v473 = vshll.u32 %v417, 16
      %v475 = vor.u32 %v472, %v473
      %v477 = vshrl.u32 %v418, 16
      %v479 = vrot.slane %v477, 7
      %v480 = vshll.u32 %v418, 16
      %v482 = vor.u32 %v479, %v480
      %v484 = vshrl.u32 %v419, 16
      %v486 = vrot.slane %v484, 7
      %v487 = vshll.u32 %v419, 16
      %v489 = vor.u32 %v486, %v487
      %v491 = vshrl.u32 %v420, 16
      %v493 = vrot.slane %v491, 7
      %v494 = vshll.u32 %v420, 16
      %v496 = vor.u32 %v493, %v494
      %v498 = vshrl.u32 %v421, 16
      %v500 = vrot.slane %v498, 7
      %v501 = vshll.u32 %v421, 16
      %v503 = vor.u32 %v500, %v501
      %v505 = vshrl.u32 %v422, 16
      %v507 = vrot.slane %v505, 7
      %v508 = vshll.u32 %v422, 16
      %v510 = vor.u32 %v507, %v508
      %v512 = vshrl.u32 %v423, 16
      %v514 = vrot.slane %v512, 7
      %v515 = vshll.u32 %v423, 16
      %v517 = vor.u32 %v514, %v515
      %v519 = vshrl.u32 %v424, 16
      %v521 = vrot.slane %v519, 7
      %v522 = vshll.u32 %v424, 16
      %v524 = vor.u32 %v521, %v522
      %v526 = vshrl.u32 %v425, 16
      %v528 = vrot.slane %v526, 7
      %v529 = vshll.u32 %v425, 16
      %v531 = vor.u32 %v528, %v529
      %v533 = vshrl.u32 %v426, 16
      %v535 = vrot.slane %v533, 7
      %v536 = vshll.u32 %v426, 16
      %v538 = vor.u32 %v535, %v536
      %vm555 = vcmask 1040384
      %vm556 = vsmask.f32 256
      %vm557 = vmand %vm555, %vm556
      %v558 = vsel %vm557, 0, %v433
      %v559 = vsel %vm557, 0, %v440
      %v560 = vsel %vm557, 0, %v447
      %v561 = vsel %vm557, 0, %v454
      %v562 = vsel %vm557, 0, %v461
      %v563 = vsel %vm557, 0, %v468
      %v564 = vsel %vm557, 0, %v475
      %v565 = vsel %vm557, 0, %v482
      %v566 = vsel %vm557, 0, %v489
      %v567 = vsel %vm557, 0, %v496
      %v568 = vsel %vm557, 0, %v503
      %v569 = vsel %vm557, 0, %v510
      %v570 = vsel %vm557, 0, %v517
      %v571 = vsel %vm557, 0, %v524
      %v572 = vsel %vm557, 0, %v531
      %v573 = vsel %vm557, 0, %v538
      %v574 = vrot.slane %v431, 1
      %v575 = vor.u32 %v428, %v574
      %v576 = vrot.slane %v438, 1
      %v577 = vor.u32 %v435, %v576
      %v578 = vrot.slane %v445, 1
      %v579 = vor.u32 %v442, %v578
      %v580 = vrot.slane %v452, 1
      %v581 = vor.u32 %v449, %v580
      %v582 = vrot.slane %v459, 1
      %v583 = vor.u32 %v456, %v582
      %v584 = vrot.slane %v466, 1
      %v585 = vor.u32 %v463, %v584
      %v586 = vrot.slane %v473, 1
      %v587 = vor.u32 %v470, %v586
      %v588 = vrot.slane %v480, 1
      %v589 = vor.u32 %v477, %v588
      %v590 = vrot.slane %v487, 1
      %v591 = vor.u32 %v484, %v590
      %v592 = vrot.slane %v494, 1
      %v593 = vor.u32 %v491, %v592
      %v594 = vrot.slane %v501, 1
      %v595 = vor.u32 %v498, %v594
      %v596 = vrot.slane %v508, 1
      %v597 = vor.u32 %v505, %v596
      %v598 = vrot.slane %v515, 1
      %v599 = vor.u32 %v512, %v598
      %v600 = vrot.slane %v522, 1
      %v601 = vor.u32 %v519, %v600
      %v602 = vrot.slane %v529, 1
      %v603 = vor.u32 %v526, %v602
      %v604 = vrot.slane %v536, 1
      %v605 = vor.u32 %v533, %v604
      %vm622 = vcmask 1047552
      %vm623 = vsmask.f32 7424
      %vm624 = vmand %vm622, %vm623
      %v625 = vsel %vm624, %v575, 0
      %v626 = vsel %vm624, %v577, 0
      %v627 = vsel %vm624, %v579, 0
      %v628 = vsel %vm624, %v581, 0
      %v629 = vsel %vm624, %v583, 0
      %v630 = vsel %vm624, %v585, 0
      %v631 = vsel %vm624, %v587, 0
      %v632 = vsel %vm624, %v589, 0
      %v633 = vsel %vm624, %v591, 0
      %v634 = vsel %vm624, %v593, 0
      %v635 = vsel %vm624, %v595, 0
      %v636 = vsel %vm624, %v597, 0
      %v637 = vsel %vm624, %v599, 0
      %v638 = vsel %vm624, %v601, 0
      %v639 = vsel %vm624, %v603, 0
      %v640 = vsel %vm624, %v605, 0
      %657 = vrot.lane.b32.xlu0 %v411, 32
      %v658 = vpop.permute.xlu0 %657
      %659 = vrot.lane.b32.xlu0 %v412, 32
      %v660 = vpop.permute.xlu0 %659
      %661 = vrot.lane.b32.xlu0 %v413, 32
      %v662 = vpop.permute.xlu0 %661
      %663 = vrot.lane.b32.xlu0 %v414, 32
      %v664 = vpop.permute.xlu0 %663
      %665 = vrot.lane.b32.xlu0 %v415, 32
      %v666 = vpop.permute.xlu0 %665
      %667 = vrot.lane.b32.xlu0 %v416, 32
      %v668 = vpop.permute.xlu0 %667
      %669 = vrot.lane.b32.xlu0 %v417, 32
      %v670 = vpop.permute.xlu0 %669
      %671 = vrot.lane.b32.xlu0 %v418, 32
      %v672 = vpop.permute.xlu0 %671
      %673 = vrot.lane.b32.xlu0 %v419, 32
      %v674 = vpop.permute.xlu0 %673
      %675 = vrot.lane.b32.xlu0 %v420, 32
      %v676 = vpop.permute.xlu0 %675
      %677 = vrot.lane.b32.xlu0 %v421, 32
      %v678 = vpop.permute.xlu0 %677
      %679 = vrot.lane.b32.xlu0 %v422, 32
      %v680 = vpop.permute.xlu0 %679
      %681 = vrot.lane.b32.xlu0 %v423, 32
      %v682 = vpop.permute.xlu0 %681
      %683 = vrot.lane.b32.xlu0 %v424, 32
      %v684 = vpop.permute.xlu0 %683
      %685 = vrot.lane.b32.xlu0 %v425, 32
      %v686 = vpop.permute.xlu0 %685
      %687 = vrot.lane.b32.xlu0 %v426, 32
      %v688 = vpop.permute.xlu0 %687
      %705 = vrot.lane.b32.xlu0 %v625, 64
      %v706 = vpop.permute.xlu0 %705
      %707 = vrot.lane.b32.xlu0 %v626, 64
      %v708 = vpop.permute.xlu0 %707
      %709 = vrot.lane.b32.xlu0 %v627, 64
      %v710 = vpop.permute.xlu0 %709
      %711 = vrot.lane.b32.xlu0 %v628, 64
      %v712 = vpop.permute.xlu0 %711
      %713 = vrot.lane.b32.xlu0 %v629, 64
      %v714 = vpop.permute.xlu0 %713
      %715 = vrot.lane.b32.xlu0 %v630, 64
      %v716 = vpop.permute.xlu0 %715
      %717 = vrot.lane.b32.xlu0 %v631, 64
      %v718 = vpop.permute.xlu0 %717
      %719 = vrot.lane.b32.xlu0 %v632, 64
      %v720 = vpop.permute.xlu0 %719
      %721 = vrot.lane.b32.xlu0 %v633, 64
      %v722 = vpop.permute.xlu0 %721
      %723 = vrot.lane.b32.xlu0 %v634, 64
      %v724 = vpop.permute.xlu0 %723
      %725 = vrot.lane.b32.xlu0 %v635, 64
      %v726 = vpop.permute.xlu0 %725
      %727 = vrot.lane.b32.xlu0 %v636, 64
      %v728 = vpop.permute.xlu0 %727
      %729 = vrot.lane.b32.xlu0 %v637, 64
      %v730 = vpop.permute.xlu0 %729
      %731 = vrot.lane.b32.xlu0 %v638, 64
      %v732 = vpop.permute.xlu0 %731
      %733 = vrot.lane.b32.xlu0 %v639, 64
      %v734 = vpop.permute.xlu0 %733
      %735 = vrot.lane.b32.xlu0 %v640, 64
      %v736 = vpop.permute.xlu0 %735
      %vm737 = vcmask 261120
      %v740 = vsel %vm737, %v558, %v658
      %v743 = vsel %vm737, %v559, %v660
      %v746 = vsel %vm737, %v560, %v662
      %v749 = vsel %vm737, %v561, %v664
      %v752 = vsel %vm737, %v562, %v666
      %v755 = vsel %vm737, %v563, %v668
      %v758 = vsel %vm737, %v564, %v670
      %v761 = vsel %vm737, %v565, %v672
      %v764 = vsel %vm737, %v566, %v674
      %v767 = vsel %vm737, %v567, %v676
      %v770 = vsel %vm737, %v568, %v678
      %v773 = vsel %vm737, %v569, %v680
      %v776 = vsel %vm737, %v570, %v682
      %v779 = vsel %vm737, %v571, %v684
      %v782 = vsel %vm737, %v572, %v686
      %v785 = vsel %vm737, %v573, %v688
      %vm786 = vcmask 523264
      %v788 = vsel %vm786, %v740, %v706
      %v790 = vsel %vm786, %v743, %v708
      %v792 = vsel %vm786, %v746, %v710
      %v794 = vsel %vm786, %v749, %v712
      %v796 = vsel %vm786, %v752, %v714
      %v798 = vsel %vm786, %v755, %v716
      %v800 = vsel %vm786, %v758, %v718
      %v802 = vsel %vm786, %v761, %v720
      %v804 = vsel %vm786, %v764, %v722
      %v806 = vsel %vm786, %v767, %v724
      %v808 = vsel %vm786, %v770, %v726
      %v810 = vsel %vm786, %v773, %v728
      %v812 = vsel %vm786, %v776, %v730
      %v814 = vsel %vm786, %v779, %v732
      %v816 = vsel %vm786, %v782, %v734
      %v818 = vsel %vm786, %v785, %v736
      %v819 = vld [vmem:[%s3] sm:$0xf]
      %v820 = vld [vmem:[%s3 + $0x4] sm:$0xf]
      %v821 = vld [vmem:[%s3 + $0x8] sm:$0xf]
      %v822 = vld [vmem:[%s3 + $0xc] sm:$0xf]
      %v823 = vld [vmem:[%s3 + $0x10] sm:$0xf]
      %v824 = vld [vmem:[%s3 + $0x14] sm:$0xf]
      %v825 = vld [vmem:[%s3 + $0x18] sm:$0xf]
      %v826 = vld [vmem:[%s3 + $0x1c] sm:$0xf]
      %v827 = vld [vmem:[%s3 + $0x20] sm:$0xf]
      %v828 = vld [vmem:[%s3 + $0x24] sm:$0xf]
      %v829 = vld [vmem:[%s3 + $0x28] sm:$0xf]
      %v830 = vld [vmem:[%s3 + $0x2c] sm:$0xf]
      %s831 = scalar_lea.vmem %s3, 48
      %v832 = vld [vmem:[%s831] sm:$0xf]
      %v833 = vld [vmem:[%s831 + $0x4] sm:$0xf]
      %v834 = vld [vmem:[%s831 + $0x8] sm:$0xf]
      %v835 = vld [vmem:[%s831 + $0xc] sm:$0xf]
      %v836 = vld [vmem:[%s831 + $0x10] sm:$0xf]
      %v837 = vld [vmem:[%s831 + $0x14] sm:$0xf]
      %v838 = vld [vmem:[%s831 + $0x18] sm:$0xf]
      %v839 = vld [vmem:[%s831 + $0x1c] sm:$0xf]
      %v840 = vld [vmem:[%s831 + $0x20] sm:$0xf]
      %v841 = vld [vmem:[%s831 + $0x24] sm:$0xf]
      %v842 = vld [vmem:[%s831 + $0x28] sm:$0xf]
      %v843 = vld [vmem:[%s831 + $0x2c] sm:$0xf]
      %v856 = vunpack.c.l.b16 %v832
      %v857 = vunpack.c.l.b16 %v833
      %v858 = vunpack.c.l.b16 %v834
      %v859 = vunpack.c.l.b16 %v835
      %v860 = vunpack.c.l.b16 %v836
      %v861 = vunpack.c.l.b16 %v837
      %v862 = vunpack.c.l.b16 %v838
      %v863 = vunpack.c.l.b16 %v839
      %v864 = vunpack.c.l.b16 %v840
      %v865 = vunpack.c.l.b16 %v841
      %v866 = vunpack.c.l.b16 %v842
      %v867 = vunpack.c.l.b16 %v843
      %v868 = vpack.c.b16 %v857, %v856
      %v869 = vpack.c.b16 %v859, %v858
      %v870 = vpack.c.b16 %v861, %v860
      %v871 = vpack.c.b16 %v863, %v862
      %v872 = vpack.c.b16 %v865, %v864
      %v873 = vpack.c.b16 %v867, %v866
      %vm880 = vcmask 785408
      %v881 = vsel %vm880, %v788, 0
      %v883 = vsel %vm880, %v790, 0
      %v885 = vsel %vm880, %v792, 0
      %v887 = vsel %vm880, %v794, 0
      %v889 = vsel %vm880, %v796, 0
      %v891 = vsel %vm880, %v798, 0
      %v893 = vsel %vm880, %v800, 0
      %v895 = vsel %vm880, %v802, 0
      %v897 = vsel %vm880, %v804, 0
      %v899 = vsel %vm880, %v806, 0
      %v901 = vsel %vm880, %v808, 0
      %v903 = vsel %vm880, %v810, 0
      %v905 = vsel %vm880, %v812, 0
      %v907 = vsel %vm880, %v814, 0
      %v909 = vsel %vm880, %v816, 0
      %v911 = vsel %vm880, %v818, 0
      %913 = vmatprep.subr.bf16.mxu0 0
      %914 = vmatpush1.bf16.msra.mxu0 %v868
      %915 = vmatprep.subr.bf16.mxu0 0
      %916 = vmatpush1.bf16.msra.mxu0 %v869
      %917 = vmatprep.subr.bf16.mxu0 0
      %918 = vmatpush1.bf16.msra.mxu0 %v870
      %919 = vmatprep.subr.bf16.mxu0 0
      %920 = vmatpush1.bf16.msra.mxu0 %v871
      %921 = vmatprep.subr.bf16.mxu0 0
      %922 = vmatpush1.bf16.msra.mxu0 %v872
      %923 = vmatprep.subr.bf16.mxu0 0
      %924 = vmatpush1.bf16.msra.mxu0 %v873
      %925 = vmatprep.subr.bf16.mxu0 0
      %926 = vmatpush1.bf16.msra.mxu0 0
      %927 = vmatprep.subr.bf16.mxu0 0
      %928 = vmatpush1.bf16.msra.mxu0 0
      %929 = vmatprep.subr.bf16.mxu0 0
      %930 = vmatpush1.bf16.msra.mxu0 0
      %931 = vmatprep.subr.bf16.mxu0 0
      %932 = vmatpush1.bf16.msra.mxu0 0
      %933 = vmatprep.subr.bf16.mxu0 0
      %934 = vmatpush1.bf16.msra.mxu0 0
      %935 = vmatprep.subr.bf16.mxu0 0
      %936 = vmatpush1.bf16.msra.mxu0 0
      %937 = vmatprep.subr.bf16.mxu0 0
      %938 = vmatpush1.bf16.msra.mxu0 0
      %939 = vmatprep.subr.bf16.mxu0 0
      %940 = vmatpush1.bf16.msra.mxu0 0
      %941 = vmatprep.subr.bf16.mxu0 0
      %942 = vmatpush1.bf16.msra.mxu0 0
      %943 = vmatprep.subr.bf16.mxu0 0
      %944 = vmatpush1.bf16.msra.mxu0 0
      %945 = vmatprep.mubr.bf16.mxu0 0
      %946 = vmatmul.mubr.bf16.gmra.mrb[0].mxu0 %v881
      %v947 = vpop.f32.mrb[0].mxu0
      %v948 = vadd.f32 0.0, %v947
      %v949 = vpop.f32.mrb[0].mxu0
      %v950 = vpop.f32.mrb[0].mxu0
      %v951 = vadd.f32 0.0, %v950
      %v952 = vpop.f32.mrb[0].mxu0
      %953 = vmatprep.mubr.bf16.mxu0 0
      %954 = vmatmul.mubr.bf16.gmra.mrb[0].mxu0 %v883
      %v955 = vpop.f32.mrb[0].mxu0
      %v956 = vadd.f32 0.0, %v955
      %v957 = vpop.f32.mrb[0].mxu0
      %v958 = vpop.f32.mrb[0].mxu0
      %v959 = vadd.f32 0.0, %v958
      %v960 = vpop.f32.mrb[0].mxu0
      %961 = vmatprep.mubr.bf16.mxu0 0
      %962 = vmatmul.mubr.bf16.gmra.mrb[0].mxu0 %v885
      %v963 = vpop.f32.mrb[0].mxu0
      %v964 = vadd.f32 0.0, %v963
      %v965 = vpop.f32.mrb[0].mxu0
      %v966 = vpop.f32.mrb[0].mxu0
      %v967 = vadd.f32 0.0, %v966
      %v968 = vpop.f32.mrb[0].mxu0
      %969 = vmatprep.mubr.bf16.mxu0 0
      %970 = vmatmul.mubr.bf16.gmra.mrb[0].mxu0 %v887
      %v971 = vpop.f32.mrb[0].mxu0
      %v972 = vadd.f32 0.0, %v971
      %v973 = vpop.f32.mrb[0].mxu0
      %v974 = vpop.f32.mrb[0].mxu0
      %v975 = vadd.f32 0.0, %v974
      %v976 = vpop.f32.mrb[0].mxu0
      %977 = vmatprep.mubr.bf16.mxu0 0
      %978 = vmatmul.mubr.bf16.gmra.mrb[0].mxu0 %v889
      %v979 = vpop.f32.mrb[0].mxu0
      %v980 = vadd.f32 0.0, %v979
      %v981 = vpop.f32.mrb[0].mxu0
      %v982 = vpop.f32.mrb[0].mxu0
      %v983 = vadd.f32 0.0, %v982
      %v984 = vpop.f32.mrb[0].mxu0
      %985 = vmatprep.mubr.bf16.mxu0 0
      %986 = vmatmul.mubr.bf16.gmra.mrb[0].mxu0 %v891
      %v987 = vpop.f32.mrb[0].mxu0
      %v988 = vadd.f32 0.0, %v987
      %v989 = vpop.f32.mrb[0].mxu0
      %v990 = vpop.f32.mrb[0].mxu0
      %v991 = vadd.f32 0.0, %v990
      %v992 = vpop.f32.mrb[0].mxu0
      %993 = vmatprep.mubr.bf16.mxu0 0
      %994 = vmatmul.mubr.bf16.gmra.mrb[0].mxu0 %v893
      %v995 = vpop.f32.mrb[0].mxu0
      %v996 = vadd.f32 0.0, %v995
      %v997 = vpop.f32.mrb[0].mxu0
      %v998 = vpop.f32.mrb[0].mxu0
      %v999 = vadd.f32 0.0, %v998
      %v1000 = vpop.f32.mrb[0].mxu0
      %1001 = vmatprep.mubr.bf16.mxu0 0
      %1002 = vmatmul.mubr.bf16.gmra.mrb[0].mxu0 %v895
      %v1003 = vpop.f32.mrb[0].mxu0
      %v1004 = vadd.f32 0.0, %v1003
      %v1005 = vpop.f32.mrb[0].mxu0
      %v1006 = vpop.f32.mrb[0].mxu0
      %v1007 = vadd.f32 0.0, %v1006
      %v1008 = vpop.f32.mrb[0].mxu0
      %1009 = vmatprep.mubr.bf16.mxu0 0
      %1010 = vmatmul.mubr.bf16.gmra.mrb[0].mxu0 %v897
      %v1011 = vpop.f32.mrb[0].mxu0
      %v1012 = vadd.f32 0.0, %v1011
      %v1013 = vpop.f32.mrb[0].mxu0
      %v1014 = vpop.f32.mrb[0].mxu0
      %v1015 = vadd.f32 0.0, %v1014
      %v1016 = vpop.f32.mrb[0].mxu0
      %1017 = vmatprep.mubr.bf16.mxu0 0
      %1018 = vmatmul.mubr.bf16.gmra.mrb[0].mxu0 %v899
      %v1019 = vpop.f32.mrb[0].mxu0
      %v1020 = vadd.f32 0.0, %v1019
      %v1021 = vpop.f32.mrb[0].mxu0
      %v1022 = vpop.f32.mrb[0].mxu0
      %v1023 = vadd.f32 0.0, %v1022
      %v1024 = vpop.f32.mrb[0].mxu0
      %1025 = vmatprep.mubr.bf16.mxu0 0
      %1026 = vmatmul.mubr.bf16.gmra.mrb[0].mxu0 %v901
      %v1027 = vpop.f32.mrb[0].mxu0
      %v1028 = vadd.f32 0.0, %v1027
      %v1029 = vpop.f32.mrb[0].mxu0
      %v1030 = vpop.f32.mrb[0].mxu0
      %v1031 = vadd.f32 0.0, %v1030
      %v1032 = vpop.f32.mrb[0].mxu0
      %1033 = vmatprep.mubr.bf16.mxu0 0
      %1034 = vmatmul.mubr.bf16.gmra.mrb[0].mxu0 %v903
      %v1035 = vpop.f32.mrb[0].mxu0
      %v1036 = vadd.f32 0.0, %v1035
      %v1037 = vpop.f32.mrb[0].mxu0
      %v1038 = vpop.f32.mrb[0].mxu0
      %v1039 = vadd.f32 0.0, %v1038
      %v1040 = vpop.f32.mrb[0].mxu0
      %1041 = vmatprep.mubr.bf16.mxu0 0
      %1042 = vmatmul.mubr.bf16.gmra.mrb[0].mxu0 %v905
      %v1043 = vpop.f32.mrb[0].mxu0
      %v1044 = vadd.f32 0.0, %v1043
      %v1045 = vpop.f32.mrb[0].mxu0
      %v1046 = vpop.f32.mrb[0].mxu0
      %v1047 = vadd.f32 0.0, %v1046
      %v1048 = vpop.f32.mrb[0].mxu0
      %1049 = vmatprep.mubr.bf16.mxu0 0
      %1050 = vmatmul.mubr.bf16.gmra.mrb[0].mxu0 %v907
      %v1051 = vpop.f32.mrb[0].mxu0
      %v1052 = vadd.f32 0.0, %v1051
      %v1053 = vpop.f32.mrb[0].mxu0
      %v1054 = vpop.f32.mrb[0].mxu0
      %v1055 = vadd.f32 0.0, %v1054
      %v1056 = vpop.f32.mrb[0].mxu0
      %1057 = vmatprep.mubr.bf16.mxu0 0
      %1058 = vmatmul.mubr.bf16.gmra.mrb[0].mxu0 %v909
      %v1059 = vpop.f32.mrb[0].mxu0
      %v1060 = vadd.f32 0.0, %v1059
      %v1061 = vpop.f32.mrb[0].mxu0
      %v1062 = vpop.f32.mrb[0].mxu0
      %v1063 = vadd.f32 0.0, %v1062
      %v1064 = vpop.f32.mrb[0].mxu0
      %1065 = vmatprep.mubr.bf16.mxu0 0
      %1066 = vmatmul.mubr.bf16.gmra.mrb[0].mxu0 %v911
      %v1067 = vpop.f32.mrb[0].mxu0
      %v1068 = vadd.f32 0.0, %v1067
      %v1069 = vpop.f32.mrb[0].mxu0
      %v1070 = vpop.f32.mrb[0].mxu0
      %v1071 = vadd.f32 0.0, %v1070
      %v1072 = vpop.f32.mrb[0].mxu0
      %1073 = vdwg.mxu0
      %v1086 = vunpack.c.l.b16 %v819
      %v1087 = vunpack.c.l.b16 %v820
      %v1088 = vunpack.c.l.b16 %v821
      %v1089 = vunpack.c.l.b16 %v822
      %v1090 = vunpack.c.l.b16 %v823
      %v1091 = vunpack.c.l.b16 %v824
      %v1092 = vunpack.c.l.b16 %v825
      %v1093 = vunpack.c.l.b16 %v826
      %v1094 = vunpack.c.l.b16 %v827
      %v1095 = vunpack.c.l.b16 %v828
      %v1096 = vunpack.c.l.b16 %v829
      %v1097 = vunpack.c.l.b16 %v830
      %v1098 = vpack.c.b16 %v1087, %v1086
      %v1099 = vpack.c.b16 %v1089, %v1088
      %v1100 = vpack.c.b16 %v1091, %v1090
      %v1101 = vpack.c.b16 %v1093, %v1092
      %v1102 = vpack.c.b16 %v1095, %v1094
      %v1103 = vpack.c.b16 %v1097, %v1096
      %v1111 = vsel %vm880, 0, 0
      %1113 = vmatprep.subr.bf16.mxu0 0
      %1114 = vmatpush1.bf16.msra.mxu0 %v1098
      %1115 = vmatprep.subr.bf16.mxu0 0
      %1116 = vmatpush1.bf16.msra.mxu0 %v1099
      %1117 = vmatprep.subr.bf16.mxu0 0
      %1118 = vmatpush1.bf16.msra.mxu0 %v1100
      %1119 = vmatprep.subr.bf16.mxu0 0
      %1120 = vmatpush1.bf16.msra.mxu0 %v1101
      %1121 = vmatprep.subr.bf16.mxu0 0
      %1122 = vmatpush1.bf16.msra.mxu0 %v1102
      %1123 = vmatprep.subr.bf16.mxu0 0
      %1124 = vmatpush1.bf16.msra.mxu0 %v1103
      %1125 = vmatprep.subr.bf16.mxu0 0
      %1126 = vmatpush1.bf16.msra.mxu0 0
      %1127 = vmatprep.subr.bf16.mxu0 0
      %1128 = vmatpush1.bf16.msra.mxu0 0
      %1129 = vmatprep.subr.bf16.mxu0 0
      %1130 = vmatpush1.bf16.msra.mxu0 0
      %1131 = vmatprep.subr.bf16.mxu0 0
      %1132 = vmatpush1.bf16.msra.mxu0 0
      %1133 = vmatprep.subr.bf16.mxu0 0
      %1134 = vmatpush1.bf16.msra.mxu0 0
      %1135 = vmatprep.subr.bf16.mxu0 0
      %1136 = vmatpush1.bf16.msra.mxu0 0
      %1137 = vmatprep.subr.bf16.mxu0 0
      %1138 = vmatpush1.bf16.msra.mxu0 0
      %1139 = vmatprep.subr.bf16.mxu0 0
      %1140 = vmatpush1.bf16.msra.mxu0 0
      %1141 = vmatprep.subr.bf16.mxu0 0
      %1142 = vmatpush1.bf16.msra.mxu0 0
      %1143 = vmatprep.subr.bf16.mxu0 0
      %1144 = vmatpush1.bf16.msra.mxu0 0
      %1145 = vmatprep.mubr.bf16.mxu0 0
      %1146 = vmatmul.mubr.bf16.gmra.mrb[0].mxu0 %v1111
      %v1147 = vpop.f32.mrb[0].mxu0
      %v1148 = vadd.f32 %v948, %v1147
      %v1149 = vpop.f32.mrb[0].mxu0
      %v1150 = vpop.f32.mrb[0].mxu0
      %v1151 = vadd.f32 %v951, %v1150
      %v1152 = vpop.f32.mrb[0].mxu0
      %1153 = vmatprep.mubr.bf16.mxu0 0
      %1154 = vmatmul.mubr.bf16.gmra.mrb[0].mxu0 %v881
      %v1155 = vpop.f32.mrb[0].mxu0
      %v1156 = vadd.f32 %v956, %v1155
      %v1157 = vpop.f32.mrb[0].mxu0
      %v1158 = vpop.f32.mrb[0].mxu0
      %v1159 = vadd.f32 %v959, %v1158
      %v1160 = vpop.f32.mrb[0].mxu0
      %1161 = vmatprep.mubr.bf16.mxu0 0
      %1162 = vmatmul.mubr.bf16.gmra.mrb[0].mxu0 %v883
      %v1163 = vpop.f32.mrb[0].mxu0
      %v1164 = vadd.f32 %v964, %v1163
      %v1165 = vpop.f32.mrb[0].mxu0
      %v1166 = vpop.f32.mrb[0].mxu0
      %v1167 = vadd.f32 %v967, %v1166
      %v1168 = vpop.f32.mrb[0].mxu0
      %1169 = vmatprep.mubr.bf16.mxu0 0
      %1170 = vmatmul.mubr.bf16.gmra.mrb[0].mxu0 %v885
      %v1171 = vpop.f32.mrb[0].mxu0
      %v1172 = vadd.f32 %v972, %v1171
      %v1173 = vpop.f32.mrb[0].mxu0
      %v1174 = vpop.f32.mrb[0].mxu0
      %v1175 = vadd.f32 %v975, %v1174
      %v1176 = vpop.f32.mrb[0].mxu0
      %1177 = vmatprep.mubr.bf16.mxu0 0
      %1178 = vmatmul.mubr.bf16.gmra.mrb[0].mxu0 %v887
      %v1179 = vpop.f32.mrb[0].mxu0
      %v1180 = vadd.f32 %v980, %v1179
      %v1181 = vpop.f32.mrb[0].mxu0
      %v1182 = vpop.f32.mrb[0].mxu0
      %v1183 = vadd.f32 %v983, %v1182
      %v1184 = vpop.f32.mrb[0].mxu0
      %1185 = vmatprep.mubr.bf16.mxu0 0
      %1186 = vmatmul.mubr.bf16.gmra.mrb[0].mxu0 %v889
      %v1187 = vpop.f32.mrb[0].mxu0
      %v1188 = vadd.f32 %v988, %v1187
      %v1189 = vpop.f32.mrb[0].mxu0
      %v1190 = vpop.f32.mrb[0].mxu0
      %v1191 = vadd.f32 %v991, %v1190
      %v1192 = vpop.f32.mrb[0].mxu0
      %1193 = vmatprep.mubr.bf16.mxu0 0
      %1194 = vmatmul.mubr.bf16.gmra.mrb[0].mxu0 %v891
      %v1195 = vpop.f32.mrb[0].mxu0
      %v1196 = vadd.f32 %v996, %v1195
      %v1197 = vpop.f32.mrb[0].mxu0
      %v1198 = vpop.f32.mrb[0].mxu0
      %v1199 = vadd.f32 %v999, %v1198
      %v1200 = vpop.f32.mrb[0].mxu0
      %1201 = vmatprep.mubr.bf16.mxu0 0
      %1202 = vmatmul.mubr.bf16.gmra.mrb[0].mxu0 %v893
      %v1203 = vpop.f32.mrb[0].mxu0
      %v1204 = vadd.f32 %v1004, %v1203
      %v1205 = vpop.f32.mrb[0].mxu0
      %v1206 = vpop.f32.mrb[0].mxu0
      %v1207 = vadd.f32 %v1007, %v1206
      %v1208 = vpop.f32.mrb[0].mxu0
      %1209 = vmatprep.mubr.bf16.mxu0 0
      %1210 = vmatmul.mubr.bf16.gmra.mrb[0].mxu0 %v895
      %v1211 = vpop.f32.mrb[0].mxu0
      %v1212 = vadd.f32 %v1012, %v1211
      %v1213 = vpop.f32.mrb[0].mxu0
      %v1214 = vpop.f32.mrb[0].mxu0
      %v1215 = vadd.f32 %v1015, %v1214
      %v1216 = vpop.f32.mrb[0].mxu0
      %1217 = vmatprep.mubr.bf16.mxu0 0
      %1218 = vmatmul.mubr.bf16.gmra.mrb[0].mxu0 %v897
      %v1219 = vpop.f32.mrb[0].mxu0
      %v1220 = vadd.f32 %v1020, %v1219
      %v1221 = vpop.f32.mrb[0].mxu0
      %v1222 = vpop.f32.mrb[0].mxu0
      %v1223 = vadd.f32 %v1023, %v1222
      %v1224 = vpop.f32.mrb[0].mxu0
      %1225 = vmatprep.mubr.bf16.mxu0 0
      %1226 = vmatmul.mubr.bf16.gmra.mrb[0].mxu0 %v899
      %v1227 = vpop.f32.mrb[0].mxu0
      %v1228 = vadd.f32 %v1028, %v1227
      %v1229 = vpop.f32.mrb[0].mxu0
      %v1230 = vpop.f32.mrb[0].mxu0
      %v1231 = vadd.f32 %v1031, %v1230
      %v1232 = vpop.f32.mrb[0].mxu0
      %1233 = vmatprep.mubr.bf16.mxu0 0
      %1234 = vmatmul.mubr.bf16.gmra.mrb[0].mxu0 %v901
      %v1235 = vpop.f32.mrb[0].mxu0
      %v1236 = vadd.f32 %v1036, %v1235
      %v1237 = vpop.f32.mrb[0].mxu0
      %v1238 = vpop.f32.mrb[0].mxu0
      %v1239 = vadd.f32 %v1039, %v1238
      %v1240 = vpop.f32.mrb[0].mxu0
      %1241 = vmatprep.mubr.bf16.mxu0 0
      %1242 = vmatmul.mubr.bf16.gmra.mrb[0].mxu0 %v903
      %v1243 = vpop.f32.mrb[0].mxu0
      %v1244 = vadd.f32 %v1044, %v1243
      %v1245 = vpop.f32.mrb[0].mxu0
      %v1246 = vpop.f32.mrb[0].mxu0
      %v1247 = vadd.f32 %v1047, %v1246
      %v1248 = vpop.f32.mrb[0].mxu0
      %1249 = vmatprep.mubr.bf16.mxu0 0
      %1250 = vmatmul.mubr.bf16.gmra.mrb[0].mxu0 %v905
      %v1251 = vpop.f32.mrb[0].mxu0
      %v1252 = vadd.f32 %v1052, %v1251
      %v1253 = vpop.f32.mrb[0].mxu0
      %v1254 = vpop.f32.mrb[0].mxu0
      %v1255 = vadd.f32 %v1055, %v1254
      %v1256 = vpop.f32.mrb[0].mxu0
      %1257 = vmatprep.mubr.bf16.mxu0 0
      %1258 = vmatmul.mubr.bf16.gmra.mrb[0].mxu0 %v907
      %v1259 = vpop.f32.mrb[0].mxu0
      %v1260 = vadd.f32 %v1060, %v1259
      %v1261 = vpop.f32.mrb[0].mxu0
      %v1262 = vpop.f32.mrb[0].mxu0
      %v1263 = vadd.f32 %v1063, %v1262
      %v1264 = vpop.f32.mrb[0].mxu0
      %1265 = vmatprep.mubr.bf16.mxu0 0
      %1266 = vmatmul.mubr.bf16.gmra.mrb[0].mxu0 %v909
      %v1267 = vpop.f32.mrb[0].mxu0
      %v1268 = vadd.f32 %v1068, %v1267
      %v1269 = vpop.f32.mrb[0].mxu0
      %v1270 = vpop.f32.mrb[0].mxu0
      %v1271 = vadd.f32 %v1071, %v1270
      %v1272 = vpop.f32.mrb[0].mxu0
      %1273 = vdwg.mxu0
      %s1274 = scalar_lea.vmem %s3, 96
      %v1275 = vld [vmem:[%s1274] sm:$0xf]
      %v1276 = vld [vmem:[%s1274 + $0x4] sm:$0xf]
      %v1277 = vld [vmem:[%s1274 + $0x8] sm:$0xf]
      %v1278 = vld [vmem:[%s1274 + $0xc] sm:$0xf]
      %v1279 = vld [vmem:[%s1274 + $0x10] sm:$0xf]
      %v1280 = vld [vmem:[%s1274 + $0x14] sm:$0xf]
      %v1281 = vld [vmem:[%s1274 + $0x18] sm:$0xf]
      %v1282 = vld [vmem:[%s1274 + $0x1c] sm:$0xf]
      %v1283 = vld [vmem:[%s1274 + $0x20] sm:$0xf]
      %v1284 = vld [vmem:[%s1274 + $0x24] sm:$0xf]
      %v1285 = vld [vmem:[%s1274 + $0x28] sm:$0xf]
      %v1286 = vld [vmem:[%s1274 + $0x2c] sm:$0xf]
      %v1299 = vunpack.c.l.b16 %v1275
      %v1300 = vunpack.c.l.b16 %v1276
      %v1301 = vunpack.c.l.b16 %v1277
      %v1302 = vunpack.c.l.b16 %v1278
      %v1303 = vunpack.c.l.b16 %v1279
      %v1304 = vunpack.c.l.b16 %v1280
      %v1305 = vunpack.c.l.b16 %v1281
      %v1306 = vunpack.c.l.b16 %v1282
      %v1307 = vunpack.c.l.b16 %v1283
      %v1308 = vunpack.c.l.b16 %v1284
      %v1309 = vunpack.c.l.b16 %v1285
      %v1310 = vunpack.c.l.b16 %v1286
      %v1311 = vpack.c.b16 %v1300, %v1299
      %v1312 = vpack.c.b16 %v1302, %v1301
      %v1313 = vpack.c.b16 %v1304, %v1303
      %v1314 = vpack.c.b16 %v1306, %v1305
      %v1315 = vpack.c.b16 %v1308, %v1307
      %v1316 = vpack.c.b16 %v1310, %v1309
      %1323 = vmatprep.subr.bf16.mxu0 0
      %1324 = vmatpush1.bf16.msra.mxu0 %v1311
      %1325 = vmatprep.subr.bf16.mxu0 0
      %1326 = vmatpush1.bf16.msra.mxu0 %v1312
      %1327 = vmatprep.subr.bf16.mxu0 0
      %1328 = vmatpush1.bf16.msra.mxu0 %v1313
      %1329 = vmatprep.subr.bf16.mxu0 0
      %1330 = vmatpush1.bf16.msra.mxu0 %v1314
      %1331 = vmatprep.subr.bf16.mxu0 0
      %1332 = vmatpush1.bf16.msra.mxu0 %v1315
      %1333 = vmatprep.subr.bf16.mxu0 0
      %1334 = vmatpush1.bf16.msra.mxu0 %v1316
      %1335 = vmatprep.subr.bf16.mxu0 0
      %1336 = vmatpush1.bf16.msra.mxu0 0
      %1337 = vmatprep.subr.bf16.mxu0 0
      %1338 = vmatpush1.bf16.msra.mxu0 0
      %1339 = vmatprep.subr.bf16.mxu0 0
      %1340 = vmatpush1.bf16.msra.mxu0 0
      %1341 = vmatprep.subr.bf16.mxu0 0
      %1342 = vmatpush1.bf16.msra.mxu0 0
      %1343 = vmatprep.subr.bf16.mxu0 0
      %1344 = vmatpush1.bf16.msra.mxu0 0
      %1345 = vmatprep.subr.bf16.mxu0 0
      %1346 = vmatpush1.bf16.msra.mxu0 0
      %1347 = vmatprep.subr.bf16.mxu0 0
      %1348 = vmatpush1.bf16.msra.mxu0 0
      %1349 = vmatprep.subr.bf16.mxu0 0
      %1350 = vmatpush1.bf16.msra.mxu0 0
      %1351 = vmatprep.subr.bf16.mxu0 0
      %1352 = vmatpush1.bf16.msra.mxu0 0
      %1353 = vmatprep.subr.bf16.mxu0 0
      %1354 = vmatpush1.bf16.msra.mxu0 0
      %1355 = vmatprep.mubr.bf16.mxu0 0
      %1356 = vmatmul.mubr.bf16.gmra.mrb[0].mxu0 %v883
      %v1357 = vpop.f32.mrb[0].mxu0
      %v1358 = vadd.f32 0.0, %v1357
      %v1359 = vpop.f32.mrb[0].mxu0
      %v1360 = vpop.f32.mrb[0].mxu0
      %v1361 = vadd.f32 0.0, %v1360
      %v1362 = vpop.f32.mrb[0].mxu0
      %1363 = vmatprep.mubr.bf16.mxu0 0
      %1364 = vmatmul.mubr.bf16.gmra.mrb[0].mxu0 %v885
      %v1365 = vpop.f32.mrb[0].mxu0
      %v1366 = vadd.f32 0.0, %v1365
      %v1367 = vpop.f32.mrb[0].mxu0
      %v1368 = vpop.f32.mrb[0].mxu0
      %v1369 = vadd.f32 0.0, %v1368
      %v1370 = vpop.f32.mrb[0].mxu0
      %1371 = vmatprep.mubr.bf16.mxu0 0
      %1372 = vmatmul.mubr.bf16.gmra.mrb[0].mxu0 %v887
      %v1373 = vpop.f32.mrb[0].mxu0
      %v1374 = vadd.f32 0.0, %v1373
      %v1375 = vpop.f32.mrb[0].mxu0
      %v1376 = vpop.f32.mrb[0].mxu0
      %v1377 = vadd.f32 0.0, %v1376
      %v1378 = vpop.f32.mrb[0].mxu0
      %1379 = vmatprep.mubr.bf16.mxu0 0
      %1380 = vmatmul.mubr.bf16.gmra.mrb[0].mxu0 %v889
      %v1381 = vpop.f32.mrb[0].mxu0
      %v1382 = vadd.f32 0.0, %v1381
      %v1383 = vpop.f32.mrb[0].mxu0
      %v1384 = vpop.f32.mrb[0].mxu0
      %v1385 = vadd.f32 0.0, %v1384
      %v1386 = vpop.f32.mrb[0].mxu0
      %1387 = vmatprep.mubr.bf16.mxu0 0
      %1388 = vmatmul.mubr.bf16.gmra.mrb[0].mxu0 %v891
      %v1389 = vpop.f32.mrb[0].mxu0
      %v1390 = vadd.f32 0.0, %v1389
      %v1391 = vpop.f32.mrb[0].mxu0
      %v1392 = vpop.f32.mrb[0].mxu0
      %v1393 = vadd.f32 0.0, %v1392
      %v1394 = vpop.f32.mrb[0].mxu0
      %1395 = vmatprep.mubr.bf16.mxu0 0
      %1396 = vmatmul.mubr.bf16.gmra.mrb[0].mxu0 %v893
      %v1397 = vpop.f32.mrb[0].mxu0
      %v1398 = vadd.f32 0.0, %v1397
      %v1399 = vpop.f32.mrb[0].mxu0
      %v1400 = vpop.f32.mrb[0].mxu0
      %v1401 = vadd.f32 0.0, %v1400
      %v1402 = vpop.f32.mrb[0].mxu0
      %1403 = vmatprep.mubr.bf16.mxu0 0
      %1404 = vmatmul.mubr.bf16.gmra.mrb[0].mxu0 %v895
      %v1405 = vpop.f32.mrb[0].mxu0
      %v1406 = vadd.f32 0.0, %v1405
      %v1407 = vpop.f32.mrb[0].mxu0
      %v1408 = vpop.f32.mrb[0].mxu0
      %v1409 = vadd.f32 0.0, %v1408
      %v1410 = vpop.f32.mrb[0].mxu0
      %1411 = vmatprep.mubr.bf16.mxu0 0
      %1412 = vmatmul.mubr.bf16.gmra.mrb[0].mxu0 %v897
      %v1413 = vpop.f32.mrb[0].mxu0
      %v1414 = vadd.f32 0.0, %v1413
      %v1415 = vpop.f32.mrb[0].mxu0
      %v1416 = vpop.f32.mrb[0].mxu0
      %v1417 = vadd.f32 0.0, %v1416
      %v1418 = vpop.f32.mrb[0].mxu0
      %1419 = vmatprep.mubr.bf16.mxu0 0
      %1420 = vmatmul.mubr.bf16.gmra.mrb[0].mxu0 %v899
      %v1421 = vpop.f32.mrb[0].mxu0
      %v1422 = vadd.f32 0.0, %v1421
      %v1423 = vpop.f32.mrb[0].mxu0
      %v1424 = vpop.f32.mrb[0].mxu0
      %v1425 = vadd.f32 0.0, %v1424
      %v1426 = vpop.f32.mrb[0].mxu0
      %1427 = vmatprep.mubr.bf16.mxu0 0
      %1428 = vmatmul.mubr.bf16.gmra.mrb[0].mxu0 %v901
      %v1429 = vpop.f32.mrb[0].mxu0
      %v1430 = vadd.f32 0.0, %v1429
      %v1431 = vpop.f32.mrb[0].mxu0
      %v1432 = vpop.f32.mrb[0].mxu0
      %v1433 = vadd.f32 0.0, %v1432
      %v1434 = vpop.f32.mrb[0].mxu0
      %1435 = vmatprep.mubr.bf16.mxu0 0
      %1436 = vmatmul.mubr.bf16.gmra.mrb[0].mxu0 %v903
      %v1437 = vpop.f32.mrb[0].mxu0
      %v1438 = vadd.f32 0.0, %v1437
      %v1439 = vpop.f32.mrb[0].mxu0
      %v1440 = vpop.f32.mrb[0].mxu0
      %v1441 = vadd.f32 0.0, %v1440
      %v1442 = vpop.f32.mrb[0].mxu0
      %1443 = vmatprep.mubr.bf16.mxu0 0
      %1444 = vmatmul.mubr.bf16.gmra.mrb[0].mxu0 %v905
      %v1445 = vpop.f32.mrb[0].mxu0
      %v1446 = vadd.f32 0.0, %v1445
      %v1447 = vpop.f32.mrb[0].mxu0
      %v1448 = vpop.f32.mrb[0].mxu0
      %v1449 = vadd.f32 0.0, %v1448
      %v1450 = vpop.f32.mrb[0].mxu0
      %1451 = vmatprep.mubr.bf16.mxu0 0
      %1452 = vmatmul.mubr.bf16.gmra.mrb[0].mxu0 %v907
      %v1453 = vpop.f32.mrb[0].mxu0
      %v1454 = vadd.f32 0.0, %v1453
      %v1455 = vpop.f32.mrb[0].mxu0
      %v1456 = vpop.f32.mrb[0].mxu0
      %v1457 = vadd.f32 0.0, %v1456
      %v1458 = vpop.f32.mrb[0].mxu0
      %1459 = vmatprep.mubr.bf16.mxu0 0
      %1460 = vmatmul.mubr.bf16.gmra.mrb[0].mxu0 %v909
      %v1461 = vpop.f32.mrb[0].mxu0
      %v1462 = vadd.f32 0.0, %v1461
      %v1463 = vpop.f32.mrb[0].mxu0
      %v1464 = vpop.f32.mrb[0].mxu0
      %v1465 = vadd.f32 0.0, %v1464
      %v1466 = vpop.f32.mrb[0].mxu0
      %1467 = vmatprep.mubr.bf16.mxu0 0
      %1468 = vmatmul.mubr.bf16.gmra.mrb[0].mxu0 %v911
      %v1469 = vpop.f32.mrb[0].mxu0
      %v1470 = vadd.f32 0.0, %v1469
      %v1471 = vpop.f32.mrb[0].mxu0
      %v1472 = vpop.f32.mrb[0].mxu0
      %v1473 = vadd.f32 0.0, %v1472
      %v1474 = vpop.f32.mrb[0].mxu0
      %1475 = vmatprep.mubr.bf16.mxu0 0
      %1476 = vmatmul.mubr.bf16.gmra.mrb[0].mxu0 %v1111
      %v1477 = vpop.f32.mrb[0].mxu0
      %v1478 = vadd.f32 0.0, %v1477
      %v1479 = vpop.f32.mrb[0].mxu0
      %v1480 = vpop.f32.mrb[0].mxu0
      %v1481 = vadd.f32 0.0, %v1480
      %v1482 = vpop.f32.mrb[0].mxu0
      %1483 = vdwg.mxu0
      %v1484 = vadd.f32 %v1148, %v1358
      %v1485 = vadd.f32 %v1151, %v1361
      %v1486 = vadd.f32 %v1156, %v1366
      %v1487 = vadd.f32 %v1159, %v1369
      %v1488 = vadd.f32 %v1164, %v1374
      %v1489 = vadd.f32 %v1167, %v1377
      %v1490 = vadd.f32 %v1172, %v1382
      %v1491 = vadd.f32 %v1175, %v1385
      %v1492 = vadd.f32 %v1180, %v1390
      %v1493 = vadd.f32 %v1183, %v1393
      %v1494 = vadd.f32 %v1188, %v1398
      %v1495 = vadd.f32 %v1191, %v1401
      %v1496 = vadd.f32 %v1196, %v1406
      %v1497 = vadd.f32 %v1199, %v1409
      %v1498 = vadd.f32 %v1204, %v1414
      %v1499 = vadd.f32 %v1207, %v1417
      %v1500 = vadd.f32 %v1212, %v1422
      %v1501 = vadd.f32 %v1215, %v1425
      %v1502 = vadd.f32 %v1220, %v1430
      %v1503 = vadd.f32 %v1223, %v1433
      %v1504 = vadd.f32 %v1228, %v1438
      %v1505 = vadd.f32 %v1231, %v1441
      %v1506 = vadd.f32 %v1236, %v1446
      %v1507 = vadd.f32 %v1239, %v1449
      %v1508 = vadd.f32 %v1244, %v1454
      %v1509 = vadd.f32 %v1247, %v1457
      %v1510 = vadd.f32 %v1252, %v1462
      %v1511 = vadd.f32 %v1255, %v1465
      %v1512 = vadd.f32 %v1260, %v1470
      %v1513 = vadd.f32 %v1263, %v1473
      %v1514 = vadd.f32 %v1268, %v1478
      %v1515 = vadd.f32 %v1271, %v1481
      %v1516 = vpack.c.bf16 %v1485, %v1484
      %v1517 = vpack.c.bf16 %v1487, %v1486
      %v1518 = vpack.c.bf16 %v1489, %v1488
      %v1519 = vpack.c.bf16 %v1491, %v1490
      %v1520 = vpack.c.bf16 %v1493, %v1492
      %v1521 = vpack.c.bf16 %v1495, %v1494
      %v1522 = vpack.c.bf16 %v1497, %v1496
      %v1523 = vpack.c.bf16 %v1499, %v1498
      %v1524 = vpack.c.bf16 %v1501, %v1500
      %v1525 = vpack.c.bf16 %v1503, %v1502
      %v1526 = vpack.c.bf16 %v1505, %v1504
      %v1527 = vpack.c.bf16 %v1507, %v1506
      %v1528 = vpack.c.bf16 %v1509, %v1508
      %v1529 = vpack.c.bf16 %v1511, %v1510
      %v1530 = vpack.c.bf16 %v1513, %v1512
      %v1531 = vpack.c.bf16 %v1515, %v1514
      %v1548 = vunpack.c.l.b16 %v1516
      %v1549 = vunpack.c.h.b16 %v1516
      %v1550 = vunpack.c.l.b16 %v1517
      %v1551 = vunpack.c.h.b16 %v1517
      %v1552 = vunpack.c.l.b16 %v1518
      %v1553 = vunpack.c.h.b16 %v1518
      %v1554 = vunpack.c.l.b16 %v1519
      %v1555 = vunpack.c.h.b16 %v1519
      %v1556 = vunpack.c.l.b16 %v1520
      %v1557 = vunpack.c.h.b16 %v1520
      %v1558 = vunpack.c.l.b16 %v1521
      %v1559 = vunpack.c.h.b16 %v1521
      %v1560 = vunpack.c.l.b16 %v1522
      %v1561 = vunpack.c.h.b16 %v1522
      %v1562 = vunpack.c.l.b16 %v1523
      %v1563 = vunpack.c.h.b16 %v1523
      %v1564 = vunpack.c.l.b16 %v1524
      %v1565 = vunpack.c.h.b16 %v1524
      %v1566 = vunpack.c.l.b16 %v1525
      %v1567 = vunpack.c.h.b16 %v1525
      %v1568 = vunpack.c.l.b16 %v1526
      %v1569 = vunpack.c.h.b16 %v1526
      %v1570 = vunpack.c.l.b16 %v1527
      %v1571 = vunpack.c.h.b16 %v1527
      %v1572 = vunpack.c.l.b16 %v1528
      %v1573 = vunpack.c.h.b16 %v1528
      %v1574 = vunpack.c.l.b16 %v1529
      %v1575 = vunpack.c.h.b16 %v1529
      %v1576 = vunpack.c.l.b16 %v1530
      %v1577 = vunpack.c.h.b16 %v1530
      %v1578 = vunpack.c.l.b16 %v1531
      %v1579 = vunpack.c.h.b16 %v1531
      %v1580 = vpack.c.b16 %v1548, %v1548
      %v1581 = vpack.c.b16 %v1549, %v1549
      %v1582 = vpack.c.b16 %v1550, %v1550
      %v1583 = vpack.c.b16 %v1551, %v1551
      %v1584 = vpack.c.b16 %v1552, %v1552
      %v1585 = vpack.c.b16 %v1553, %v1553
      %v1586 = vpack.c.b16 %v1554, %v1554
      %v1587 = vpack.c.b16 %v1555, %v1555
      %v1588 = vpack.c.b16 %v1556, %v1556
      %v1589 = vpack.c.b16 %v1557, %v1557
      %v1590 = vpack.c.b16 %v1558, %v1558
      %v1591 = vpack.c.b16 %v1559, %v1559
      %v1592 = vpack.c.b16 %v1560, %v1560
      %v1593 = vpack.c.b16 %v1561, %v1561
      %v1594 = vpack.c.b16 %v1562, %v1562
      %v1595 = vpack.c.b16 %v1563, %v1563
      %v1596 = vpack.c.b16 %v1564, %v1564
      %v1597 = vpack.c.b16 %v1565, %v1565
      %v1598 = vpack.c.b16 %v1566, %v1566
      %v1599 = vpack.c.b16 %v1567, %v1567
      %v1600 = vpack.c.b16 %v1568, %v1568
      %v1601 = vpack.c.b16 %v1569, %v1569
      %v1602 = vpack.c.b16 %v1570, %v1570
      %v1603 = vpack.c.b16 %v1571, %v1571
      %v1604 = vpack.c.b16 %v1572, %v1572
      %v1605 = vpack.c.b16 %v1573, %v1573
      %v1606 = vpack.c.b16 %v1574, %v1574
      %v1607 = vpack.c.b16 %v1575, %v1575
      %v1608 = vpack.c.b16 %v1576, %v1576
      %v1609 = vpack.c.b16 %v1577, %v1577
      %v1610 = vpack.c.b16 %v1578, %v1578
      %v1611 = vpack.c.b16 %v1579, %v1579
      %vm1644 = vcmask 257024
      %1645 = vst.msk [vmem:[%s231] sm:$0xf] %vm1644, %v1580
      %1646 = vst.msk [vmem:[%s231 + $0x4] sm:$0xf] %vm1644, %v1581
      %1647 = vst.msk [vmem:[%s231 + $0x8] sm:$0xf] %vm1644, %v1582
      %1648 = vst.msk [vmem:[%s231 + $0xc] sm:$0xf] %vm1644, %v1583
      %1649 = vst.msk [vmem:[%s231 + $0x10] sm:$0xf] %vm1644, %v1584
      %1650 = vst.msk [vmem:[%s231 + $0x14] sm:$0xf] %vm1644, %v1585
      %1651 = vst.msk [vmem:[%s231 + $0x18] sm:$0xf] %vm1644, %v1586
      %1652 = vst.msk [vmem:[%s231 + $0x1c] sm:$0xf] %vm1644, %v1587
      %1653 = vst.msk [vmem:[%s231 + $0x20] sm:$0xf] %vm1644, %v1588
      %1654 = vst.msk [vmem:[%s231 + $0x24] sm:$0xf] %vm1644, %v1589
      %1655 = vst.msk [vmem:[%s231 + $0x28] sm:$0xf] %vm1644, %v1590
      %1656 = vst.msk [vmem:[%s231 + $0x2c] sm:$0xf] %vm1644, %v1591
      %1657 = vst.msk [vmem:[%s231 + $0x30] sm:$0xf] %vm1644, %v1592
      %1658 = vst.msk [vmem:[%s231 + $0x34] sm:$0xf] %vm1644, %v1593
      %1659 = vst.msk [vmem:[%s231 + $0x38] sm:$0xf] %vm1644, %v1594
      %1660 = vst.msk [vmem:[%s231 + $0x3c] sm:$0xf] %vm1644, %v1595
      %1661 = vst.msk [vmem:[%s231 + $0x40] sm:$0xf] %vm1644, %v1596
      %1662 = vst.msk [vmem:[%s231 + $0x44] sm:$0xf] %vm1644, %v1597
      %1663 = vst.msk [vmem:[%s231 + $0x48] sm:$0xf] %vm1644, %v1598
      %1664 = vst.msk [vmem:[%s231 + $0x4c] sm:$0xf] %vm1644, %v1599
      %1665 = vst.msk [vmem:[%s231 + $0x50] sm:$0xf] %vm1644, %v1600
      %1666 = vst.msk [vmem:[%s231 + $0x54] sm:$0xf] %vm1644, %v1601
      %1667 = vst.msk [vmem:[%s231 + $0x58] sm:$0xf] %vm1644, %v1602
      %1668 = vst.msk [vmem:[%s231 + $0x5c] sm:$0xf] %vm1644, %v1603
      %1669 = vst.msk [vmem:[%s231 + $0x60] sm:$0xf] %vm1644, %v1604
      %1670 = vst.msk [vmem:[%s231 + $0x64] sm:$0xf] %vm1644, %v1605
      %1671 = vst.msk [vmem:[%s231 + $0x68] sm:$0xf] %vm1644, %v1606
      %1672 = vst.msk [vmem:[%s231 + $0x6c] sm:$0xf] %vm1644, %v1607
      %1673 = vst.msk [vmem:[%s231 + $0x70] sm:$0xf] %vm1644, %v1608
      %1674 = vst.msk [vmem:[%s231 + $0x74] sm:$0xf] %vm1644, %v1609
      %1675 = vst.msk [vmem:[%s231 + $0x78] sm:$0xf] %vm1644, %v1610
      %1676 = vst.msk [vmem:[%s231 + $0x7c] sm:$0xf] %vm1644, %v1611
      %v1677 = vunpack.c.l.bf16 %v1516
      %v1678 = vunpack.c.h.bf16 %v1516
      %v1679 = vunpack.c.l.bf16 %v1517
      %v1680 = vunpack.c.h.bf16 %v1517
      %v1681 = vunpack.c.l.bf16 %v1518
      %v1682 = vunpack.c.h.bf16 %v1518
      %v1683 = vunpack.c.l.bf16 %v1519
      %v1684 = vunpack.c.h.bf16 %v1519
      %v1685 = vunpack.c.l.bf16 %v1520
      %v1686 = vunpack.c.h.bf16 %v1520
      %v1687 = vunpack.c.l.bf16 %v1521
      %v1688 = vunpack.c.h.bf16 %v1521
      %v1689 = vunpack.c.l.bf16 %v1522
      %v1690 = vunpack.c.h.bf16 %v1522
      %v1691 = vunpack.c.l.bf16 %v1523
      %v1692 = vunpack.c.h.bf16 %v1523
      %v1693 = vunpack.c.l.bf16 %v1524
      %v1694 = vunpack.c.h.bf16 %v1524
      %v1695 = vunpack.c.l.bf16 %v1525
      %v1696 = vunpack.c.h.bf16 %v1525
      %v1697 = vunpack.c.l.bf16 %v1526
      %v1698 = vunpack.c.h.bf16 %v1526
      %v1699 = vunpack.c.l.bf16 %v1527
      %v1700 = vunpack.c.h.bf16 %v1527
      %v1701 = vunpack.c.l.bf16 %v1528
      %v1702 = vunpack.c.h.bf16 %v1528
      %v1703 = vunpack.c.l.bf16 %v1529
      %v1704 = vunpack.c.h.bf16 %v1529
      %v1705 = vunpack.c.l.bf16 %v1530
      %v1706 = vunpack.c.h.bf16 %v1530
      %v1707 = vunpack.c.l.bf16 %v1531
      %v1708 = vunpack.c.h.bf16 %v1531
      %v1709 = vsel %vm737, %v1677, 0.0
      %v1710 = vsel %vm737, %v1678, 0.0
      %v1711 = vadd.f32 %v1709, %v1710
      %v1712 = vsel %vm737, %v1679, 0.0
      %v1713 = vadd.f32 %v1711, %v1712
      %v1714 = vsel %vm737, %v1680, 0.0
      %v1715 = vadd.f32 %v1713, %v1714
      %v1716 = vsel %vm737, %v1681, 0.0
      %v1717 = vadd.f32 %v1715, %v1716
      %v1718 = vsel %vm737, %v1682, 0.0
      %v1719 = vadd.f32 %v1717, %v1718
      %v1720 = vsel %vm737, %v1683, 0.0
      %v1721 = vadd.f32 %v1719, %v1720
      %v1722 = vsel %vm737, %v1684, 0.0
      %v1723 = vadd.f32 %v1721, %v1722
      %v1724 = vsel %vm737, %v1685, 0.0
      %v1725 = vadd.f32 %v1723, %v1724
      %v1726 = vsel %vm737, %v1686, 0.0
      %v1727 = vadd.f32 %v1725, %v1726
      %v1728 = vsel %vm737, %v1687, 0.0
      %v1729 = vadd.f32 %v1727, %v1728
      %v1730 = vsel %vm737, %v1688, 0.0
      %v1731 = vadd.f32 %v1729, %v1730
      %v1732 = vsel %vm737, %v1689, 0.0
      %v1733 = vadd.f32 %v1731, %v1732
      %v1734 = vsel %vm737, %v1690, 0.0
      %v1735 = vadd.f32 %v1733, %v1734
      %v1736 = vsel %vm737, %v1691, 0.0
      %v1737 = vadd.f32 %v1735, %v1736
      %v1738 = vsel %vm737, %v1692, 0.0
      %v1739 = vadd.f32 %v1737, %v1738
      %v1740 = vsel %vm737, %v1693, 0.0
      %v1741 = vadd.f32 %v1739, %v1740
      %v1742 = vsel %vm737, %v1694, 0.0
      %v1743 = vadd.f32 %v1741, %v1742
      %v1744 = vsel %vm737, %v1695, 0.0
      %v1745 = vadd.f32 %v1743, %v1744
      %v1746 = vsel %vm737, %v1696, 0.0
      %v1747 = vadd.f32 %v1745, %v1746
      %v1748 = vsel %vm737, %v1697, 0.0
      %v1749 = vadd.f32 %v1747, %v1748
      %v1750 = vsel %vm737, %v1698, 0.0
      %v1751 = vadd.f32 %v1749, %v1750
      %v1752 = vsel %vm737, %v1699, 0.0
      %v1753 = vadd.f32 %v1751, %v1752
      %v1754 = vsel %vm737, %v1700, 0.0
      %v1755 = vadd.f32 %v1753, %v1754
      %v1756 = vsel %vm737, %v1701, 0.0
      %v1757 = vadd.f32 %v1755, %v1756
      %v1758 = vsel %vm737, %v1702, 0.0
      %v1759 = vadd.f32 %v1757, %v1758
      %v1760 = vsel %vm737, %v1703, 0.0
      %v1761 = vadd.f32 %v1759, %v1760
      %v1762 = vsel %vm737, %v1704, 0.0
      %v1763 = vadd.f32 %v1761, %v1762
      %v1764 = vsel %vm737, %v1705, 0.0
      %v1765 = vadd.f32 %v1763, %v1764
      %v1766 = vsel %vm737, %v1706, 0.0
      %v1767 = vadd.f32 %v1765, %v1766
      %v1768 = vsel %vm737, %v1707, 0.0
      %v1769 = vadd.f32 %v1767, %v1768
      %v1770 = vsel %vm737, %v1708, 0.0
      %v1771 = vadd.f32 %v1769, %v1770
      %v1772 = vrot.slane %v1771, 4
      %v1773 = vadd.f32 %v1771, %v1772
      %v1774 = vrot.slane %v1773, 2
      %v1775 = vadd.f32 %v1773, %v1774
      %v1776 = vrot.slane %v1775, 1
      %v1777 = vadd.f32 %v1775, %v1776
      %v1778 = vmul.f32 %v1677, %v1677
      %v1779 = vmul.f32 %v1678, %v1678
      %v1780 = vmul.f32 %v1679, %v1679
      %v1781 = vmul.f32 %v1680, %v1680
      %v1782 = vmul.f32 %v1681, %v1681
      %v1783 = vmul.f32 %v1682, %v1682
      %v1784 = vmul.f32 %v1683, %v1683
      %v1785 = vmul.f32 %v1684, %v1684
      %v1786 = vmul.f32 %v1685, %v1685
      %v1787 = vmul.f32 %v1686, %v1686
      %v1788 = vmul.f32 %v1687, %v1687
      %v1789 = vmul.f32 %v1688, %v1688
      %v1790 = vmul.f32 %v1689, %v1689
      %v1791 = vmul.f32 %v1690, %v1690
      %v1792 = vmul.f32 %v1691, %v1691
      %v1793 = vmul.f32 %v1692, %v1692
      %v1794 = vmul.f32 %v1693, %v1693
      %v1795 = vmul.f32 %v1694, %v1694
      %v1796 = vmul.f32 %v1695, %v1695
      %v1797 = vmul.f32 %v1696, %v1696
      %v1798 = vmul.f32 %v1697, %v1697
      %v1799 = vmul.f32 %v1698, %v1698
      %v1800 = vmul.f32 %v1699, %v1699
      %v1801 = vmul.f32 %v1700, %v1700
      %v1802 = vmul.f32 %v1701, %v1701
      %v1803 = vmul.f32 %v1702, %v1702
      %v1804 = vmul.f32 %v1703, %v1703
      %v1805 = vmul.f32 %v1704, %v1704
      %v1806 = vmul.f32 %v1705, %v1705
      %v1807 = vmul.f32 %v1706, %v1706
      %v1808 = vmul.f32 %v1707, %v1707
      %v1809 = vmul.f32 %v1708, %v1708
      %v1810 = vsel %vm737, %v1778, 0.0
      %v1811 = vsel %vm737, %v1779, 0.0
      %v1812 = vadd.f32 %v1810, %v1811
      %v1813 = vsel %vm737, %v1780, 0.0
      %v1814 = vadd.f32 %v1812, %v1813
      %v1815 = vsel %vm737, %v1781, 0.0
      %v1816 = vadd.f32 %v1814, %v1815
      %v1817 = vsel %vm737, %v1782, 0.0
      %v1818 = vadd.f32 %v1816, %v1817
      %v1819 = vsel %vm737, %v1783, 0.0
      %v1820 = vadd.f32 %v1818, %v1819
      %v1821 = vsel %vm737, %v1784, 0.0
      %v1822 = vadd.f32 %v1820, %v1821
      %v1823 = vsel %vm737, %v1785, 0.0
      %v1824 = vadd.f32 %v1822, %v1823
      %v1825 = vsel %vm737, %v1786, 0.0
      %v1826 = vadd.f32 %v1824, %v1825
      %v1827 = vsel %vm737, %v1787, 0.0
      %v1828 = vadd.f32 %v1826, %v1827
      %v1829 = vsel %vm737, %v1788, 0.0
      %v1830 = vadd.f32 %v1828, %v1829
      %v1831 = vsel %vm737, %v1789, 0.0
      %v1832 = vadd.f32 %v1830, %v1831
      %v1833 = vsel %vm737, %v1790, 0.0
      %v1834 = vadd.f32 %v1832, %v1833
      %v1835 = vsel %vm737, %v1791, 0.0
      %v1836 = vadd.f32 %v1834, %v1835
      %v1837 = vsel %vm737, %v1792, 0.0
      %v1838 = vadd.f32 %v1836, %v1837
      %v1839 = vsel %vm737, %v1793, 0.0
      %v1840 = vadd.f32 %v1838, %v1839
      %v1841 = vsel %vm737, %v1794, 0.0
      %v1842 = vadd.f32 %v1840, %v1841
      %v1843 = vsel %vm737, %v1795, 0.0
      %v1844 = vadd.f32 %v1842, %v1843
      %v1845 = vsel %vm737, %v1796, 0.0
      %v1846 = vadd.f32 %v1844, %v1845
      %v1847 = vsel %vm737, %v1797, 0.0
      %v1848 = vadd.f32 %v1846, %v1847
      %v1849 = vsel %vm737, %v1798, 0.0
      %v1850 = vadd.f32 %v1848, %v1849
      %v1851 = vsel %vm737, %v1799, 0.0
      %v1852 = vadd.f32 %v1850, %v1851
      %v1853 = vsel %vm737, %v1800, 0.0
      %v1854 = vadd.f32 %v1852, %v1853
      %v1855 = vsel %vm737, %v1801, 0.0
      %v1856 = vadd.f32 %v1854, %v1855
      %v1857 = vsel %vm737, %v1802, 0.0
      %v1858 = vadd.f32 %v1856, %v1857
      %v1859 = vsel %vm737, %v1803, 0.0
      %v1860 = vadd.f32 %v1858, %v1859
      %v1861 = vsel %vm737, %v1804, 0.0
      %v1862 = vadd.f32 %v1860, %v1861
      %v1863 = vsel %vm737, %v1805, 0.0
      %v1864 = vadd.f32 %v1862, %v1863
      %v1865 = vsel %vm737, %v1806, 0.0
      %v1866 = vadd.f32 %v1864, %v1865
      %v1867 = vsel %vm737, %v1807, 0.0
      %v1868 = vadd.f32 %v1866, %v1867
      %v1869 = vsel %vm737, %v1808, 0.0
      %v1870 = vadd.f32 %v1868, %v1869
      %v1871 = vsel %vm737, %v1809, 0.0
      %v1872 = vadd.f32 %v1870, %v1871
      %v1873 = vrot.slane %v1872, 4
      %v1874 = vadd.f32 %v1872, %v1873
      %v1875 = vrot.slane %v1874, 2
      %v1876 = vadd.f32 %v1874, %v1875
      %v1877 = vrot.slane %v1876, 1
      %v1878 = vadd.f32 %v1876, %v1877
      %vm1879 = vcmask 1040384
      %v1880 = vsel %vm1879, %v1777, %v1878
      %vm1881 = vcmask 254976
      %1882 = vst.msk [vmem:[%s235] sm:$0x3] %vm1881, %v1880
      %p1883 = scmp.lt.s32.totalorder %s17, 1
      %s1884 = scalar_select %p1883, %s17, 1
      %s1885 = smul.addr %s1884, 32
      %s1886 = smul.addr %s1885, 4
      %s1887 = scalar_lea.vmem %s4, %s1886
      %p1888 = scmp.lt.s32.totalorder %s17, 1
      %s1889 = scalar_select %p1888, %s17, 1
      %s1890 = smul.addr %s1889, 2
      %s1891 = scalar_lea.vmem %s5, %s1890
      // Predicated region
      $region37: #{bottleneck_forward_impl.5} parent=35 // pred_check
        %p1892 = pneg %p124
      $region38: #{bottleneck_forward_impl.5} parent=35 // pred_check_branch
        %1894 = sbr.rel (%p1892) target = $region40
      $region39: #{bottleneck_forward_impl.5} parent=35 // pred_region
        _
      $region40: #{bottleneck_forward_impl.5} parent=35 // pred_fallthru
        _
      // Predicated region
      $region41: #{bottleneck_forward_impl.5} parent=35 // pred_check
        %p1895 = pneg %p150
      $region42: #{bottleneck_forward_impl.5} parent=35 // pred_check_branch
        %1897 = sbr.rel (%p1895) target = $region44
      $region43: #{bottleneck_forward_impl.5} parent=35 // pred_region
        _
      $region44: #{bottleneck_forward_impl.5} parent=35 // pred_fallthru
        _
    $region36: #{bottleneck_forward_impl.5} parent=5 // pred_fallthru
      _
    %p1898 = scmp.le.s32.totalorder 2, %s12
    // Predicated region
    $region45: #{bottleneck_forward_impl.5} parent=5 // pred_check
      %p1899 = pneg %p1898
    $region46: #{bottleneck_forward_impl.5} parent=5 // pred_check_branch
      %1901 = sbr.rel (%p1899) target = $region48
    $region47: #{bottleneck_forward_impl.5} parent=5 // pred_region
      %s1902 = ssub.s32 %s12, 2
      // Predicated region
      $region49: #{bottleneck_forward_impl.5} parent=47 // pred_check
        %p1903 = pneg %p130
      $region50: #{bottleneck_forward_impl.5} parent=47 // pred_check_branch
        %1905 = sbr.rel (%p1903) target = $region52
      $region51: #{bottleneck_forward_impl.5} parent=47 // pred_region
        %p1906 = scmp.lt.s32.totalorder %s18, 1
        %s1907 = scalar_select %p1906, %s18, 1
        %s1908 = smul.addr %s1907, 32
        %s1909 = smul.addr %s1908, 4
        %s1910 = scalar_lea.vmem %s4, %s1909
      $region52: #{bottleneck_forward_impl.5} parent=47 // pred_fallthru
        _
      // Predicated region
      $region53: #{bottleneck_forward_impl.5} parent=47 // pred_check
        %p1911 = pneg %p156
      $region54: #{bottleneck_forward_impl.5} parent=47 // pred_check_branch
        %1913 = sbr.rel (%p1911) target = $region56
      $region55: #{bottleneck_forward_impl.5} parent=47 // pred_region
        %p1914 = scmp.lt.s32.totalorder %s18, 1
        %s1915 = scalar_select %p1914, %s18, 1
        %s1916 = smul.addr %s1915, 2
        %s1917 = scalar_lea.vmem %s5, %s1916
      $region56: #{bottleneck_forward_impl.5} parent=47 // pred_fallthru
        _
    $region48: #{bottleneck_forward_impl.5} parent=5 // pred_fallthru
      _
  $region6: #{bottleneck_forward_impl.5} parent=0 // loop_footer
    %s16 = sadd.s32 1, %s12
  $region7: #{bottleneck_forward_impl.5} parent=0 // loop_footer_branch
    %11 = sbr.rel target = $region3
  $region8: #{bottleneck_forward_impl.5} parent=0 // loop_exit
    _

</llo_original>
